<compile_context>
chip_gen: v7x
topology: tpu7x:2x2x1
jax: 0.10.0
libtpu: 0.0.40
codegen_flags: <defaults>
</compile_context>

<pallas_src>
import jax
import jax.numpy as jnp
from jax.experimental import pallas as pl
from jax.experimental.pallas import tpu as pltpu

EPS = 1e-5
LANE = 128
VMEM_LIMIT = 48 * 1024 * 1024        # fits v7x's 64 MiB physical VMEM w/ headroom
TILE_BUDGET = 24 * 1024 * 1024       # per-step (double-buffered) footprint budget


# ----------------------------- small helpers -------------------------------

def _ceil_to(x, m):
    return ((x + m - 1) // m) * m


def _pad_last(a, n):
    pad = [(0, 0)] * (a.ndim - 1) + [(0, n - a.shape[-1])]
    return jnp.pad(a, pad)


def _bn_fold(gamma, beta, mean, var):
    scale = gamma / jnp.sqrt(var + EPS)
    shift = beta - mean * scale
    return scale, shift


def _pick_row_tile(p_rows, cin, midp, coutp):
    """Largest row tile whose double-buffered VMEM footprint fits the budget."""
    def footprint(t):
        act_in = 2 * t * cin * 2                       # bf16 xs tile
        outs = 2 * (t * coutp * 4 + t * midp * 2)      # f32 identity + bf16 a2
        wts = 2 * cin * (coutp + midp) * 2             # bf16 weights
        vecs = 2 * (2 * cin + 2 * midp + coutp) * 4    # BN / bias rows
        return act_in + outs + wts + vecs

    for t in (1024, 512, 256, 128, 64, 32, 16, 8):
        if p_rows % t == 0 and footprint(t) <= TILE_BUDGET:
            return t
    return p_rows            # single full block is always layout-legal


# ----------------------------- Pallas kernels ------------------------------

def _stage_a_kernel(xs_ref, s1_ref, h1_ref, s2_ref, h2_ref,
                    wid_ref, bid_ref, w1_ref,
                    id_ref, a2_ref):
    xs = xs_ref[...]                                               # (t, Cin) bf16
    # identity path: 1x1 stride-2 conv (stride applied by the row gather)
    id_ref[...] = (jnp.dot(xs, wid_ref[...],
                           preferred_element_type=jnp.float32) + bid_ref[...])
    # block1: BN1 + ReLU + 1x1 stride-2 conv, BN2 + ReLU fused as epilogue
    h = jnp.maximum(xs.astype(jnp.float32) * s1_ref[...] + h1_ref[...], 0.0)
    o1 = jnp.dot(h.astype(jnp.bfloat16), w1_ref[...],
                 preferred_element_type=jnp.float32)
    a2_ref[...] = jnp.maximum(o1 * s2_ref[...] + h2_ref[...],
                              0.0).astype(jnp.bfloat16)


def _stage_b_kernel(a2p_ref, w2_ref, s3_ref, h3_ref, w3_ref, b3_ref,
                    id_ref, out_ref):
    _, hp, wp, midp = a2p_ref.shape
    ho, wo = hp - 2, wp - 2
    # 3x3 conv (stride 1, zero padding already applied): accumulate 9 taps on-chip
    acc = jnp.zeros((ho * wo, midp), jnp.float32)
    for kh in range(3):
        for kw in range(3):
            tap = a2p_ref[0, kh:kh + ho, kw:kw + wo, :].reshape(ho * wo, midp)
            acc = acc + jnp.dot(tap, w2_ref[kh, kw],
                                preferred_element_type=jnp.float32)
    # block3: BN3 (conv2 bias folded into shift) + ReLU + 1x1 conv + bias
    # + fused residual add
    h = jnp.maximum(acc * s3_ref[...] + h3_ref[...], 0.0)
    out_ref[0] = (jnp.dot(h.astype(jnp.bfloat16), w3_ref[...],
                          preferred_element_type=jnp.float32)
                  + b3_ref[...] + id_ref[0])


# ------------------------- DownBottleneck forward --------------------------

def down_bottleneck_pallas(x_nchw, p):
    """Pallas TPU implementation of DownBottleneck.forward (stride=2, eval BN)."""
    x = jnp.transpose(x_nchw, (0, 2, 3, 1)).astype(jnp.float32)    # NHWC
    n, hin, win, cin = x.shape
    ho, wo = (hin - 1) // 2 + 1, (win - 1) // 2 + 1
    hw = ho * wo
    p_rows = n * hw

    out_ch = p["conv1_w"].shape[0]
    mid = p["b1_w"].shape[0]
    midp = _ceil_to(mid, LANE)
    coutp = _ceil_to(out_ch, LANE)

    # ---- parameter prep: fold BN + conv biases, pad channels, cast to bf16 --
    s1, h1 = _bn_fold(p["bn1_gamma"], p["bn1_beta"], p["bn1_mean"], p["bn1_var"])
    s2, h2 = _bn_fold(p["bn2_gamma"], p["bn2_beta"], p["bn2_mean"], p["bn2_var"])
    s3, h3 = _bn_fold(p["bn3_gamma"], p["bn3_beta"], p["bn3_mean"], p["bn3_var"])
    h2 = h2 + p["b1_b"] * s2          # block1 conv bias folded into BN2 shift
    h3 = h3 + p["b2_b"] * s3          # block2 conv bias folded into BN3 shift

    s1 = s1.reshape(1, cin)
    h1 = h1.reshape(1, cin)
    s2 = _pad_last(s2, midp).reshape(1, midp)
    h2 = _pad_last(h2, midp).reshape(1, midp)
    s3 = _pad_last(s3, midp).reshape(1, midp)
    h3 = _pad_last(h3, midp).reshape(1, midp)

    wid = _pad_last(p["conv1_w"][:, :, 0, 0].T, coutp).astype(jnp.bfloat16)
    bid = _pad_last(p["conv1_b"], coutp).reshape(1, coutp)
    w1 = _pad_last(p["b1_w"][:, :, 0, 0].T, midp).astype(jnp.bfloat16)
    w2 = jnp.transpose(p["b2_w"], (2, 3, 1, 0))           # (3,3,Cin=mid,Cout=mid)
    w2 = jnp.pad(w2, ((0, 0), (0, 0), (0, midp - mid),
                      (0, midp - mid))).astype(jnp.bfloat16)
    w3 = jnp.pad(p["b3_w"][:, :, 0, 0].T,
                 ((0, midp - mid), (0, coutp - out_ch))).astype(jnp.bfloat16)
    b3 = _pad_last(p["b3_b"], coutp).reshape(1, coutp)

    # ---- stage A: shared xs load -> identity conv + block1 (+BN2/ReLU) ------
    xs = x[:, ::2, ::2, :].reshape(p_rows, cin).astype(jnp.bfloat16)
    t = _pick_row_tile(p_rows, cin, midp, coutp)

    cost_a = pl.CostEstimate(
        flops=2 * p_rows * cin * (coutp + midp),
        transcendentals=0,
        bytes_accessed=(p_rows * cin * 2 + cin * (coutp + midp) * 2
                        + p_rows * coutp * 4 + p_rows * midp * 2))

    identity, a2 = pl.pallas_call(
        _stage_a_kernel,
        out_shape=(jax.ShapeDtypeStruct((p_rows, coutp), jnp.float32),
                   jax.ShapeDtypeStruct((p_rows, midp), jnp.bfloat16)),
        grid=(p_rows // t,),
        in_specs=[pl.BlockSpec((t, cin), lambda i: (i, 0)),
                  pl.BlockSpec((1, cin), lambda i: (0, 0)),      # bn1 scale
                  pl.BlockSpec((1, cin), lambda i: (0, 0)),      # bn1 shift
                  pl.BlockSpec((1, midp), lambda i: (0, 0)),     # bn2 scale
                  pl.BlockSpec((1, midp), lambda i: (0, 0)),     # bn2 shift(+b1)
                  pl.BlockSpec((cin, coutp), lambda i: (0, 0)),  # identity W
                  pl.BlockSpec((1, coutp), lambda i: (0, 0)),    # identity b
                  pl.BlockSpec((cin, midp), lambda i: (0, 0))],  # block1 W
        out_specs=(pl.BlockSpec((t, coutp), lambda i: (i, 0)),
                   pl.BlockSpec((t, midp), lambda i: (i, 0))),
        compiler_params=pltpu.CompilerParams(
            dimension_semantics=("parallel",),
            vmem_limit_bytes=VMEM_LIMIT),
        cost_estimate=cost_a,
    )(xs, s1, h1, s2, h2, wid, bid, w1)

    # ---- stage B: in-kernel 3x3 conv + block3 + fused residual add ----------
    a2p = jnp.pad(a2.reshape(n, ho, wo, midp), ((0, 0), (1, 1), (1, 1), (0, 0)))
    identity = identity.reshape(n, hw, coutp)

    cost_b = pl.CostEstimate(
        flops=2 * p_rows * midp * (9 * midp + coutp),
        transcendentals=0,
        bytes_accessed=(n * (ho + 2) * (wo + 2) * midp * 2
                        + (9 * midp * midp + midp * coutp) * 2
                        + p_rows * coutp * 8))

    out = pl.pallas_call(
        _stage_b_kernel,
        out_shape=jax.ShapeDtypeStruct((n, hw, coutp), jnp.float32),
        grid=(n,),
        in_specs=[pl.BlockSpec((1, ho + 2, wo + 2, midp),
                               lambda b: (b, 0, 0, 0)),          # padded a2
                  pl.BlockSpec((3, 3, midp, midp), lambda b: (0, 0, 0, 0)),
                  pl.BlockSpec((1, midp), lambda b: (0, 0)),     # bn3 scale
                  pl.BlockSpec((1, midp), lambda b: (0, 0)),     # bn3 shift(+b2)
                  pl.BlockSpec((midp, coutp), lambda b: (0, 0)), # block3 W
                  pl.BlockSpec((1, coutp), lambda b: (0, 0)),    # block3 b
                  pl.BlockSpec((1, hw, coutp), lambda b: (b, 0, 0))],
        out_specs=pl.BlockSpec((1, hw, coutp), lambda b: (b, 0, 0)),
        compiler_params=pltpu.CompilerParams(
            dimension_semantics=("parallel",),
            vmem_limit_bytes=VMEM_LIMIT),
        cost_estimate=cost_b,
    )(a2p, w2, s3, h3, w3, b3, identity)

    out = out.reshape(n, ho, wo, coutp)[..., :out_ch]
    return jnp.transpose(out, (0, 3, 1, 2))                       # back to NCHW


# --------------------------- pure-JAX reference -----------------------------

def _conv2d_nchw(x, w, b, stride=1, pad=0):
    y = jax.lax.conv_general_dilated(
        x, w, window_strides=(stride, stride),
        padding=[(pad, pad), (pad, pad)],
        dimension_numbers=("NCHW", "OIHW", "NCHW"),
        precision=jax.lax.Precision.HIGHEST)
    return y + b[None, :, None, None]


def _bn_nchw(x, g, bta, m, v):
    inv = g / jnp.sqrt(v + EPS)
    return x * inv[None, :, None, None] + (bta - m * inv)[None, :, None, None]


def down_bottleneck_reference(x, p):
    identity = _conv2d_nchw(x, p["conv1_w"], p["conv1_b"], stride=2)
    o = _conv2d_nchw(jax.nn.relu(_bn_nchw(x, p["bn1_gamma"], p["bn1_beta"],
                                          p["bn1_mean"], p["bn1_var"])),
                     p["b1_w"], p["b1_b"], stride=2)
    o = _conv2d_nchw(jax.nn.relu(_bn_nchw(o, p["bn2_gamma"], p["bn2_beta"],
                                          p["bn2_mean"], p["bn2_var"])),
                     p["b2_w"], p["b2_b"], stride=1, pad=1)
    o = _conv2d_nchw(jax.nn.relu(_bn_nchw(o, p["bn3_gamma"], p["bn3_beta"],
                                          p["bn3_mean"], p["bn3_var"])),
                     p["b3_w"], p["b3_b"])
    return o + identity


# ------------------------------- main ---------------------------------------

if __name__ == "__main__":
    N, in_ch, H, W = 2, 8, 16, 16
    out_ch = 16
    mid = out_ch // 4

    key = jax.random.PRNGKey(0)
    ks = jax.random.split(key, 21)

    def nrm(k, shape, s=0.1):
        return s * jax.random.normal(k, shape, jnp.float32)

    params = {
        # conv1 (identity path): 1x1, stride 2
        "conv1_w": nrm(ks[0], (out_ch, in_ch, 1, 1)),
        "conv1_b": nrm(ks[1], (out_ch,)),
        # block1: BN(in_ch) + ReLU + 1x1 stride-2 conv -> mid
        "bn1_gamma": 1.0 + nrm(ks[2], (in_ch,)),
        "bn1_beta":  nrm(ks[3], (in_ch,)),
        "bn1_mean":  nrm(ks[4], (in_ch,)),
        "bn1_var":   1.0 + 0.1 * jax.random.uniform(ks[5], (in_ch,), jnp.float32),
        "b1_w": nrm(ks[6], (mid, in_ch, 1, 1)),
        "b1_b": nrm(ks[7], (mid,)),
        # block2: BN(mid) + ReLU + 3x3 conv -> mid
        "bn2_gamma": 1.0 + nrm(ks[8], (mid,)),
        "bn2_beta":  nrm(ks[9], (mid,)),
        "bn2_mean":  nrm(ks[10], (mid,)),
        "bn2_var":   1.0 + 0.1 * jax.random.uniform(ks[11], (mid,), jnp.float32),
        "b2_w": nrm(ks[12], (mid, mid, 3, 3)),
        "b2_b": nrm(ks[13], (mid,)),
        # block3: BN(mid) + ReLU + 1x1 conv -> out_ch
        "bn3_gamma": 1.0 + nrm(ks[14], (mid,)),
        "bn3_beta":  nrm(ks[15], (mid,)),
        "bn3_mean":  nrm(ks[16], (mid,)),
        "bn3_var":   1.0 + 0.1 * jax.random.uniform(ks[17], (mid,), jnp.float32),
        "b3_w": nrm(ks[18], (out_ch, mid, 1, 1)),
        "b3_b": nrm(ks[19], (out_ch,)),
    }

    x = jax.random.normal(ks[20], (N, in_ch, H, W), jnp.float32)

    fwd = jax.jit(down_bottleneck_pallas)
    out = jax.block_until_ready(fwd(x, params))
    ref = down_bottleneck_reference(x, params)

    assert out.shape == (N, out_ch, H // 2, W // 2), out.shape
    max_err = float(jnp.max(jnp.abs(out - ref)))
    assert jnp.allclose(out, ref, atol=2e-2, rtol=2e-2), max_err

    print("KERNEL_OK")
</pallas_src>

<mosaic_0001>
module attributes {stable_mosaic.version = 11 : i64} {
  func.func @_stage_a_kernel(%arg0: i32, %arg1: memref<128x8xbf16, #tpu.memory_space<vmem>>, %arg2: memref<1x8xf32, #tpu.memory_space<vmem>>, %arg3: memref<1x8xf32, #tpu.memory_space<vmem>>, %arg4: memref<1x128xf32, #tpu.memory_space<vmem>>, %arg5: memref<1x128xf32, #tpu.memory_space<vmem>>, %arg6: memref<8x128xbf16, #tpu.memory_space<vmem>>, %arg7: memref<1x128xf32, #tpu.memory_space<vmem>>, %arg8: memref<8x128xbf16, #tpu.memory_space<vmem>>, %arg9: memref<128x128xf32, #tpu.memory_space<vmem>>, %arg10: memref<128x128xbf16, #tpu.memory_space<vmem>>) attributes {dimension_semantics = [#tpu.dimension_semantics<parallel>], iteration_bounds = array<i64: 1>, scalar_prefetch = 0 : i64, scratch_operands = 0 : i64, tpu.core_type = #tpu.core_type<tc>, window_params = [{transform_indices = @transform_0, window_bounds = array<i64: 128, 8>}, {pipeline_mode = #tpu.pipeline_mode<synchronous>, transform_indices = @transform_1, window_bounds = array<i64: 1, 8>}, {pipeline_mode = #tpu.pipeline_mode<synchronous>, transform_indices = @transform_2, window_bounds = array<i64: 1, 8>}, {pipeline_mode = #tpu.pipeline_mode<synchronous>, transform_indices = @transform_3, window_bounds = array<i64: 1, 128>}, {pipeline_mode = #tpu.pipeline_mode<synchronous>, transform_indices = @transform_4, window_bounds = array<i64: 1, 128>}, {pipeline_mode = #tpu.pipeline_mode<synchronous>, transform_indices = @transform_5, window_bounds = array<i64: 8, 128>}, {pipeline_mode = #tpu.pipeline_mode<synchronous>, transform_indices = @transform_6, window_bounds = array<i64: 1, 128>}, {pipeline_mode = #tpu.pipeline_mode<synchronous>, transform_indices = @transform_7, window_bounds = array<i64: 8, 128>}, {transform_indices = @transform_8, window_bounds = array<i64: 128, 128>}, {transform_indices = @transform_9, window_bounds = array<i64: 128, 128>}]} {
    %c0 = arith.constant 0 : index
    %c0_0 = arith.constant 0 : index
    %0 = vector.load %arg1[%c0, %c0_0] : memref<128x8xbf16, #tpu.memory_space<vmem>>, vector<128x8xbf16>
    %c0_1 = arith.constant 0 : index
    %c0_2 = arith.constant 0 : index
    %1 = vector.load %arg6[%c0_1, %c0_2] : memref<8x128xbf16, #tpu.memory_space<vmem>>, vector<8x128xbf16>
    %cst = arith.constant dense<0.000000e+00> : vector<128x128xf32>
    %2 = tpu.matmul %0, %1, %cst {dimension_numbers = #tpu.dot_dimension_numbers<[1], [0], [0], [1], [0, 0, 1, 1], [], []>} : vector<128x8xbf16>, vector<8x128xbf16>, vector<128x128xf32> -> vector<128x128xf32>
    %c0_3 = arith.constant 0 : index
    %c0_4 = arith.constant 0 : index
    %3 = vector.load %arg7[%c0_3, %c0_4] : memref<1x128xf32, #tpu.memory_space<vmem>>, vector<1x128xf32>
    %4 = vector.broadcast %3 : vector<1x128xf32> to vector<128x128xf32>
    %5 = arith.addf %2, %4 : vector<128x128xf32>
    %c0_5 = arith.constant 0 : index
    %c0_6 = arith.constant 0 : index
    %6 = vector.load %arg9[%c0_5, %c0_6] : memref<128x128xf32, #tpu.memory_space<vmem>>, vector<128x128xf32>
    tpu.vector_store %arg9[%c0_5, %c0_6], %5 {strides = array<i32>} : memref<128x128xf32, #tpu.memory_space<vmem>>, vector<128x128xf32>,
    %7 = arith.extf %0 : vector<128x8xbf16> to vector<128x8xf32>
    %c0_7 = arith.constant 0 : index
    %c0_8 = arith.constant 0 : index
    %8 = vector.load %arg2[%c0_7, %c0_8] : memref<1x8xf32, #tpu.memory_space<vmem>>, vector<1x8xf32>
    %9 = vector.broadcast %8 : vector<1x8xf32> to vector<128x8xf32>
    %10 = arith.mulf %7, %9 : vector<128x8xf32>
    %c0_9 = arith.constant 0 : index
    %c0_10 = arith.constant 0 : index
    %11 = vector.load %arg3[%c0_9, %c0_10] : memref<1x8xf32, #tpu.memory_space<vmem>>, vector<1x8xf32>
    %12 = vector.broadcast %11 : vector<1x8xf32> to vector<128x8xf32>
    %13 = arith.addf %10, %12 : vector<128x8xf32>
    %cst_11 = arith.constant 0.000000e+00 : f32
    %14 = vector.broadcast %cst_11 : f32 to vector<128x8xf32>
    %15 = arith.maximumf %13, %14 : vector<128x8xf32>
    %16 = arith.truncf %15 : vector<128x8xf32> to vector<128x8xbf16>
    %c0_12 = arith.constant 0 : index
    %c0_13 = arith.constant 0 : index
    %17 = vector.load %arg8[%c0_12, %c0_13] : memref<8x128xbf16, #tpu.memory_space<vmem>>, vector<8x128xbf16>
    %cst_14 = arith.constant dense<0.000000e+00> : vector<128x128xf32>
    %18 = tpu.matmul %16, %17, %cst_14 {dimension_numbers = #tpu.dot_dimension_numbers<[1], [0], [0], [1], [0, 0, 1, 1], [], []>} : vector<128x8xbf16>, vector<8x128xbf16>, vector<128x128xf32> -> vector<128x128xf32>
    %c0_15 = arith.constant 0 : index
    %c0_16 = arith.constant 0 : index
    %19 = vector.load %arg4[%c0_15, %c0_16] : memref<1x128xf32, #tpu.memory_space<vmem>>, vector<1x128xf32>
    %20 = vector.broadcast %19 : vector<1x128xf32> to vector<128x128xf32>
    %21 = arith.mulf %18, %20 : vector<128x128xf32>
    %c0_17 = arith.constant 0 : index
    %c0_18 = arith.constant 0 : index
    %22 = vector.load %arg5[%c0_17, %c0_18] : memref<1x128xf32, #tpu.memory_space<vmem>>, vector<1x128xf32>
    %23 = vector.broadcast %22 : vector<1x128xf32> to vector<128x128xf32>
    %24 = arith.addf %21, %23 : vector<128x128xf32>
    %cst_19 = arith.constant 0.000000e+00 : f32
    %25 = vector.broadcast %cst_19 : f32 to vector<128x128xf32>
    %26 = arith.maximumf %24, %25 : vector<128x128xf32>
    %27 = arith.truncf %26 : vector<128x128xf32> to vector<128x128xbf16>
    %c0_20 = arith.constant 0 : index
    %c0_21 = arith.constant 0 : index
    %28 = vector.load %arg10[%c0_20, %c0_21] : memref<128x128xbf16, #tpu.memory_space<vmem>>, vector<128x128xbf16>
    tpu.vector_store %arg10[%c0_20, %c0_21], %27 {strides = array<i32>} : memref<128x128xbf16, #tpu.memory_space<vmem>>, vector<128x128xbf16>,
    return
  }
  func.func @transform_0(%arg0: i32) -> (i32, i32) {
    %c0_i32 = arith.constant 0 : i32
    %c0_i32_0 = arith.constant 0 : i32
    return %arg0, %c0_i32 : i32, i32
  }
  func.func @transform_1(%arg0: i32) -> (i32, i32) {
    %c0_i32 = arith.constant 0 : i32
    %c0_i32_0 = arith.constant 0 : i32
    %c0_i32_1 = arith.constant 0 : i32
    return %c0_i32, %c0_i32_0 : i32, i32
  }
  func.func @transform_2(%arg0: i32) -> (i32, i32) {
    %c0_i32 = arith.constant 0 : i32
    %c0_i32_0 = arith.constant 0 : i32
    %c0_i32_1 = arith.constant 0 : i32
    return %c0_i32, %c0_i32_0 : i32, i32
  }
  func.func @transform_3(%arg0: i32) -> (i32, i32) {
    %c0_i32 = arith.constant 0 : i32
    %c0_i32_0 = arith.constant 0 : i32
    %c0_i32_1 = arith.constant 0 : i32
    return %c0_i32, %c0_i32_0 : i32, i32
  }
  func.func @transform_4(%arg0: i32) -> (i32, i32) {
    %c0_i32 = arith.constant 0 : i32
    %c0_i32_0 = arith.constant 0 : i32
    %c0_i32_1 = arith.constant 0 : i32
    return %c0_i32, %c0_i32_0 : i32, i32
  }
  func.func @transform_5(%arg0: i32) -> (i32, i32) {
    %c0_i32 = arith.constant 0 : i32
    %c0_i32_0 = arith.constant 0 : i32
    %c0_i32_1 = arith.constant 0 : i32
    return %c0_i32, %c0_i32_0 : i32, i32
  }
  func.func @transform_6(%arg0: i32) -> (i32, i32) {
    %c0_i32 = arith.constant 0 : i32
    %c0_i32_0 = arith.constant 0 : i32
    %c0_i32_1 = arith.constant 0 : i32
    return %c0_i32, %c0_i32_0 : i32, i32
  }
  func.func @transform_7(%arg0: i32) -> (i32, i32) {
    %c0_i32 = arith.constant 0 : i32
    %c0_i32_0 = arith.constant 0 : i32
    %c0_i32_1 = arith.constant 0 : i32
    return %c0_i32, %c0_i32_0 : i32, i32
  }
  func.func @transform_8(%arg0: i32) -> (i32, i32) {
    %c0_i32 = arith.constant 0 : i32
    %c0_i32_0 = arith.constant 0 : i32
    return %arg0, %c0_i32 : i32, i32
  }
  func.func @transform_9(%arg0: i32) -> (i32, i32) {
    %c0_i32 = arith.constant 0 : i32
    %c0_i32_0 = arith.constant 0 : i32
    return %arg0, %c0_i32 : i32, i32
  }
}

module attributes {stable_mosaic.version = 11 : i64} {
  func.func @_stage_b_kernel(%arg0: i32, %arg1: memref<1x10x10x128xbf16, #tpu.memory_space<vmem>>, %arg2: memref<3x3x128x128xbf16, #tpu.memory_space<vmem>>, %arg3: memref<1x128xf32, #tpu.memory_space<vmem>>, %arg4: memref<1x128xf32, #tpu.memory_space<vmem>>, %arg5: memref<128x128xbf16, #tpu.memory_space<vmem>>, %arg6: memref<1x128xf32, #tpu.memory_space<vmem>>, %arg7: memref<1x64x128xf32, #tpu.memory_space<vmem>>, %arg8: memref<1x64x128xf32, #tpu.memory_space<vmem>>) attributes {dimension_semantics = [#tpu.dimension_semantics<parallel>], iteration_bounds = array<i64: 2>, scalar_prefetch = 0 : i64, scratch_operands = 0 : i64, tpu.core_type = #tpu.core_type<tc>, window_params = [{transform_indices = @transform_0, window_bounds = array<i64: 1, 10, 10, 128>}, {pipeline_mode = #tpu.pipeline_mode<synchronous>, transform_indices = @transform_1, window_bounds = array<i64: 3, 3, 128, 128>}, {pipeline_mode = #tpu.pipeline_mode<synchronous>, transform_indices = @transform_2, window_bounds = array<i64: 1, 128>}, {pipeline_mode = #tpu.pipeline_mode<synchronous>, transform_indices = @transform_3, window_bounds = array<i64: 1, 128>}, {pipeline_mode = #tpu.pipeline_mode<synchronous>, transform_indices = @transform_4, window_bounds = array<i64: 128, 128>}, {pipeline_mode = #tpu.pipeline_mode<synchronous>, transform_indices = @transform_5, window_bounds = array<i64: 1, 128>}, {transform_indices = @transform_6, window_bounds = array<i64: 1, 64, 128>}, {transform_indices = @transform_7, window_bounds = array<i64: 1, 64, 128>}]} {
    %cst = arith.constant 0.000000e+00 : f32
    %0 = vector.broadcast %cst : f32 to vector<64x128xf32>
    %c0 = arith.constant 0 : index
    %c0_0 = arith.constant 0 : index
    %c0_1 = arith.constant 0 : index
    %c0_2 = arith.constant 0 : index
    %1 = vector.load %arg1[%c0, %c0_0, %c0_1, %c0_2] : memref<1x10x10x128xbf16, #tpu.memory_space<vmem>>, vector<1x8x8x128xbf16>
    %2 = vector.shape_cast %1 : vector<1x8x8x128xbf16> to vector<8x8x128xbf16>
    %3 = vector.shape_cast %2 : vector<8x8x128xbf16> to vector<64x128xbf16>
    %c0_3 = arith.constant 0 : index
    %c0_4 = arith.constant 0 : index
    %c0_5 = arith.constant 0 : index
    %c0_6 = arith.constant 0 : index
    %4 = vector.load %arg2[%c0_3, %c0_4, %c0_5, %c0_6] : memref<3x3x128x128xbf16, #tpu.memory_space<vmem>>, vector<1x1x128x128xbf16>
    %5 = vector.shape_cast %4 : vector<1x1x128x128xbf16> to vector<128x128xbf16>
    %cst_7 = arith.constant dense<0.000000e+00> : vector<64x128xf32>
    %6 = tpu.matmul %3, %5, %cst_7 {dimension_numbers = #tpu.dot_dimension_numbers<[1], [0], [0], [1], [0, 0, 1, 1], [], []>} : vector<64x128xbf16>, vector<128x128xbf16>, vector<64x128xf32> -> vector<64x128xf32>
    %7 = arith.addf %0, %6 : vector<64x128xf32>
    %c0_8 = arith.constant 0 : index
    %c0_9 = arith.constant 0 : index
    %c1 = arith.constant 1 : index
    %c0_10 = arith.constant 0 : index
    %8 = vector.load %arg1[%c0_8, %c0_9, %c1, %c0_10] : memref<1x10x10x128xbf16, #tpu.memory_space<vmem>>, vector<1x8x8x128xbf16>
    %9 = vector.shape_cast %8 : vector<1x8x8x128xbf16> to vector<8x8x128xbf16>
    %10 = vector.shape_cast %9 : vector<8x8x128xbf16> to vector<64x128xbf16>
    %c0_11 = arith.constant 0 : index
    %c1_12 = arith.constant 1 : index
    %c0_13 = arith.constant 0 : index
    %c0_14 = arith.constant 0 : index
    %11 = vector.load %arg2[%c0_11, %c1_12, %c0_13, %c0_14] : memref<3x3x128x128xbf16, #tpu.memory_space<vmem>>, vector<1x1x128x128xbf16>
    %12 = vector.shape_cast %11 : vector<1x1x128x128xbf16> to vector<128x128xbf16>
    %cst_15 = arith.constant dense<0.000000e+00> : vector<64x128xf32>
    %13 = tpu.matmul %10, %12, %cst_15 {dimension_numbers = #tpu.dot_dimension_numbers<[1], [0], [0], [1], [0, 0, 1, 1], [], []>} : vector<64x128xbf16>, vector<128x128xbf16>, vector<64x128xf32> -> vector<64x128xf32>
    %14 = arith.addf %7, %13 : vector<64x128xf32>
    %c0_16 = arith.constant 0 : index
    %c0_17 = arith.constant 0 : index
    %c2 = arith.constant 2 : index
    %c0_18 = arith.constant 0 : index
    %15 = vector.load %arg1[%c0_16, %c0_17, %c2, %c0_18] : memref<1x10x10x128xbf16, #tpu.memory_space<vmem>>, vector<1x8x8x128xbf16>
    %16 = vector.shape_cast %15 : vector<1x8x8x128xbf16> to vector<8x8x128xbf16>
    %17 = vector.shape_cast %16 : vector<8x8x128xbf16> to vector<64x128xbf16>
    %c0_19 = arith.constant 0 : index
    %c2_20 = arith.constant 2 : index
    %c0_21 = arith.constant 0 : index
    %c0_22 = arith.constant 0 : index
    %18 = vector.load %arg2[%c0_19, %c2_20, %c0_21, %c0_22] : memref<3x3x128x128xbf16, #tpu.memory_space<vmem>>, vector<1x1x128x128xbf16>
    %19 = vector.shape_cast %18 : vector<1x1x128x128xbf16> to vector<128x128xbf16>
    %cst_23 = arith.constant dense<0.000000e+00> : vector<64x128xf32>
    %20 = tpu.matmul %17, %19, %cst_23 {dimension_numbers = #tpu.dot_dimension_numbers<[1], [0], [0], [1], [0, 0, 1, 1], [], []>} : vector<64x128xbf16>, vector<128x128xbf16>, vector<64x128xf32> -> vector<64x128xf32>
    %21 = arith.addf %14, %20 : vector<64x128xf32>
    %c0_24 = arith.constant 0 : index
    %c1_25 = arith.constant 1 : index
    %c0_26 = arith.constant 0 : index
    %c0_27 = arith.constant 0 : index
    %22 = vector.load %arg1[%c0_24, %c1_25, %c0_26, %c0_27] : memref<1x10x10x128xbf16, #tpu.memory_space<vmem>>, vector<1x8x8x128xbf16>
    %23 = vector.shape_cast %22 : vector<1x8x8x128xbf16> to vector<8x8x128xbf16>
    %24 = vector.shape_cast %23 : vector<8x8x128xbf16> to vector<64x128xbf16>
    %c1_28 = arith.constant 1 : index
    %c0_29 = arith.constant 0 : index
    %c0_30 = arith.constant 0 : index
    %c0_31 = arith.constant 0 : index
    %25 = vector.load %arg2[%c1_28, %c0_29, %c0_30, %c0_31] : memref<3x3x128x128xbf16, #tpu.memory_space<vmem>>, vector<1x1x128x128xbf16>
    %26 = vector.shape_cast %25 : vector<1x1x128x128xbf16> to vector<128x128xbf16>
    %cst_32 = arith.constant dense<0.000000e+00> : vector<64x128xf32>
    %27 = tpu.matmul %24, %26, %cst_32 {dimension_numbers = #tpu.dot_dimension_numbers<[1], [0], [0], [1], [0, 0, 1, 1], [], []>} : vector<64x128xbf16>, vector<128x128xbf16>, vector<64x128xf32> -> vector<64x128xf32>
    %28 = arith.addf %21, %27 : vector<64x128xf32>
    %c0_33 = arith.constant 0 : index
    %c1_34 = arith.constant 1 : index
    %c1_35 = arith.constant 1 : index
    %c0_36 = arith.constant 0 : index
    %29 = vector.load %arg1[%c0_33, %c1_34, %c1_35, %c0_36] : memref<1x10x10x128xbf16, #tpu.memory_space<vmem>>, vector<1x8x8x128xbf16>
    %30 = vector.shape_cast %29 : vector<1x8x8x128xbf16> to vector<8x8x128xbf16>
    %31 = vector.shape_cast %30 : vector<8x8x128xbf16> to vector<64x128xbf16>
    %c1_37 = arith.constant 1 : index
    %c1_38 = arith.constant 1 : index
    %c0_39 = arith.constant 0 : index
    %c0_40 = arith.constant 0 : index
    %32 = vector.load %arg2[%c1_37, %c1_38, %c0_39, %c0_40] : memref<3x3x128x128xbf16, #tpu.memory_space<vmem>>, vector<1x1x128x128xbf16>
    %33 = vector.shape_cast %32 : vector<1x1x128x128xbf16> to vector<128x128xbf16>
    %cst_41 = arith.constant dense<0.000000e+00> : vector<64x128xf32>
    %34 = tpu.matmul %31, %33, %cst_41 {dimension_numbers = #tpu.dot_dimension_numbers<[1], [0], [0], [1], [0, 0, 1, 1], [], []>} : vector<64x128xbf16>, vector<128x128xbf16>, vector<64x128xf32> -> vector<64x128xf32>
    %35 = arith.addf %28, %34 : vector<64x128xf32>
    %c0_42 = arith.constant 0 : index
    %c1_43 = arith.constant 1 : index
    %c2_44 = arith.constant 2 : index
    %c0_45 = arith.constant 0 : index
    %36 = vector.load %arg1[%c0_42, %c1_43, %c2_44, %c0_45] : memref<1x10x10x128xbf16, #tpu.memory_space<vmem>>, vector<1x8x8x128xbf16>
    %37 = vector.shape_cast %36 : vector<1x8x8x128xbf16> to vector<8x8x128xbf16>
    %38 = vector.shape_cast %37 : vector<8x8x128xbf16> to vector<64x128xbf16>
    %c1_46 = arith.constant 1 : index
    %c2_47 = arith.constant 2 : index
    %c0_48 = arith.constant 0 : index
    %c0_49 = arith.constant 0 : index
    %39 = vector.load %arg2[%c1_46, %c2_47, %c0_48, %c0_49] : memref<3x3x128x128xbf16, #tpu.memory_space<vmem>>, vector<1x1x128x128xbf16>
    %40 = vector.shape_cast %39 : vector<1x1x128x128xbf16> to vector<128x128xbf16>
    %cst_50 = arith.constant dense<0.000000e+00> : vector<64x128xf32>
    %41 = tpu.matmul %38, %40, %cst_50 {dimension_numbers = #tpu.dot_dimension_numbers<[1], [0], [0], [1], [0, 0, 1, 1], [], []>} : vector<64x128xbf16>, vector<128x128xbf16>, vector<64x128xf32> -> vector<64x128xf32>
    %42 = arith.addf %35, %41 : vector<64x128xf32>
    %c0_51 = arith.constant 0 : index
    %c2_52 = arith.constant 2 : index
    %c0_53 = arith.constant 0 : index
    %c0_54 = arith.constant 0 : index
    %43 = vector.load %arg1[%c0_51, %c2_52, %c0_53, %c0_54] : memref<1x10x10x128xbf16, #tpu.memory_space<vmem>>, vector<1x8x8x128xbf16>
    %44 = vector.shape_cast %43 : vector<1x8x8x128xbf16> to vector<8x8x128xbf16>
    %45 = vector.shape_cast %44 : vector<8x8x128xbf16> to vector<64x128xbf16>
    %c2_55 = arith.constant 2 : index
    %c0_56 = arith.constant 0 : index
    %c0_57 = arith.constant 0 : index
    %c0_58 = arith.constant 0 : index
    %46 = vector.load %arg2[%c2_55, %c0_56, %c0_57, %c0_58] : memref<3x3x128x128xbf16, #tpu.memory_space<vmem>>, vector<1x1x128x128xbf16>
    %47 = vector.shape_cast %46 : vector<1x1x128x128xbf16> to vector<128x128xbf16>
    %cst_59 = arith.constant dense<0.000000e+00> : vector<64x128xf32>
    %48 = tpu.matmul %45, %47, %cst_59 {dimension_numbers = #tpu.dot_dimension_numbers<[1], [0], [0], [1], [0, 0, 1, 1], [], []>} : vector<64x128xbf16>, vector<128x128xbf16>, vector<64x128xf32> -> vector<64x128xf32>
    %49 = arith.addf %42, %48 : vector<64x128xf32>
    %c0_60 = arith.constant 0 : index
    %c2_61 = arith.constant 2 : index
    %c1_62 = arith.constant 1 : index
    %c0_63 = arith.constant 0 : index
    %50 = vector.load %arg1[%c0_60, %c2_61, %c1_62, %c0_63] : memref<1x10x10x128xbf16, #tpu.memory_space<vmem>>, vector<1x8x8x128xbf16>
    %51 = vector.shape_cast %50 : vector<1x8x8x128xbf16> to vector<8x8x128xbf16>
    %52 = vector.shape_cast %51 : vector<8x8x128xbf16> to vector<64x128xbf16>
    %c2_64 = arith.constant 2 : index
    %c1_65 = arith.constant 1 : index
    %c0_66 = arith.constant 0 : index
    %c0_67 = arith.constant 0 : index
    %53 = vector.load %arg2[%c2_64, %c1_65, %c0_66, %c0_67] : memref<3x3x128x128xbf16, #tpu.memory_space<vmem>>, vector<1x1x128x128xbf16>
    %54 = vector.shape_cast %53 : vector<1x1x128x128xbf16> to vector<128x128xbf16>
    %cst_68 = arith.constant dense<0.000000e+00> : vector<64x128xf32>
    %55 = tpu.matmul %52, %54, %cst_68 {dimension_numbers = #tpu.dot_dimension_numbers<[1], [0], [0], [1], [0, 0, 1, 1], [], []>} : vector<64x128xbf16>, vector<128x128xbf16>, vector<64x128xf32> -> vector<64x128xf32>
    %56 = arith.addf %49, %55 : vector<64x128xf32>
    %c0_69 = arith.constant 0 : index
    %c2_70 = arith.constant 2 : index
    %c2_71 = arith.constant 2 : index
    %c0_72 = arith.constant 0 : index
    %57 = vector.load %arg1[%c0_69, %c2_70, %c2_71, %c0_72] : memref<1x10x10x128xbf16, #tpu.memory_space<vmem>>, vector<1x8x8x128xbf16>
    %58 = vector.shape_cast %57 : vector<1x8x8x128xbf16> to vector<8x8x128xbf16>
    %59 = vector.shape_cast %58 : vector<8x8x128xbf16> to vector<64x128xbf16>
    %c2_73 = arith.constant 2 : index
    %c2_74 = arith.constant 2 : index
    %c0_75 = arith.constant 0 : index
    %c0_76 = arith.constant 0 : index
    %60 = vector.load %arg2[%c2_73, %c2_74, %c0_75, %c0_76] : memref<3x3x128x128xbf16, #tpu.memory_space<vmem>>, vector<1x1x128x128xbf16>
    %61 = vector.shape_cast %60 : vector<1x1x128x128xbf16> to vector<128x128xbf16>
    %cst_77 = arith.constant dense<0.000000e+00> : vector<64x128xf32>
    %62 = tpu.matmul %59, %61, %cst_77 {dimension_numbers = #tpu.dot_dimension_numbers<[1], [0], [0], [1], [0, 0, 1, 1], [], []>} : vector<64x128xbf16>, vector<128x128xbf16>, vector<64x128xf32> -> vector<64x128xf32>
    %63 = arith.addf %56, %62 : vector<64x128xf32>
    %c0_78 = arith.constant 0 : index
    %c0_79 = arith.constant 0 : index
    %64 = vector.load %arg3[%c0_78, %c0_79] : memref<1x128xf32, #tpu.memory_space<vmem>>, vector<1x128xf32>
    %65 = vector.broadcast %64 : vector<1x128xf32> to vector<64x128xf32>
    %66 = arith.mulf %63, %65 : vector<64x128xf32>
    %c0_80 = arith.constant 0 : index
    %c0_81 = arith.constant 0 : index
    %67 = vector.load %arg4[%c0_80, %c0_81] : memref<1x128xf32, #tpu.memory_space<vmem>>, vector<1x128xf32>
    %68 = vector.broadcast %67 : vector<1x128xf32> to vector<64x128xf32>
    %69 = arith.addf %66, %68 : vector<64x128xf32>
    %cst_82 = arith.constant 0.000000e+00 : f32
    %70 = vector.broadcast %cst_82 : f32 to vector<64x128xf32>
    %71 = arith.maximumf %69, %70 : vector<64x128xf32>
    %72 = arith.truncf %71 : vector<64x128xf32> to vector<64x128xbf16>
    %c0_83 = arith.constant 0 : index
    %c0_84 = arith.constant 0 : index
    %73 = vector.load %arg5[%c0_83, %c0_84] : memref<128x128xbf16, #tpu.memory_space<vmem>>, vector<128x128xbf16>
    %cst_85 = arith.constant dense<0.000000e+00> : vector<64x128xf32>
    %74 = tpu.matmul %72, %73, %cst_85 {dimension_numbers = #tpu.dot_dimension_numbers<[1], [0], [0], [1], [0, 0, 1, 1], [], []>} : vector<64x128xbf16>, vector<128x128xbf16>, vector<64x128xf32> -> vector<64x128xf32>
    %c0_86 = arith.constant 0 : index
    %c0_87 = arith.constant 0 : index
    %75 = vector.load %arg6[%c0_86, %c0_87] : memref<1x128xf32, #tpu.memory_space<vmem>>, vector<1x128xf32>
    %76 = vector.broadcast %75 : vector<1x128xf32> to vector<64x128xf32>
    %77 = arith.addf %74, %76 : vector<64x128xf32>
    %c0_88 = arith.constant 0 : index
    %c0_89 = arith.constant 0 : index
    %c0_90 = arith.constant 0 : index
    %78 = vector.load %arg7[%c0_88, %c0_89, %c0_90] : memref<1x64x128xf32, #tpu.memory_space<vmem>>, vector<1x64x128xf32>
    %79 = vector.shape_cast %78 : vector<1x64x128xf32> to vector<64x128xf32>
    %80 = arith.addf %77, %79 : vector<64x128xf32>
    %c0_91 = arith.constant 0 : index
    %c0_92 = arith.constant 0 : index
    %c0_93 = arith.constant 0 : index
    %81 = vector.load %arg8[%c0_91, %c0_92, %c0_93] : memref<1x64x128xf32, #tpu.memory_space<vmem>>, vector<1x64x128xf32>
    %82 = vector.shape_cast %81 : vector<1x64x128xf32> to vector<64x128xf32>
    %83 = vector.shape_cast %80 : vector<64x128xf32> to vector<1x64x128xf32>
    tpu.vector_store %arg8[%c0_91, %c0_92, %c0_93], %83 {strides = array<i32>} : memref<1x64x128xf32, #tpu.memory_space<vmem>>, vector<1x64x128xf32>,
    return
  }
  func.func @transform_0(%arg0: i32) -> (i32, i32, i32, i32) {
    %c0_i32 = arith.constant 0 : i32
    %c0_i32_0 = arith.constant 0 : i32
    %c0_i32_1 = arith.constant 0 : i32
    %c0_i32_2 = arith.constant 0 : i32
    return %arg0, %c0_i32, %c0_i32_0, %c0_i32_1 : i32, i32, i32, i32
  }
  func.func @transform_1(%arg0: i32) -> (i32, i32, i32, i32) {
    %c0_i32 = arith.constant 0 : i32
    %c0_i32_0 = arith.constant 0 : i32
    %c0_i32_1 = arith.constant 0 : i32
    %c0_i32_2 = arith.constant 0 : i32
    %c0_i32_3 = arith.constant 0 : i32
    return %c0_i32, %c0_i32_0, %c0_i32_1, %c0_i32_2 : i32, i32, i32, i32
  }
  func.func @transform_2(%arg0: i32) -> (i32, i32) {
    %c0_i32 = arith.constant 0 : i32
    %c0_i32_0 = arith.constant 0 : i32
    %c0_i32_1 = arith.constant 0 : i32
    return %c0_i32, %c0_i32_0 : i32, i32
  }
  func.func @transform_3(%arg0: i32) -> (i32, i32) {
    %c0_i32 = arith.constant 0 : i32
    %c0_i32_0 = arith.constant 0 : i32
    %c0_i32_1 = arith.constant 0 : i32
    return %c0_i32, %c0_i32_0 : i32, i32
  }
  func.func @transform_4(%arg0: i32) -> (i32, i32) {
    %c0_i32 = arith.constant 0 : i32
    %c0_i32_0 = arith.constant 0 : i32
    %c0_i32_1 = arith.constant 0 : i32
    return %c0_i32, %c0_i32_0 : i32, i32
  }
  func.func @transform_5(%arg0: i32) -> (i32, i32) {
    %c0_i32 = arith.constant 0 : i32
    %c0_i32_0 = arith.constant 0 : i32
    %c0_i32_1 = arith.constant 0 : i32
    return %c0_i32, %c0_i32_0 : i32, i32
  }
  func.func @transform_6(%arg0: i32) -> (i32, i32, i32) {
    %c0_i32 = arith.constant 0 : i32
    %c0_i32_0 = arith.constant 0 : i32
    %c0_i32_1 = arith.constant 0 : i32
    return %arg0, %c0_i32, %c0_i32_0 : i32, i32, i32
  }
  func.func @transform_7(%arg0: i32) -> (i32, i32, i32) {
    %c0_i32 = arith.constant 0 : i32
    %c0_i32_0 = arith.constant 0 : i32
    %c0_i32_1 = arith.constant 0 : i32
    return %arg0, %c0_i32, %c0_i32_0 : i32, i32, i32
  }
}

</mosaic_0001>

<llo_original>
// kernel: down_bottleneck_pallas.2
$region0: #{down_bottleneck_pallas.2}
  #allocation0 [shape = 'u32[]', space=smem, size = 0x4, offset = 0x4, fixed_abs, tag = 'smem constant byte address 0x4 - core index']
  #allocation1 [shape = 'u32[144,128]{1,0:T(1,128)}', space=vmem, size = 0x12000, scoped, tag = 'internal scratch']
  %s0 = inlined_call_operand.vmem [shape: bf16[128,8], index: 0, kind: input, shape index: {}]
  %s1 = inlined_call_operand.vmem [shape: f32[1,8], index: 1, kind: input, shape index: {}]
  %s2 = inlined_call_operand.vmem [shape: f32[1,8], index: 2, kind: input, shape index: {}]
  %s3 = inlined_call_operand.vmem [shape: f32[1,128], index: 3, kind: input, shape index: {}]
  %s4 = inlined_call_operand.vmem [shape: f32[1,128], index: 4, kind: input, shape index: {}]
  %s5 = inlined_call_operand.vmem [shape: bf16[8,128], index: 5, kind: input, shape index: {}]
  %s6 = inlined_call_operand.vmem [shape: f32[1,128], index: 6, kind: input, shape index: {}]
  %s7 = inlined_call_operand.vmem [shape: bf16[8,128], index: 7, kind: input, shape index: {}]
  %s8 = inlined_call_operand.vmem [shape: f32[128,128], index: 8, kind: output, shape index: {0}]
  %s9 = inlined_call_operand.vmem [shape: bf16[128,128], index: 9, kind: output, shape index: {1}]
  %10 = xla_tuple %s8, %s9
  %s11 = sld [smem:[#allocation0]]
  $region50: #{down_bottleneck_pallas.2} parent=0
    _
  %s13 = ssub.s32 1, %s11
  %s14 = scalar_select 0, %s13, %s11
  // Predicated region
  $region2: #{down_bottleneck_pallas.2} parent=0 // pred_check
    _
  $region3: #{down_bottleneck_pallas.2} parent=0 // pred_check_branch
    %16 = sbr.rel (0) target = $region5
  $region4: #{down_bottleneck_pallas.2} parent=0 // pred_region
    _
  $region5: #{down_bottleneck_pallas.2} parent=0 // pred_fallthru
    _
  // Predicated region
  $region6: #{down_bottleneck_pallas.2} parent=0 // pred_check
    _
  $region7: #{down_bottleneck_pallas.2} parent=0 // pred_check_branch
    %18 = sbr.rel (0) target = $region9
  $region8: #{down_bottleneck_pallas.2} parent=0 // pred_region
    _
  $region9: #{down_bottleneck_pallas.2} parent=0 // pred_fallthru
    _
  // Predicated region
  $region10: #{down_bottleneck_pallas.2} parent=0 // pred_check
    _
  $region11: #{down_bottleneck_pallas.2} parent=0 // pred_check_branch
    %20 = sbr.rel (0) target = $region13
  $region12: #{down_bottleneck_pallas.2} parent=0 // pred_region
    _
  $region13: #{down_bottleneck_pallas.2} parent=0 // pred_fallthru
    _
  // Predicated region
  $region14: #{down_bottleneck_pallas.2} parent=0 // pred_check
    _
  $region15: #{down_bottleneck_pallas.2} parent=0 // pred_check_branch
    %22 = sbr.rel (0) target = $region17
  $region16: #{down_bottleneck_pallas.2} parent=0 // pred_region
    _
  $region17: #{down_bottleneck_pallas.2} parent=0 // pred_fallthru
    _
  // Predicated region
  $region18: #{down_bottleneck_pallas.2} parent=0 // pred_check
    _
  $region19: #{down_bottleneck_pallas.2} parent=0 // pred_check_branch
    %24 = sbr.rel (0) target = $region21
  $region20: #{down_bottleneck_pallas.2} parent=0 // pred_region
    _
  $region21: #{down_bottleneck_pallas.2} parent=0 // pred_fallthru
    _
  // Predicated region
  $region22: #{down_bottleneck_pallas.2} parent=0 // pred_check
    _
  $region23: #{down_bottleneck_pallas.2} parent=0 // pred_check_branch
    %26 = sbr.rel (0) target = $region25
  $region24: #{down_bottleneck_pallas.2} parent=0 // pred_region
    _
  $region25: #{down_bottleneck_pallas.2} parent=0 // pred_fallthru
    _
  // Predicated region
  $region26: #{down_bottleneck_pallas.2} parent=0 // pred_check
    _
  $region27: #{down_bottleneck_pallas.2} parent=0 // pred_check_branch
    %28 = sbr.rel (0) target = $region29
  $region28: #{down_bottleneck_pallas.2} parent=0 // pred_region
    _
  $region29: #{down_bottleneck_pallas.2} parent=0 // pred_fallthru
    _
  // Predicated region
  $region30: #{down_bottleneck_pallas.2} parent=0 // pred_check
    _
  $region31: #{down_bottleneck_pallas.2} parent=0 // pred_check_branch
    %30 = sbr.rel (0) target = $region33
  $region32: #{down_bottleneck_pallas.2} parent=0 // pred_region
    _
  $region33: #{down_bottleneck_pallas.2} parent=0 // pred_fallthru
    _
  %v32 = vld [vmem:[%s0] sm:$0xf]
  %v33 = vld [vmem:[%s0 + $0x4] sm:$0xf]
  %v34 = vld [vmem:[%s0 + $0x8] sm:$0xf]
  %v35 = vld [vmem:[%s0 + $0xc] sm:$0xf]
  %v36 = vld [vmem:[%s0 + $0x10] sm:$0xf]
  %v37 = vld [vmem:[%s0 + $0x14] sm:$0xf]
  %v38 = vld [vmem:[%s0 + $0x18] sm:$0xf]
  %v39 = vld [vmem:[%s0 + $0x1c] sm:$0xf]
  %v40 = vld [vmem:[%s0 + $0x20] sm:$0xf]
  %v41 = vld [vmem:[%s0 + $0x24] sm:$0xf]
  %v42 = vld [vmem:[%s0 + $0x28] sm:$0xf]
  %v43 = vld [vmem:[%s0 + $0x2c] sm:$0xf]
  %v44 = vld [vmem:[%s0 + $0x30] sm:$0xf]
  %v45 = vld [vmem:[%s0 + $0x34] sm:$0xf]
  %v46 = vld [vmem:[%s0 + $0x38] sm:$0xf]
  %v47 = vld [vmem:[%s0 + $0x3c] sm:$0xf]
  %v48 = vld [vmem:[%s5] sm:$0xf]
  %v49 = vld [vmem:[%s6] sm:$0x1]
  %v51 = vlaneseq
  %v52 = vshrl.u32 %v51, 7
  %v53 = vsub.s32 0, %v52
  %v54 = vrot.slane %v49, %v53
  %v72 = vunpack.c.l.b16 %v32
  %v73 = vunpack.c.l.b16 %v33
  %v74 = vunpack.c.l.b16 %v34
  %v75 = vunpack.c.l.b16 %v35
  %v76 = vunpack.c.l.b16 %v36
  %v77 = vunpack.c.l.b16 %v37
  %v78 = vunpack.c.l.b16 %v38
  %v79 = vunpack.c.l.b16 %v39
  %v80 = vunpack.c.l.b16 %v40
  %v81 = vunpack.c.l.b16 %v41
  %v82 = vunpack.c.l.b16 %v42
  %v83 = vunpack.c.l.b16 %v43
  %v84 = vunpack.c.l.b16 %v44
  %v85 = vunpack.c.l.b16 %v45
  %v86 = vunpack.c.l.b16 %v46
  %v87 = vunpack.c.l.b16 %v47
  %v88 = vpack.c.b16 %v73, %v72
  %v89 = vpack.c.b16 %v75, %v74
  %v90 = vpack.c.b16 %v77, %v76
  %v91 = vpack.c.b16 %v79, %v78
  %v92 = vpack.c.b16 %v81, %v80
  %v93 = vpack.c.b16 %v83, %v82
  %v94 = vpack.c.b16 %v85, %v84
  %v95 = vpack.c.b16 %v87, %v86
  %vm96 = vcmask 64512
  %v98 = vsel %vm96, %v88, 0
  %v101 = vsel %vm96, %v89, 0
  %v104 = vsel %vm96, %v90, 0
  %v107 = vsel %vm96, %v91, 0
  %v110 = vsel %vm96, %v92, 0
  %v113 = vsel %vm96, %v93, 0
  %v116 = vsel %vm96, %v94, 0
  %v119 = vsel %vm96, %v95, 0
  %vm121 = vcmask 1043456
  %v123 = vsel %vm121, %v48, 0
  %125 = vmatprep.subr.bf16.mxu0 0
  %126 = vmatpush1.bf16.msra.mxu0 %v123
  %127 = vmatprep.subr.bf16.mxu0 0
  %128 = vmatpush1.bf16.msra.mxu0 0
  %129 = vmatprep.subr.bf16.mxu0 0
  %130 = vmatpush1.bf16.msra.mxu0 0
  %131 = vmatprep.subr.bf16.mxu0 0
  %132 = vmatpush1.bf16.msra.mxu0 0
  %133 = vmatprep.subr.bf16.mxu0 0
  %134 = vmatpush1.bf16.msra.mxu0 0
  %135 = vmatprep.subr.bf16.mxu0 0
  %136 = vmatpush1.bf16.msra.mxu0 0
  %137 = vmatprep.subr.bf16.mxu0 0
  %138 = vmatpush1.bf16.msra.mxu0 0
  %139 = vmatprep.subr.bf16.mxu0 0
  %140 = vmatpush1.bf16.msra.mxu0 0
  %141 = vmatprep.subr.bf16.mxu0 0
  %142 = vmatpush1.bf16.msra.mxu0 0
  %143 = vmatprep.subr.bf16.mxu0 0
  %144 = vmatpush1.bf16.msra.mxu0 0
  %145 = vmatprep.subr.bf16.mxu0 0
  %146 = vmatpush1.bf16.msra.mxu0 0
  %147 = vmatprep.subr.bf16.mxu0 0
  %148 = vmatpush1.bf16.msra.mxu0 0
  %149 = vmatprep.subr.bf16.mxu0 0
  %150 = vmatpush1.bf16.msra.mxu0 0
  %151 = vmatprep.subr.bf16.mxu0 0
  %152 = vmatpush1.bf16.msra.mxu0 0
  %153 = vmatprep.subr.bf16.mxu0 0
  %154 = vmatpush1.bf16.msra.mxu0 0
  %155 = vmatprep.subr.bf16.mxu0 0
  %156 = vmatpush1.bf16.msra.mxu0 0
  %157 = vmatprep.mubr.bf16.mxu0 0
  %158 = vmatmul.mubr.bf16.gmra.mrb[0].mxu0 %v98
  %v159 = vpop.f32.mrb[0].mxu0
  %v160 = vadd.f32 %v54, %v159
  %v161 = vpop.f32.mrb[0].mxu0
  %v162 = vpop.f32.mrb[0].mxu0
  %v163 = vadd.f32 %v54, %v162
  %v164 = vpop.f32.mrb[0].mxu0
  %165 = vmatprep.mubr.bf16.mxu0 0
  %166 = vmatmul.mubr.bf16.gmra.mrb[0].mxu0 %v101
  %v167 = vpop.f32.mrb[0].mxu0
  %v168 = vadd.f32 %v54, %v167
  %v169 = vpop.f32.mrb[0].mxu0
  %v170 = vpop.f32.mrb[0].mxu0
  %v171 = vadd.f32 %v54, %v170
  %v172 = vpop.f32.mrb[0].mxu0
  %173 = vmatprep.mubr.bf16.mxu0 0
  %174 = vmatmul.mubr.bf16.gmra.mrb[0].mxu0 %v104
  %v175 = vpop.f32.mrb[0].mxu0
  %v176 = vadd.f32 %v54, %v175
  %v177 = vpop.f32.mrb[0].mxu0
  %v178 = vpop.f32.mrb[0].mxu0
  %v179 = vadd.f32 %v54, %v178
  %v180 = vpop.f32.mrb[0].mxu0
  %181 = vmatprep.mubr.bf16.mxu0 0
  %182 = vmatmul.mubr.bf16.gmra.mrb[0].mxu0 %v107
  %v183 = vpop.f32.mrb[0].mxu0
  %v184 = vadd.f32 %v54, %v183
  %v185 = vpop.f32.mrb[0].mxu0
  %v186 = vpop.f32.mrb[0].mxu0
  %v187 = vadd.f32 %v54, %v186
  %v188 = vpop.f32.mrb[0].mxu0
  %189 = vmatprep.mubr.bf16.mxu0 0
  %190 = vmatmul.mubr.bf16.gmra.mrb[0].mxu0 %v110
  %v191 = vpop.f32.mrb[0].mxu0
  %v192 = vadd.f32 %v54, %v191
  %v193 = vpop.f32.mrb[0].mxu0
  %v194 = vpop.f32.mrb[0].mxu0
  %v195 = vadd.f32 %v54, %v194
  %v196 = vpop.f32.mrb[0].mxu0
  %197 = vmatprep.mubr.bf16.mxu0 0
  %198 = vmatmul.mubr.bf16.gmra.mrb[0].mxu0 %v113
  %v199 = vpop.f32.mrb[0].mxu0
  %v200 = vadd.f32 %v54, %v199
  %v201 = vpop.f32.mrb[0].mxu0
  %v202 = vpop.f32.mrb[0].mxu0
  %v203 = vadd.f32 %v54, %v202
  %v204 = vpop.f32.mrb[0].mxu0
  %205 = vmatprep.mubr.bf16.mxu0 0
  %206 = vmatmul.mubr.bf16.gmra.mrb[0].mxu0 %v116
  %v207 = vpop.f32.mrb[0].mxu0
  %v208 = vadd.f32 %v54, %v207
  %v209 = vpop.f32.mrb[0].mxu0
  %v210 = vpop.f32.mrb[0].mxu0
  %v211 = vadd.f32 %v54, %v210
  %v212 = vpop.f32.mrb[0].mxu0
  %213 = vmatprep.mubr.bf16.mxu0 0
  %214 = vmatmul.mubr.bf16.gmra.mrb[0].mxu0 %v119
  %v215 = vpop.f32.mrb[0].mxu0
  %v216 = vadd.f32 %v54, %v215
  %v217 = vpop.f32.mrb[0].mxu0
  %v218 = vpop.f32.mrb[0].mxu0
  %v219 = vadd.f32 %v54, %v218
  %v220 = vpop.f32.mrb[0].mxu0
  %221 = vdwg.mxu0
  %222 = vst [vmem:[%s8] sm:$0xff] %v160
  %223 = vst [vmem:[%s8 + $0x8] sm:$0xff] %v163
  %224 = vst [vmem:[%s8 + $0x10] sm:$0xff] %v168
  %225 = vst [vmem:[%s8 + $0x18] sm:$0xff] %v171
  %226 = vst [vmem:[%s8 + $0x20] sm:$0xff] %v176
  %227 = vst [vmem:[%s8 + $0x28] sm:$0xff] %v179
  %228 = vst [vmem:[%s8 + $0x30] sm:$0xff] %v184
  %229 = vst [vmem:[%s8 + $0x38] sm:$0xff] %v187
  %230 = vst [vmem:[%s8 + $0x40] sm:$0xff] %v192
  %231 = vst [vmem:[%s8 + $0x48] sm:$0xff] %v195
  %232 = vst [vmem:[%s8 + $0x50] sm:$0xff] %v200
  %233 = vst [vmem:[%s8 + $0x58] sm:$0xff] %v203
  %234 = vst [vmem:[%s8 + $0x60] sm:$0xff] %v208
  %235 = vst [vmem:[%s8 + $0x68] sm:$0xff] %v211
  %236 = vst [vmem:[%s8 + $0x70] sm:$0xff] %v216
  %237 = vst [vmem:[%s8 + $0x78] sm:$0xff] %v219
  %v238 = vunpack.c.l.bf16 %v32
  %v239 = vunpack.c.l.bf16 %v33
  %v240 = vunpack.c.l.bf16 %v34
  %v241 = vunpack.c.l.bf16 %v35
  %v242 = vunpack.c.l.bf16 %v36
  %v243 = vunpack.c.l.bf16 %v37
  %v244 = vunpack.c.l.bf16 %v38
  %v245 = vunpack.c.l.bf16 %v39
  %v246 = vunpack.c.l.bf16 %v40
  %v247 = vunpack.c.l.bf16 %v41
  %v248 = vunpack.c.l.bf16 %v42
  %v249 = vunpack.c.l.bf16 %v43
  %v250 = vunpack.c.l.bf16 %v44
  %v251 = vunpack.c.l.bf16 %v45
  %v252 = vunpack.c.l.bf16 %v46
  %v253 = vunpack.c.l.bf16 %v47
  %v254 = vld [vmem:[%s1] sm:$0x1]
  %v256 = vlaneseq
  %v257 = vshrl.u32 %v256, 7
  %v258 = vsub.s32 0, %v257
  %v259 = vrot.slane %v254, %v258
  %v261 = vmul.f32 %v238, %v259
  %v262 = vmul.f32 %v239, %v259
  %v263 = vmul.f32 %v240, %v259
  %v264 = vmul.f32 %v241, %v259
  %v265 = vmul.f32 %v242, %v259
  %v266 = vmul.f32 %v243, %v259
  %v267 = vmul.f32 %v244, %v259
  %v268 = vmul.f32 %v245, %v259
  %v269 = vmul.f32 %v246, %v259
  %v270 = vmul.f32 %v247, %v259
  %v271 = vmul.f32 %v248, %v259
  %v272 = vmul.f32 %v249, %v259
  %v273 = vmul.f32 %v250, %v259
  %v274 = vmul.f32 %v251, %v259
  %v275 = vmul.f32 %v252, %v259
  %v276 = vmul.f32 %v253, %v259
  %v277 = vld [vmem:[%s2] sm:$0x1]
  %v279 = vlaneseq
  %v280 = vshrl.u32 %v279, 7
  %v281 = vsub.s32 0, %v280
  %v282 = vrot.slane %v277, %v281
  %v284 = vadd.f32 %v261, %v282
  %v285 = vadd.f32 %v262, %v282
  %v286 = vadd.f32 %v263, %v282
  %v287 = vadd.f32 %v264, %v282
  %v288 = vadd.f32 %v265, %v282
  %v289 = vadd.f32 %v266, %v282
  %v290 = vadd.f32 %v267, %v282
  %v291 = vadd.f32 %v268, %v282
  %v292 = vadd.f32 %v269, %v282
  %v293 = vadd.f32 %v270, %v282
  %v294 = vadd.f32 %v271, %v282
  %v295 = vadd.f32 %v272, %v282
  %v296 = vadd.f32 %v273, %v282
  %v297 = vadd.f32 %v274, %v282
  %v298 = vadd.f32 %v275, %v282
  %v299 = vadd.f32 %v276, %v282
  %v300 = vmax.f32 %v284, 0.0
  %v301 = vmax.f32 %v285, 0.0
  %v302 = vmax.f32 %v286, 0.0
  %v303 = vmax.f32 %v287, 0.0
  %v304 = vmax.f32 %v288, 0.0
  %v305 = vmax.f32 %v289, 0.0
  %v306 = vmax.f32 %v290, 0.0
  %v307 = vmax.f32 %v291, 0.0
  %v308 = vmax.f32 %v292, 0.0
  %v309 = vmax.f32 %v293, 0.0
  %v310 = vmax.f32 %v294, 0.0
  %v311 = vmax.f32 %v295, 0.0
  %v312 = vmax.f32 %v296, 0.0
  %v313 = vmax.f32 %v297, 0.0
  %v314 = vmax.f32 %v298, 0.0
  %v315 = vmax.f32 %v299, 0.0
  %v316 = vpack.c.bf16 %v301, %v300
  %v317 = vpack.c.bf16 %v303, %v302
  %v318 = vpack.c.bf16 %v305, %v304
  %v319 = vpack.c.bf16 %v307, %v306
  %v320 = vpack.c.bf16 %v309, %v308
  %v321 = vpack.c.bf16 %v311, %v310
  %v322 = vpack.c.bf16 %v313, %v312
  %v323 = vpack.c.bf16 %v315, %v314
  %v324 = vld [vmem:[%s7] sm:$0xf]
  %v326 = vsel %vm96, %v316, 0
  %v329 = vsel %vm96, %v317, 0
  %v332 = vsel %vm96, %v318, 0
  %v335 = vsel %vm96, %v319, 0
  %v338 = vsel %vm96, %v320, 0
  %v341 = vsel %vm96, %v321, 0
  %v344 = vsel %vm96, %v322, 0
  %v347 = vsel %vm96, %v323, 0
  %v350 = vsel %vm121, %v324, 0
  %352 = vmatprep.subr.bf16.mxu0 0
  %353 = vmatpush1.bf16.msra.mxu0 %v350
  %354 = vmatprep.subr.bf16.mxu0 0
  %355 = vmatpush1.bf16.msra.mxu0 0
  %356 = vmatprep.subr.bf16.mxu0 0
  %357 = vmatpush1.bf16.msra.mxu0 0
  %358 = vmatprep.subr.bf16.mxu0 0
  %359 = vmatpush1.bf16.msra.mxu0 0
  %360 = vmatprep.subr.bf16.mxu0 0
  %361 = vmatpush1.bf16.msra.mxu0 0
  %362 = vmatprep.subr.bf16.mxu0 0
  %363 = vmatpush1.bf16.msra.mxu0 0
  %364 = vmatprep.subr.bf16.mxu0 0
  %365 = vmatpush1.bf16.msra.mxu0 0
  %366 = vmatprep.subr.bf16.mxu0 0
  %367 = vmatpush1.bf16.msra.mxu0 0
  %368 = vmatprep.subr.bf16.mxu0 0
  %369 = vmatpush1.bf16.msra.mxu0 0
  %370 = vmatprep.subr.bf16.mxu0 0
  %371 = vmatpush1.bf16.msra.mxu0 0
  %372 = vmatprep.subr.bf16.mxu0 0
  %373 = vmatpush1.bf16.msra.mxu0 0
  %374 = vmatprep.subr.bf16.mxu0 0
  %375 = vmatpush1.bf16.msra.mxu0 0
  %376 = vmatprep.subr.bf16.mxu0 0
  %377 = vmatpush1.bf16.msra.mxu0 0
  %378 = vmatprep.subr.bf16.mxu0 0
  %379 = vmatpush1.bf16.msra.mxu0 0
  %380 = vmatprep.subr.bf16.mxu0 0
  %381 = vmatpush1.bf16.msra.mxu0 0
  %382 = vmatprep.subr.bf16.mxu0 0
  %383 = vmatpush1.bf16.msra.mxu0 0
  %384 = vmatprep.mubr.bf16.mxu0 0
  %385 = vmatmul.mubr.bf16.gmra.mrb[0].mxu0 %v326
  %v386 = vpop.f32.mrb[0].mxu0
  %v387 = vadd.f32 0.0, %v386
  %v388 = vpop.f32.mrb[0].mxu0
  %v389 = vpop.f32.mrb[0].mxu0
  %v390 = vadd.f32 0.0, %v389
  %v391 = vpop.f32.mrb[0].mxu0
  %392 = vmatprep.mubr.bf16.mxu0 0
  %393 = vmatmul.mubr.bf16.gmra.mrb[0].mxu0 %v329
  %v394 = vpop.f32.mrb[0].mxu0
  %v395 = vadd.f32 0.0, %v394
  %v396 = vpop.f32.mrb[0].mxu0
  %v397 = vpop.f32.mrb[0].mxu0
  %v398 = vadd.f32 0.0, %v397
  %v399 = vpop.f32.mrb[0].mxu0
  %400 = vmatprep.mubr.bf16.mxu0 0
  %401 = vmatmul.mubr.bf16.gmra.mrb[0].mxu0 %v332
  %v402 = vpop.f32.mrb[0].mxu0
  %v403 = vadd.f32 0.0, %v402
  %v404 = vpop.f32.mrb[0].mxu0
  %v405 = vpop.f32.mrb[0].mxu0
  %v406 = vadd.f32 0.0, %v405
  %v407 = vpop.f32.mrb[0].mxu0
  %408 = vmatprep.mubr.bf16.mxu0 0
  %409 = vmatmul.mubr.bf16.gmra.mrb[0].mxu0 %v335
  %v410 = vpop.f32.mrb[0].mxu0
  %v411 = vadd.f32 0.0, %v410
  %v412 = vpop.f32.mrb[0].mxu0
  %v413 = vpop.f32.mrb[0].mxu0
  %v414 = vadd.f32 0.0, %v413
  %v415 = vpop.f32.mrb[0].mxu0
  %416 = vmatprep.mubr.bf16.mxu0 0
  %417 = vmatmul.mubr.bf16.gmra.mrb[0].mxu0 %v338
  %v418 = vpop.f32.mrb[0].mxu0
  %v419 = vadd.f32 0.0, %v418
  %v420 = vpop.f32.mrb[0].mxu0
  %v421 = vpop.f32.mrb[0].mxu0
  %v422 = vadd.f32 0.0, %v421
  %v423 = vpop.f32.mrb[0].mxu0
  %424 = vmatprep.mubr.bf16.mxu0 0
  %425 = vmatmul.mubr.bf16.gmra.mrb[0].mxu0 %v341
  %v426 = vpop.f32.mrb[0].mxu0
  %v427 = vadd.f32 0.0, %v426
  %v428 = vpop.f32.mrb[0].mxu0
  %v429 = vpop.f32.mrb[0].mxu0
  %v430 = vadd.f32 0.0, %v429
  %v431 = vpop.f32.mrb[0].mxu0
  %432 = vmatprep.mubr.bf16.mxu0 0
  %433 = vmatmul.mubr.bf16.gmra.mrb[0].mxu0 %v344
  %v434 = vpop.f32.mrb[0].mxu0
  %v435 = vadd.f32 0.0, %v434
  %v436 = vpop.f32.mrb[0].mxu0
  %v437 = vpop.f32.mrb[0].mxu0
  %v438 = vadd.f32 0.0, %v437
  %v439 = vpop.f32.mrb[0].mxu0
  %440 = vmatprep.mubr.bf16.mxu0 0
  %441 = vmatmul.mubr.bf16.gmra.mrb[0].mxu0 %v347
  %v442 = vpop.f32.mrb[0].mxu0
  %v443 = vadd.f32 0.0, %v442
  %v444 = vpop.f32.mrb[0].mxu0
  %v445 = vpop.f32.mrb[0].mxu0
  %v446 = vadd.f32 0.0, %v445
  %v447 = vpop.f32.mrb[0].mxu0
  %448 = vdwg.mxu0
  %v449 = vld [vmem:[%s3] sm:$0x1]
  %v451 = vlaneseq
  %v452 = vshrl.u32 %v451, 7
  %v453 = vsub.s32 0, %v452
  %v454 = vrot.slane %v449, %v453
  %v456 = vmul.f32 %v387, %v454
  %v457 = vmul.f32 %v390, %v454
  %v458 = vmul.f32 %v395, %v454
  %v459 = vmul.f32 %v398, %v454
  %v460 = vmul.f32 %v403, %v454
  %v461 = vmul.f32 %v406, %v454
  %v462 = vmul.f32 %v411, %v454
  %v463 = vmul.f32 %v414, %v454
  %v464 = vmul.f32 %v419, %v454
  %v465 = vmul.f32 %v422, %v454
  %v466 = vmul.f32 %v427, %v454
  %v467 = vmul.f32 %v430, %v454
  %v468 = vmul.f32 %v435, %v454
  %v469 = vmul.f32 %v438, %v454
  %v470 = vmul.f32 %v443, %v454
  %v471 = vmul.f32 %v446, %v454
  %v472 = vld [vmem:[%s4] sm:$0x1]
  %v474 = vlaneseq
  %v475 = vshrl.u32 %v474, 7
  %v476 = vsub.s32 0, %v475
  %v477 = vrot.slane %v472, %v476
  %v479 = vadd.f32 %v456, %v477
  %v480 = vadd.f32 %v457, %v477
  %v481 = vadd.f32 %v458, %v477
  %v482 = vadd.f32 %v459, %v477
  %v483 = vadd.f32 %v460, %v477
  %v484 = vadd.f32 %v461, %v477
  %v485 = vadd.f32 %v462, %v477
  %v486 = vadd.f32 %v463, %v477
  %v487 = vadd.f32 %v464, %v477
  %v488 = vadd.f32 %v465, %v477
  %v489 = vadd.f32 %v466, %v477
  %v490 = vadd.f32 %v467, %v477
  %v491 = vadd.f32 %v468, %v477
  %v492 = vadd.f32 %v469, %v477
  %v493 = vadd.f32 %v470, %v477
  %v494 = vadd.f32 %v471, %v477
  %v495 = vmax.f32 %v479, 0.0
  %v496 = vmax.f32 %v480, 0.0
  %v497 = vmax.f32 %v481, 0.0
  %v498 = vmax.f32 %v482, 0.0
  %v499 = vmax.f32 %v483, 0.0
  %v500 = vmax.f32 %v484, 0.0
  %v501 = vmax.f32 %v485, 0.0
  %v502 = vmax.f32 %v486, 0.0
  %v503 = vmax.f32 %v487, 0.0
  %v504 = vmax.f32 %v488, 0.0
  %v505 = vmax.f32 %v489, 0.0
  %v506 = vmax.f32 %v490, 0.0
  %v507 = vmax.f32 %v491, 0.0
  %v508 = vmax.f32 %v492, 0.0
  %v509 = vmax.f32 %v493, 0.0
  %v510 = vmax.f32 %v494, 0.0
  %v511 = vpack.c.bf16 %v496, %v495
  %v512 = vpack.c.bf16 %v498, %v497
  %v513 = vpack.c.bf16 %v500, %v499
  %v514 = vpack.c.bf16 %v502, %v501
  %v515 = vpack.c.bf16 %v504, %v503
  %v516 = vpack.c.bf16 %v506, %v505
  %v517 = vpack.c.bf16 %v508, %v507
  %v518 = vpack.c.bf16 %v510, %v509
  %v527 = vunpack.c.l.b16 %v511
  %v528 = vunpack.c.h.b16 %v511
  %v529 = vunpack.c.l.b16 %v512
  %v530 = vunpack.c.h.b16 %v512
  %v531 = vunpack.c.l.b16 %v513
  %v532 = vunpack.c.h.b16 %v513
  %v533 = vunpack.c.l.b16 %v514
  %v534 = vunpack.c.h.b16 %v514
  %v535 = vunpack.c.l.b16 %v515
  %v536 = vunpack.c.h.b16 %v515
  %v537 = vunpack.c.l.b16 %v516
  %v538 = vunpack.c.h.b16 %v516
  %v539 = vunpack.c.l.b16 %v517
  %v540 = vunpack.c.h.b16 %v517
  %v541 = vunpack.c.l.b16 %v518
  %v542 = vunpack.c.h.b16 %v518
  %v543 = vpack.c.b16 %v527, %v527
  %v544 = vpack.c.b16 %v528, %v528
  %v545 = vpack.c.b16 %v529, %v529
  %v546 = vpack.c.b16 %v530, %v530
  %v547 = vpack.c.b16 %v531, %v531
  %v548 = vpack.c.b16 %v532, %v532
  %v549 = vpack.c.b16 %v533, %v533
  %v550 = vpack.c.b16 %v534, %v534
  %v551 = vpack.c.b16 %v535, %v535
  %v552 = vpack.c.b16 %v536, %v536
  %v553 = vpack.c.b16 %v537, %v537
  %v554 = vpack.c.b16 %v538, %v538
  %v555 = vpack.c.b16 %v539, %v539
  %v556 = vpack.c.b16 %v540, %v540
  %v557 = vpack.c.b16 %v541, %v541
  %v558 = vpack.c.b16 %v542, %v542
  %575 = vst [vmem:[%s9] sm:$0xf] %v543
  %576 = vst [vmem:[%s9 + $0x4] sm:$0xf] %v544
  %577 = vst [vmem:[%s9 + $0x8] sm:$0xf] %v545
  %578 = vst [vmem:[%s9 + $0xc] sm:$0xf] %v546
  %579 = vst [vmem:[%s9 + $0x10] sm:$0xf] %v547
  %580 = vst [vmem:[%s9 + $0x14] sm:$0xf] %v548
  %581 = vst [vmem:[%s9 + $0x18] sm:$0xf] %v549
  %582 = vst [vmem:[%s9 + $0x1c] sm:$0xf] %v550
  %583 = vst [vmem:[%s9 + $0x20] sm:$0xf] %v551
  %584 = vst [vmem:[%s9 + $0x24] sm:$0xf] %v552
  %585 = vst [vmem:[%s9 + $0x28] sm:$0xf] %v553
  %586 = vst [vmem:[%s9 + $0x2c] sm:$0xf] %v554
  %587 = vst [vmem:[%s9 + $0x30] sm:$0xf] %v555
  %588 = vst [vmem:[%s9 + $0x34] sm:$0xf] %v556
  %589 = vst [vmem:[%s9 + $0x38] sm:$0xf] %v557
  %590 = vst [vmem:[%s9 + $0x3c] sm:$0xf] %v558
  // Predicated region
  $region34: #{down_bottleneck_pallas.2} parent=0 // pred_check
    _
  $region35: #{down_bottleneck_pallas.2} parent=0 // pred_check_branch
    %592 = sbr.rel (0) target = $region37
  $region36: #{down_bottleneck_pallas.2} parent=0 // pred_region
    _
  $region37: #{down_bottleneck_pallas.2} parent=0 // pred_fallthru
    _
  // Predicated region
  $region38: #{down_bottleneck_pallas.2} parent=0 // pred_check
    _
  $region39: #{down_bottleneck_pallas.2} parent=0 // pred_check_branch
    %594 = sbr.rel (0) target = $region41
  $region40: #{down_bottleneck_pallas.2} parent=0 // pred_region
    _
  $region41: #{down_bottleneck_pallas.2} parent=0 // pred_fallthru
    _
  // Predicated region
  $region42: #{down_bottleneck_pallas.2} parent=0 // pred_check
    _
  $region43: #{down_bottleneck_pallas.2} parent=0 // pred_check_branch
    %596 = sbr.rel (0) target = $region45
  $region44: #{down_bottleneck_pallas.2} parent=0 // pred_region
    _
  $region45: #{down_bottleneck_pallas.2} parent=0 // pred_fallthru
    _
  // Predicated region
  $region46: #{down_bottleneck_pallas.2} parent=0 // pred_check
    _
  $region47: #{down_bottleneck_pallas.2} parent=0 // pred_check_branch
    %598 = sbr.rel (0) target = $region49
  $region48: #{down_bottleneck_pallas.2} parent=0 // pred_region
    _
  $region49: #{down_bottleneck_pallas.2} parent=0 // pred_fallthru
    _

// kernel: down_bottleneck_pallas.3
$region0: #{down_bottleneck_pallas.3}
  #allocation0 [shape = 'u32[]', space=smem, size = 0x4, offset = 0x4, fixed_abs, tag = 'smem constant byte address 0x4 - core index']
  #allocation1 [shape = 'u32[144,128]{1,0:T(1,128)}', space=vmem, size = 0x12000, scoped, tag = 'internal scratch']
  %s0 = inlined_call_operand.vmem [shape: bf16[2,10,10,128], index: 0, kind: input, shape index: {}]
  %s1 = inlined_call_operand.vmem [shape: bf16[3,3,128,128], index: 1, kind: input, shape index: {}]
  %s2 = inlined_call_operand.vmem [shape: f32[1,128], index: 2, kind: input, shape index: {}]
  %s3 = inlined_call_operand.vmem [shape: f32[1,128], index: 3, kind: input, shape index: {}]
  %s4 = inlined_call_operand.vmem [shape: bf16[128,128], index: 4, kind: input, shape index: {}]
  %s5 = inlined_call_operand.vmem [shape: f32[1,128], index: 5, kind: input, shape index: {}]
  %s6 = inlined_call_operand.vmem [shape: f32[2,64,128], index: 6, kind: input, shape index: {}]
  %s7 = inlined_call_operand.vmem [shape: f32[2,64,128], index: 7, kind: output, shape index: {}]
  %s8 = sld [smem:[#allocation0]]
  $region61: #{down_bottleneck_pallas.3} parent=0
    _
  %s10 = ssub.s32 1, %s8
  %s11 = scalar_select 0, %s10, %s8
  loop: start=0, step=1, limit=4
  $region2: #{down_bottleneck_pallas.3} parent=0 // loop_pre_header
    _
  $region3: #{down_bottleneck_pallas.3} parent=0 // loop_header
    %s13 = sphi 0, %s17
    %p14 = scmp.ge.s32.totalorder %s13, 4
    %s23 = sphi 0, %s25
    %s26 = sphi 0, %s23
    %s27 = sphi 0, %s26
    %s43 = sphi 0, %s27
    %s47 = sphi 0, %s47
    %s49 = sphi 0, %s47
    %s50 = sphi 0, %s49
    %s64 = sphi 0, %s50
    %s68 = sphi 0, %s68
    %s70 = sphi 0, %s68
    %s71 = sphi 0, %s70
    %s85 = sphi 0, %s71
    %s89 = sphi 0, %s89
    %s91 = sphi 0, %s89
    %s92 = sphi 0, %s91
    %s106 = sphi 0, %s92
    %s110 = sphi 0, %s110
    %s112 = sphi 0, %s110
    %s113 = sphi 0, %s112
    %s127 = sphi 0, %s113
    %s131 = sphi 0, %s131
    %s133 = sphi 0, %s131
    %s134 = sphi 0, %s133
    %s148 = sphi 0, %s134
    %s154 = sphi 0, %s156
    %s157 = sphi 0, %s154
    %s158 = sphi 0, %s157
    %s174 = sphi 0, %s158
    %s180 = sphi 0, %s182
    %s183 = sphi 0, %s180
    %s184 = sphi 0, %s183
    %s200 = sphi 0, %s184
  $region4: #{down_bottleneck_pallas.3} parent=0 // loop_header_branch
    %16 = sbr.rel (%p14) target = $region8
  $region5: #{down_bottleneck_pallas.3} parent=0 // loop_body
    %s18 = ssub.s32 %s13, 1
    %s19 = ssub.s32 %s13, 2
    %s20 = sadd.s32 %s13, 1
    %s21 = ssub.s32 %s13, %s20
    %p22 = scmp.eq.s32.totalorder %s21, 0
    %s24 = sadd.s32 %s23, 1
    %s25 = scalar_select %p22, %s23, %s24
    %p28 = pneg %p22
    %p29 = scmp.eq.s32.totalorder %s13, 1
    %p30 = por %p28, %p29
    %p31 = scmp.ne.s32.totalorder %s23, %s26
    %p32 = scmp.eq.s32.totalorder %s13, 0
    %p33 = por %p31, %p32
    %p34 = scmp.ne.s32.totalorder %s23, %s26
    %p35 = scmp.eq.s32.totalorder %s18, 1
    %p36 = por %p34, %p35
    %p37 = scmp.ne.s32.totalorder %s26, %s27
    %p38 = scmp.eq.s32.totalorder %s18, 0
    %p39 = por %p37, %p38
    %p40 = scmp.ne.s32.totalorder %s26, %s27
    %p41 = scmp.eq.s32.totalorder %s19, 1
    %p42 = por %p40, %p41
    %p44 = scmp.ne.s32.totalorder %s27, %s43
    %p45 = scmp.eq.s32.totalorder %s19, 0
    %p46 = por %p44, %p45
    %s48 = sadd.s32 %s47, 1
    %p51 = scmp.eq.s32.totalorder %s13, 1
    %p52 = scmp.ne.s32.totalorder %s47, %s49
    %p53 = scmp.eq.s32.totalorder %s13, 0
    %p54 = por %p52, %p53
    %p55 = scmp.ne.s32.totalorder %s47, %s49
    %p56 = scmp.eq.s32.totalorder %s18, 1
    %p57 = por %p55, %p56
    %p58 = scmp.ne.s32.totalorder %s49, %s50
    %p59 = scmp.eq.s32.totalorder %s18, 0
    %p60 = por %p58, %p59
    %p61 = scmp.ne.s32.totalorder %s49, %s50
    %p62 = scmp.eq.s32.totalorder %s19, 1
    %p63 = por %p61, %p62
    %p65 = scmp.ne.s32.totalorder %s50, %s64
    %p66 = scmp.eq.s32.totalorder %s19, 0
    %p67 = por %p65, %p66
    %s69 = sadd.s32 %s68, 1
    %p72 = scmp.eq.s32.totalorder %s13, 1
    %p73 = scmp.ne.s32.totalorder %s68, %s70
    %p74 = scmp.eq.s32.totalorder %s13, 0
    %p75 = por %p73, %p74
    %p76 = scmp.ne.s32.totalorder %s68, %s70
    %p77 = scmp.eq.s32.totalorder %s18, 1
    %p78 = por %p76, %p77
    %p79 = scmp.ne.s32.totalorder %s70, %s71
    %p80 = scmp.eq.s32.totalorder %s18, 0
    %p81 = por %p79, %p80
    %p82 = scmp.ne.s32.totalorder %s70, %s71
    %p83 = scmp.eq.s32.totalorder %s19, 1
    %p84 = por %p82, %p83
    %p86 = scmp.ne.s32.totalorder %s71, %s85
    %p87 = scmp.eq.s32.totalorder %s19, 0
    %p88 = por %p86, %p87
    %s90 = sadd.s32 %s89, 1
    %p93 = scmp.eq.s32.totalorder %s13, 1
    %p94 = scmp.ne.s32.totalorder %s89, %s91
    %p95 = scmp.eq.s32.totalorder %s13, 0
    %p96 = por %p94, %p95
    %p97 = scmp.ne.s32.totalorder %s89, %s91
    %p98 = scmp.eq.s32.totalorder %s18, 1
    %p99 = por %p97, %p98
    %p100 = scmp.ne.s32.totalorder %s91, %s92
    %p101 = scmp.eq.s32.totalorder %s18, 0
    %p102 = por %p100, %p101
    %p103 = scmp.ne.s32.totalorder %s91, %s92
    %p104 = scmp.eq.s32.totalorder %s19, 1
    %p105 = por %p103, %p104
    %p107 = scmp.ne.s32.totalorder %s92, %s106
    %p108 = scmp.eq.s32.totalorder %s19, 0
    %p109 = por %p107, %p108
    %s111 = sadd.s32 %s110, 1
    %p114 = scmp.eq.s32.totalorder %s13, 1
    %p115 = scmp.ne.s32.totalorder %s110, %s112
    %p116 = scmp.eq.s32.totalorder %s13, 0
    %p117 = por %p115, %p116
    %p118 = scmp.ne.s32.totalorder %s110, %s112
    %p119 = scmp.eq.s32.totalorder %s18, 1
    %p120 = por %p118, %p119
    %p121 = scmp.ne.s32.totalorder %s112, %s113
    %p122 = scmp.eq.s32.totalorder %s18, 0
    %p123 = por %p121, %p122
    %p124 = scmp.ne.s32.totalorder %s112, %s113
    %p125 = scmp.eq.s32.totalorder %s19, 1
    %p126 = por %p124, %p125
    %p128 = scmp.ne.s32.totalorder %s113, %s127
    %p129 = scmp.eq.s32.totalorder %s19, 0
    %p130 = por %p128, %p129
    %s132 = sadd.s32 %s131, 1
    %p135 = scmp.eq.s32.totalorder %s13, 1
    %p136 = scmp.ne.s32.totalorder %s131, %s133
    %p137 = scmp.eq.s32.totalorder %s13, 0
    %p138 = por %p136, %p137
    %p139 = scmp.ne.s32.totalorder %s131, %s133
    %p140 = scmp.eq.s32.totalorder %s18, 1
    %p141 = por %p139, %p140
    %p142 = scmp.ne.s32.totalorder %s133, %s134
    %p143 = scmp.eq.s32.totalorder %s18, 0
    %p144 = por %p142, %p143
    %p145 = scmp.ne.s32.totalorder %s133, %s134
    %p146 = scmp.eq.s32.totalorder %s19, 1
    %p147 = por %p145, %p146
    %p149 = scmp.ne.s32.totalorder %s134, %s148
    %p150 = scmp.eq.s32.totalorder %s19, 0
    %p151 = por %p149, %p150
    %s152 = ssub.s32 %s13, %s20
    %p153 = scmp.eq.s32.totalorder %s152, 0
    %s155 = sadd.s32 %s154, 1
    %s156 = scalar_select %p153, %s154, %s155
    %p159 = pneg %p153
    %p160 = scmp.eq.s32.totalorder %s13, 1
    %p161 = por %p159, %p160
    %p162 = scmp.ne.s32.totalorder %s154, %s157
    %p163 = scmp.eq.s32.totalorder %s13, 0
    %p164 = por %p162, %p163
    %p165 = scmp.ne.s32.totalorder %s154, %s157
    %p166 = scmp.eq.s32.totalorder %s18, 1
    %p167 = por %p165, %p166
    %p168 = scmp.ne.s32.totalorder %s157, %s158
    %p169 = scmp.eq.s32.totalorder %s18, 0
    %p170 = por %p168, %p169
    %p171 = scmp.ne.s32.totalorder %s157, %s158
    %p172 = scmp.eq.s32.totalorder %s19, 1
    %p173 = por %p171, %p172
    %p175 = scmp.ne.s32.totalorder %s158, %s174
    %p176 = scmp.eq.s32.totalorder %s19, 0
    %p177 = por %p175, %p176
    %s178 = ssub.s32 %s13, %s20
    %p179 = scmp.eq.s32.totalorder %s178, 0
    %s181 = sadd.s32 %s180, 1
    %s182 = scalar_select %p179, %s180, %s181
    %p185 = pneg %p179
    %p186 = scmp.eq.s32.totalorder %s13, 1
    %p187 = por %p185, %p186
    %p188 = scmp.ne.s32.totalorder %s180, %s183
    %p189 = scmp.eq.s32.totalorder %s13, 0
    %p190 = por %p188, %p189
    %p191 = scmp.ne.s32.totalorder %s180, %s183
    %p192 = scmp.eq.s32.totalorder %s18, 1
    %p193 = por %p191, %p192
    %p194 = scmp.ne.s32.totalorder %s183, %s184
    %p195 = scmp.eq.s32.totalorder %s18, 0
    %p196 = por %p194, %p195
    %p197 = scmp.ne.s32.totalorder %s183, %s184
    %p198 = scmp.eq.s32.totalorder %s19, 1
    %p199 = por %p197, %p198
    %p201 = scmp.ne.s32.totalorder %s184, %s200
    %p202 = scmp.eq.s32.totalorder %s19, 0
    %p203 = por %p201, %p202
    %p204 = scmp.le.s32.totalorder 1, %s13
    %p205 = scmp.lt.s32.totalorder %s13, 3
    %p206 = pnand %p204, %p205
    %p207 = pneg %p206
    // Predicated region
    $region9: #{down_bottleneck_pallas.3} parent=5 // pred_check
      _
    $region10: #{down_bottleneck_pallas.3} parent=5 // pred_check_branch
      %209 = sbr.rel (%p206) target = $region12
    $region11: #{down_bottleneck_pallas.3} parent=5 // pred_region
      %s210 = ssub.s32 %s13, 1
      // Predicated region
      $region13: #{down_bottleneck_pallas.3} parent=11 // pred_check
        %p211 = pneg %p60
      $region14: #{down_bottleneck_pallas.3} parent=11 // pred_check_branch
        %213 = sbr.rel (%p211) target = $region16
      $region15: #{down_bottleneck_pallas.3} parent=11 // pred_region
        _
      $region16: #{down_bottleneck_pallas.3} parent=11 // pred_fallthru
        _
      // Predicated region
      $region17: #{down_bottleneck_pallas.3} parent=11 // pred_check
        %p214 = pneg %p81
      $region18: #{down_bottleneck_pallas.3} parent=11 // pred_check_branch
        %216 = sbr.rel (%p214) target = $region20
      $region19: #{down_bottleneck_pallas.3} parent=11 // pred_region
        _
      $region20: #{down_bottleneck_pallas.3} parent=11 // pred_fallthru
        _
      // Predicated region
      $region21: #{down_bottleneck_pallas.3} parent=11 // pred_check
        %p217 = pneg %p102
      $region22: #{down_bottleneck_pallas.3} parent=11 // pred_check_branch
        %219 = sbr.rel (%p217) target = $region24
      $region23: #{down_bottleneck_pallas.3} parent=11 // pred_region
        _
      $region24: #{down_bottleneck_pallas.3} parent=11 // pred_fallthru
        _
      // Predicated region
      $region25: #{down_bottleneck_pallas.3} parent=11 // pred_check
        %p220 = pneg %p123
      $region26: #{down_bottleneck_pallas.3} parent=11 // pred_check_branch
        %222 = sbr.rel (%p220) target = $region28
      $region27: #{down_bottleneck_pallas.3} parent=11 // pred_region
        _
      $region28: #{down_bottleneck_pallas.3} parent=11 // pred_fallthru
        _
      // Predicated region
      $region29: #{down_bottleneck_pallas.3} parent=11 // pred_check
        %p223 = pneg %p144
      $region30: #{down_bottleneck_pallas.3} parent=11 // pred_check_branch
        %225 = sbr.rel (%p223) target = $region32
      $region31: #{down_bottleneck_pallas.3} parent=11 // pred_region
        _
      $region32: #{down_bottleneck_pallas.3} parent=11 // pred_fallthru
        _
    $region12: #{down_bottleneck_pallas.3} parent=5 // pred_fallthru
      _
    %p226 = scmp.lt.s32.totalorder %s13, 2
    // Predicated region
    $region33: #{down_bottleneck_pallas.3} parent=5 // pred_check
      %p227 = pneg %p226
    $region34: #{down_bottleneck_pallas.3} parent=5 // pred_check_branch
      %229 = sbr.rel (%p227) target = $region36
    $region35: #{down_bottleneck_pallas.3} parent=5 // pred_region
      // Predicated region
      $region37: #{down_bottleneck_pallas.3} parent=35 // pred_check
        %p230 = pneg %p33
      $region38: #{down_bottleneck_pallas.3} parent=35 // pred_check_branch
        %232 = sbr.rel (%p230) target = $region40
      $region39: #{down_bottleneck_pallas.3} parent=35 // pred_region
        %p233 = scmp.lt.s32.totalorder %s13, 1
        %s234 = scalar_select %p233, %s13, 1
        %s235 = smul.addr %s234, 20
        %s236 = smul.addr %s235, 4
        %s237 = scalar_lea.vmem %s0, %s236
      $region40: #{down_bottleneck_pallas.3} parent=35 // pred_fallthru
        _
      // Predicated region
      $region41: #{down_bottleneck_pallas.3} parent=35 // pred_check
        %p238 = pneg %p164
      $region42: #{down_bottleneck_pallas.3} parent=35 // pred_check_branch
        %240 = sbr.rel (%p238) target = $region44
      $region43: #{down_bottleneck_pallas.3} parent=35 // pred_region
        %p241 = scmp.lt.s32.totalorder %s13, 1
        %s242 = scalar_select %p241, %s13, 1
        %s243 = smul.addr %s242, 8
        %s244 = smul.addr %s243, 8
        %s245 = scalar_lea.vmem %s6, %s244
      $region44: #{down_bottleneck_pallas.3} parent=35 // pred_fallthru
        _
    $region36: #{down_bottleneck_pallas.3} parent=5 // pred_fallthru
      _
    %p246 = scmp.le.s32.totalorder 1, %s13
    %p247 = scmp.lt.s32.totalorder %s13, 3
    %p248 = pnand %p246, %p247
    %p249 = pneg %p248
    // Predicated region
    $region45: #{down_bottleneck_pallas.3} parent=5 // pred_check
      _
    $region46: #{down_bottleneck_pallas.3} parent=5 // pred_check_branch
      %251 = sbr.rel (%p248) target = $region48
    $region47: #{down_bottleneck_pallas.3} parent=5 // pred_region
      %s252 = ssub.s32 %s13, 1
      %p253 = scmp.lt.s32.totalorder %s18, 1
      %s254 = scalar_select %p253, %s18, 1
      %s255 = smul.addr %s254, 20
      %s256 = smul.addr %s255, 4
      %s257 = scalar_lea.vmem %s0, %s256
      %p258 = pneg %p39
      %p259 = pneg %p36
      %p260 = pneg %p60
      %p261 = pneg %p57
      %p262 = pneg %p81
      %p263 = pneg %p78
      %p264 = pneg %p102
      %p265 = pneg %p99
      %p266 = pneg %p123
      %p267 = pneg %p120
      %p268 = pneg %p144
      %p269 = pneg %p141
      %p270 = scmp.lt.s32.totalorder %s18, 1
      %s271 = scalar_select %p270, %s18, 1
      %s272 = smul.addr %s271, 8
      %s273 = smul.addr %s272, 8
      %s274 = scalar_lea.vmem %s6, %s273
      %p275 = pneg %p170
      %p276 = pneg %p167
      %p277 = pneg %p196
      %p278 = pneg %p193
      %p279 = scmp.lt.s32.totalorder %s18, 1
      %s280 = scalar_select %p279, %s18, 1
      %s281 = smul.addr %s280, 8
      %s282 = smul.addr %s281, 8
      %s283 = scalar_lea.vmem %s7, %s282
      %p284 = scmp.lt.s32.totalorder %s18, 1
      %s285 = scalar_select %p284, %s18, 1
      %s286 = smul.addr %s285, 20
      %s287 = smul.addr %s286, 4
      %s288 = scalar_lea.vmem %s0, %s287
      %p289 = scmp.lt.s32.totalorder %s18, 1
      %s290 = scalar_select %p289, %s18, 1
      %s291 = smul.addr %s290, 8
      %s292 = smul.addr %s291, 8
      %s293 = scalar_lea.vmem %s6, %s292
      %p294 = scmp.lt.s32.totalorder %s18, 1
      %s295 = scalar_select %p294, %s18, 1
      %s296 = smul.addr %s295, 8
      %s297 = smul.addr %s296, 8
      %s298 = scalar_lea.vmem %s7, %s297
      %v300 = vld [vmem:[%s288] sm:$0xf]
      %v301 = vld [vmem:[%s288 + $0x8] sm:$0xf]
      %v302 = vld [vmem:[%s288 + $0x10] sm:$0xf]
      %v303 = vld [vmem:[%s288 + $0x18] sm:$0xf]
      %v304 = vld [vmem:[%s288 + $0x20] sm:$0xf]
      %v305 = vld [vmem:[%s288 + $0x28] sm:$0xf]
      %v306 = vld [vmem:[%s288 + $0x30] sm:$0xf]
      %v307 = vld [vmem:[%s288 + $0x38] sm:$0xf]
      %v308 = vld [vmem:[%s1] sm:$0xf]
      %v309 = vld [vmem:[%s1 + $0x4] sm:$0xf]
      %v310 = vld [vmem:[%s1 + $0x8] sm:$0xf]
      %v311 = vld [vmem:[%s1 + $0xc] sm:$0xf]
      %v312 = vld [vmem:[%s1 + $0x10] sm:$0xf]
      %v313 = vld [vmem:[%s1 + $0x14] sm:$0xf]
      %v314 = vld [vmem:[%s1 + $0x18] sm:$0xf]
      %v315 = vld [vmem:[%s1 + $0x1c] sm:$0xf]
      %v316 = vld [vmem:[%s1 + $0x20] sm:$0xf]
      %v317 = vld [vmem:[%s1 + $0x24] sm:$0xf]
      %v318 = vld [vmem:[%s1 + $0x28] sm:$0xf]
      %v319 = vld [vmem:[%s1 + $0x2c] sm:$0xf]
      %v320 = vld [vmem:[%s1 + $0x30] sm:$0xf]
      %v321 = vld [vmem:[%s1 + $0x34] sm:$0xf]
      %v322 = vld [vmem:[%s1 + $0x38] sm:$0xf]
      %v323 = vld [vmem:[%s1 + $0x3c] sm:$0xf]
      %v324 = vld [vmem:[%s288 + $0x4] sm:$0x1]
      %v325 = vld [vmem:[%s288 + $0xc] sm:$0x1]
      %v326 = vld [vmem:[%s288 + $0x14] sm:$0x1]
      %v327 = vld [vmem:[%s288 + $0x1c] sm:$0x1]
      %v328 = vld [vmem:[%s288 + $0x24] sm:$0x1]
      %v329 = vld [vmem:[%s288 + $0x2c] sm:$0x1]
      %v330 = vld [vmem:[%s288 + $0x34] sm:$0x1]
      %v331 = vld [vmem:[%s288 + $0x3c] sm:$0x1]
      %vm332 = vsmask.f32 3328
      %vm333 = vsmask.f32 7440
      %vm334 = vmor %vm332, %vm333
      %v336 = vshrl.u32 %v300, 16
      %v338 = vrot.slane %v336, 4
      %v339 = vshll.u32 %v300, 16
      %v341 = vrot.slane %v339, 5
      %v342 = vor.u32 %v338, %v341
      %v343 = vrot.slane %v342, 4
      %v345 = vshll.u32 %v324, 16
      %v347 = vrot.slane %v345, 5
      %v348 = vsel %vm334, %v343, %v347
      %v350 = vshrl.u32 %v301, 16
      %v352 = vrot.slane %v350, 4
      %v353 = vshll.u32 %v301, 16
      %v355 = vrot.slane %v353, 5
      %v356 = vor.u32 %v352, %v355
      %v357 = vrot.slane %v356, 4
      %v359 = vshll.u32 %v325, 16
      %v361 = vrot.slane %v359, 5
      %v362 = vsel %vm334, %v357, %v361
      %v364 = vshrl.u32 %v302, 16
      %v366 = vrot.slane %v364, 4
      %v367 = vshll.u32 %v302, 16
      %v369 = vrot.slane %v367, 5
      %v370 = vor.u32 %v366, %v369
      %v371 = vrot.slane %v370, 4
      %v373 = vshll.u32 %v326, 16
      %v375 = vrot.slane %v373, 5
      %v376 = vsel %vm334, %v371, %v375
      %v378 = vshrl.u32 %v303, 16
      %v380 = vrot.slane %v378, 4
      %v381 = vshll.u32 %v303, 16
      %v383 = vrot.slane %v381, 5
      %v384 = vor.u32 %v380, %v383
      %v385 = vrot.slane %v384, 4
      %v387 = vshll.u32 %v327, 16
      %v389 = vrot.slane %v387, 5
      %v390 = vsel %vm334, %v385, %v389
      %v392 = vshrl.u32 %v304, 16
      %v394 = vrot.slane %v392, 4
      %v395 = vshll.u32 %v304, 16
      %v397 = vrot.slane %v395, 5
      %v398 = vor.u32 %v394, %v397
      %v399 = vrot.slane %v398, 4
      %v401 = vshll.u32 %v328, 16
      %v403 = vrot.slane %v401, 5
      %v404 = vsel %vm334, %v399, %v403
      %v406 = vshrl.u32 %v305, 16
      %v408 = vrot.slane %v406, 4
      %v409 = vshll.u32 %v305, 16
      %v411 = vrot.slane %v409, 5
      %v412 = vor.u32 %v408, %v411
      %v413 = vrot.slane %v412, 4
      %v415 = vshll.u32 %v329, 16
      %v417 = vrot.slane %v415, 5
      %v418 = vsel %vm334, %v413, %v417
      %v420 = vshrl.u32 %v306, 16
      %v422 = vrot.slane %v420, 4
      %v423 = vshll.u32 %v306, 16
      %v425 = vrot.slane %v423, 5
      %v426 = vor.u32 %v422, %v425
      %v427 = vrot.slane %v426, 4
      %v429 = vshll.u32 %v330, 16
      %v431 = vrot.slane %v429, 5
      %v432 = vsel %vm334, %v427, %v431
      %v434 = vshrl.u32 %v307, 16
      %v436 = vrot.slane %v434, 4
      %v437 = vshll.u32 %v307, 16
      %v439 = vrot.slane %v437, 5
      %v440 = vor.u32 %v436, %v439
      %v441 = vrot.slane %v440, 4
      %v443 = vshll.u32 %v331, 16
      %v445 = vrot.slane %v443, 5
      %v446 = vsel %vm334, %v441, %v445
      %s447 = scalar_lea.vmem %s1, 64
      %v448 = vld [vmem:[%s447] sm:$0xf]
      %v449 = vld [vmem:[%s447 + $0x4] sm:$0xf]
      %v450 = vld [vmem:[%s447 + $0x8] sm:$0xf]
      %v451 = vld [vmem:[%s447 + $0xc] sm:$0xf]
      %v452 = vld [vmem:[%s447 + $0x10] sm:$0xf]
      %v453 = vld [vmem:[%s447 + $0x14] sm:$0xf]
      %v454 = vld [vmem:[%s447 + $0x18] sm:$0xf]
      %v455 = vld [vmem:[%s447 + $0x1c] sm:$0xf]
      %v456 = vld [vmem:[%s447 + $0x20] sm:$0xf]
      %v457 = vld [vmem:[%s447 + $0x24] sm:$0xf]
      %v458 = vld [vmem:[%s447 + $0x28] sm:$0xf]
      %v459 = vld [vmem:[%s447 + $0x2c] sm:$0xf]
      %v460 = vld [vmem:[%s447 + $0x30] sm:$0xf]
      %v461 = vld [vmem:[%s447 + $0x34] sm:$0xf]
      %v462 = vld [vmem:[%s447 + $0x38] sm:$0xf]
      %v463 = vld [vmem:[%s447 + $0x3c] sm:$0xf]
      %v464 = vunpack.c.l.b16 %v348
      %v465 = vunpack.c.l.b16 %v362
      %v466 = vunpack.c.l.b16 %v376
      %v467 = vunpack.c.l.b16 %v390
      %v468 = vunpack.c.l.b16 %v404
      %v469 = vunpack.c.l.b16 %v418
      %v470 = vunpack.c.l.b16 %v432
      %v471 = vunpack.c.l.b16 %v446
      %v472 = vpack.c.b16 %v465, %v464
      %v473 = vpack.c.b16 %v467, %v466
      %v474 = vpack.c.b16 %v469, %v468
      %v475 = vpack.c.b16 %v471, %v470
      %v496 = vunpack.c.l.b16 %v448
      %v497 = vunpack.c.l.b16 %v449
      %v498 = vunpack.c.l.b16 %v450
      %v499 = vunpack.c.l.b16 %v451
      %v500 = vunpack.c.l.b16 %v452
      %v501 = vunpack.c.l.b16 %v453
      %v502 = vunpack.c.l.b16 %v454
      %v503 = vunpack.c.l.b16 %v455
      %v504 = vunpack.c.l.b16 %v456
      %v505 = vunpack.c.l.b16 %v457
      %v506 = vunpack.c.l.b16 %v458
      %v507 = vunpack.c.l.b16 %v459
      %v508 = vunpack.c.l.b16 %v460
      %v509 = vunpack.c.l.b16 %v461
      %v510 = vunpack.c.l.b16 %v462
      %v511 = vunpack.c.l.b16 %v463
      %v512 = vpack.c.b16 %v497, %v496
      %v513 = vpack.c.b16 %v499, %v498
      %v514 = vpack.c.b16 %v501, %v500
      %v515 = vpack.c.b16 %v503, %v502
      %v516 = vpack.c.b16 %v505, %v504
      %v517 = vpack.c.b16 %v507, %v506
      %v518 = vpack.c.b16 %v509, %v508
      %v519 = vpack.c.b16 %v511, %v510
      %528 = vmatprep.subr.bf16.mxu0 0
      %529 = vmatpush1.bf16.msra.mxu0 %v512
      %530 = vmatprep.subr.bf16.mxu0 0
      %531 = vmatpush1.bf16.msra.mxu0 %v513
      %532 = vmatprep.subr.bf16.mxu0 0
      %533 = vmatpush1.bf16.msra.mxu0 %v514
      %534 = vmatprep.subr.bf16.mxu0 0
      %535 = vmatpush1.bf16.msra.mxu0 %v515
      %536 = vmatprep.subr.bf16.mxu0 0
      %537 = vmatpush1.bf16.msra.mxu0 %v516
      %538 = vmatprep.subr.bf16.mxu0 0
      %539 = vmatpush1.bf16.msra.mxu0 %v517
      %540 = vmatprep.subr.bf16.mxu0 0
      %541 = vmatpush1.bf16.msra.mxu0 %v518
      %542 = vmatprep.subr.bf16.mxu0 0
      %543 = vmatpush1.bf16.msra.mxu0 %v519
      %544 = vmatprep.subr.bf16.mxu0 0
      %545 = vmatpush1.bf16.msra.mxu0 0
      %546 = vmatprep.subr.bf16.mxu0 0
      %547 = vmatpush1.bf16.msra.mxu0 0
      %548 = vmatprep.subr.bf16.mxu0 0
      %549 = vmatpush1.bf16.msra.mxu0 0
      %550 = vmatprep.subr.bf16.mxu0 0
      %551 = vmatpush1.bf16.msra.mxu0 0
      %552 = vmatprep.subr.bf16.mxu0 0
      %553 = vmatpush1.bf16.msra.mxu0 0
      %554 = vmatprep.subr.bf16.mxu0 0
      %555 = vmatpush1.bf16.msra.mxu0 0
      %556 = vmatprep.subr.bf16.mxu0 0
      %557 = vmatpush1.bf16.msra.mxu0 0
      %558 = vmatprep.subr.bf16.mxu0 0
      %559 = vmatpush1.bf16.msra.mxu0 0
      %560 = vmatprep.mubr.bf16.mxu0 0
      %561 = vmatmul.mubr.bf16.gmra.mrb[0].mxu0 %v472
      %v562 = vpop.f32.mrb[0].mxu0
      %v563 = vadd.f32 0.0, %v562
      %v564 = vpop.f32.mrb[0].mxu0
      %v565 = vpop.f32.mrb[0].mxu0
      %v566 = vadd.f32 0.0, %v565
      %v567 = vpop.f32.mrb[0].mxu0
      %568 = vmatprep.mubr.bf16.mxu0 0
      %569 = vmatmul.mubr.bf16.gmra.mrb[0].mxu0 %v473
      %v570 = vpop.f32.mrb[0].mxu0
      %v571 = vadd.f32 0.0, %v570
      %v572 = vpop.f32.mrb[0].mxu0
      %v573 = vpop.f32.mrb[0].mxu0
      %v574 = vadd.f32 0.0, %v573
      %v575 = vpop.f32.mrb[0].mxu0
      %576 = vmatprep.mubr.bf16.mxu0 0
      %577 = vmatmul.mubr.bf16.gmra.mrb[0].mxu0 %v474
      %v578 = vpop.f32.mrb[0].mxu0
      %v579 = vadd.f32 0.0, %v578
      %v580 = vpop.f32.mrb[0].mxu0
      %v581 = vpop.f32.mrb[0].mxu0
      %v582 = vadd.f32 0.0, %v581
      %v583 = vpop.f32.mrb[0].mxu0
      %584 = vmatprep.mubr.bf16.mxu0 0
      %585 = vmatmul.mubr.bf16.gmra.mrb[0].mxu0 %v475
      %v586 = vpop.f32.mrb[0].mxu0
      %v587 = vadd.f32 0.0, %v586
      %v588 = vpop.f32.mrb[0].mxu0
      %v589 = vpop.f32.mrb[0].mxu0
      %v590 = vadd.f32 0.0, %v589
      %v591 = vpop.f32.mrb[0].mxu0
      %592 = vdwg.mxu0
      %v601 = vunpack.c.l.b16 %v300
      %v602 = vunpack.c.l.b16 %v301
      %v603 = vunpack.c.l.b16 %v302
      %v604 = vunpack.c.l.b16 %v303
      %v605 = vunpack.c.l.b16 %v304
      %v606 = vunpack.c.l.b16 %v305
      %v607 = vunpack.c.l.b16 %v306
      %v608 = vunpack.c.l.b16 %v307
      %v609 = vpack.c.b16 %v602, %v601
      %v610 = vpack.c.b16 %v604, %v603
      %v611 = vpack.c.b16 %v606, %v605
      %v612 = vpack.c.b16 %v608, %v607
      %v633 = vunpack.c.l.b16 %v308
      %v634 = vunpack.c.l.b16 %v309
      %v635 = vunpack.c.l.b16 %v310
      %v636 = vunpack.c.l.b16 %v311
      %v637 = vunpack.c.l.b16 %v312
      %v638 = vunpack.c.l.b16 %v313
      %v639 = vunpack.c.l.b16 %v314
      %v640 = vunpack.c.l.b16 %v315
      %v641 = vunpack.c.l.b16 %v316
      %v642 = vunpack.c.l.b16 %v317
      %v643 = vunpack.c.l.b16 %v318
      %v644 = vunpack.c.l.b16 %v319
      %v645 = vunpack.c.l.b16 %v320
      %v646 = vunpack.c.l.b16 %v321
      %v647 = vunpack.c.l.b16 %v322
      %v648 = vunpack.c.l.b16 %v323
      %v649 = vpack.c.b16 %v634, %v633
      %v650 = vpack.c.b16 %v636, %v635
      %v651 = vpack.c.b16 %v638, %v637
      %v652 = vpack.c.b16 %v640, %v639
      %v653 = vpack.c.b16 %v642, %v641
      %v654 = vpack.c.b16 %v644, %v643
      %v655 = vpack.c.b16 %v646, %v645
      %v656 = vpack.c.b16 %v648, %v647
      %665 = vmatprep.subr.bf16.mxu0 0
      %666 = vmatpush1.bf16.msra.mxu0 %v649
      %667 = vmatprep.subr.bf16.mxu0 0
      %668 = vmatpush1.bf16.msra.mxu0 %v650
      %669 = vmatprep.subr.bf16.mxu0 0
      %670 = vmatpush1.bf16.msra.mxu0 %v651
      %671 = vmatprep.subr.bf16.mxu0 0
      %672 = vmatpush1.bf16.msra.mxu0 %v652
      %673 = vmatprep.subr.bf16.mxu0 0
      %674 = vmatpush1.bf16.msra.mxu0 %v653
      %675 = vmatprep.subr.bf16.mxu0 0
      %676 = vmatpush1.bf16.msra.mxu0 %v654
      %677 = vmatprep.subr.bf16.mxu0 0
      %678 = vmatpush1.bf16.msra.mxu0 %v655
      %679 = vmatprep.subr.bf16.mxu0 0
      %680 = vmatpush1.bf16.msra.mxu0 %v656
      %681 = vmatprep.subr.bf16.mxu0 0
      %682 = vmatpush1.bf16.msra.mxu0 0
      %683 = vmatprep.subr.bf16.mxu0 0
      %684 = vmatpush1.bf16.msra.mxu0 0
      %685 = vmatprep.subr.bf16.mxu0 0
      %686 = vmatpush1.bf16.msra.mxu0 0
      %687 = vmatprep.subr.bf16.mxu0 0
      %688 = vmatpush1.bf16.msra.mxu0 0
      %689 = vmatprep.subr.bf16.mxu0 0
      %690 = vmatpush1.bf16.msra.mxu0 0
      %691 = vmatprep.subr.bf16.mxu0 0
      %692 = vmatpush1.bf16.msra.mxu0 0
      %693 = vmatprep.subr.bf16.mxu0 0
      %694 = vmatpush1.bf16.msra.mxu0 0
      %695 = vmatprep.subr.bf16.mxu0 0
      %696 = vmatpush1.bf16.msra.mxu0 0
      %697 = vmatprep.mubr.bf16.mxu0 0
      %698 = vmatmul.mubr.bf16.gmra.mrb[0].mxu0 %v609
      %v699 = vpop.f32.mrb[0].mxu0
      %v700 = vadd.f32 %v563, %v699
      %v701 = vpop.f32.mrb[0].mxu0
      %v702 = vpop.f32.mrb[0].mxu0
      %v703 = vadd.f32 %v566, %v702
      %v704 = vpop.f32.mrb[0].mxu0
      %705 = vmatprep.mubr.bf16.mxu0 0
      %706 = vmatmul.mubr.bf16.gmra.mrb[0].mxu0 %v610
      %v707 = vpop.f32.mrb[0].mxu0
      %v708 = vadd.f32 %v571, %v707
      %v709 = vpop.f32.mrb[0].mxu0
      %v710 = vpop.f32.mrb[0].mxu0
      %v711 = vadd.f32 %v574, %v710
      %v712 = vpop.f32.mrb[0].mxu0
      %713 = vmatprep.mubr.bf16.mxu0 0
      %714 = vmatmul.mubr.bf16.gmra.mrb[0].mxu0 %v611
      %v715 = vpop.f32.mrb[0].mxu0
      %v716 = vadd.f32 %v579, %v715
      %v717 = vpop.f32.mrb[0].mxu0
      %v718 = vpop.f32.mrb[0].mxu0
      %v719 = vadd.f32 %v582, %v718
      %v720 = vpop.f32.mrb[0].mxu0
      %721 = vmatprep.mubr.bf16.mxu0 0
      %722 = vmatmul.mubr.bf16.gmra.mrb[0].mxu0 %v612
      %v723 = vpop.f32.mrb[0].mxu0
      %v724 = vadd.f32 %v587, %v723
      %v725 = vpop.f32.mrb[0].mxu0
      %v726 = vpop.f32.mrb[0].mxu0
      %v727 = vadd.f32 %v590, %v726
      %v728 = vpop.f32.mrb[0].mxu0
      %729 = vdwg.mxu0
      %v730 = vld [vmem:[%s288] sm:$0xe]
      %v731 = vld [vmem:[%s288 + $0x8] sm:$0xe]
      %v732 = vld [vmem:[%s288 + $0x10] sm:$0xe]
      %v733 = vld [vmem:[%s288 + $0x18] sm:$0xe]
      %v734 = vld [vmem:[%s288 + $0x20] sm:$0xe]
      %v735 = vld [vmem:[%s288 + $0x28] sm:$0xe]
      %v736 = vld [vmem:[%s288 + $0x30] sm:$0xe]
      %v737 = vld [vmem:[%s288 + $0x38] sm:$0xe]
      %vm754 = vcmask 1042432
      %vm755 = vcmask 1046532
      %vm756 = vmor %vm754, %vm755
      %v757 = vrot.slane %v730, 5
      %v758 = vrot.slane %v757, 4
      %v759 = vrot.slane %v324, 5
      %v760 = vsel %vm756, %v758, %v759
      %v761 = vrot.slane %v731, 5
      %v762 = vrot.slane %v761, 4
      %v763 = vrot.slane %v325, 5
      %v764 = vsel %vm756, %v762, %v763
      %v765 = vrot.slane %v732, 5
      %v766 = vrot.slane %v765, 4
      %v767 = vrot.slane %v326, 5
      %v768 = vsel %vm756, %v766, %v767
      %v769 = vrot.slane %v733, 5
      %v770 = vrot.slane %v769, 4
      %v771 = vrot.slane %v327, 5
      %v772 = vsel %vm756, %v770, %v771
      %v773 = vrot.slane %v734, 5
      %v774 = vrot.slane %v773, 4
      %v775 = vrot.slane %v328, 5
      %v776 = vsel %vm756, %v774, %v775
      %v777 = vrot.slane %v735, 5
      %v778 = vrot.slane %v777, 4
      %v779 = vrot.slane %v329, 5
      %v780 = vsel %vm756, %v778, %v779
      %v781 = vrot.slane %v736, 5
      %v782 = vrot.slane %v781, 4
      %v783 = vrot.slane %v330, 5
      %v784 = vsel %vm756, %v782, %v783
      %v785 = vrot.slane %v737, 5
      %v786 = vrot.slane %v785, 4
      %v787 = vrot.slane %v331, 5
      %v788 = vsel %vm756, %v786, %v787
      %s789 = scalar_lea.vmem %s1, 128
      %v790 = vld [vmem:[%s789] sm:$0xf]
      %v791 = vld [vmem:[%s789 + $0x4] sm:$0xf]
      %v792 = vld [vmem:[%s789 + $0x8] sm:$0xf]
      %v793 = vld [vmem:[%s789 + $0xc] sm:$0xf]
      %v794 = vld [vmem:[%s789 + $0x10] sm:$0xf]
      %v795 = vld [vmem:[%s789 + $0x14] sm:$0xf]
      %v796 = vld [vmem:[%s789 + $0x18] sm:$0xf]
      %v797 = vld [vmem:[%s789 + $0x1c] sm:$0xf]
      %v798 = vld [vmem:[%s789 + $0x20] sm:$0xf]
      %v799 = vld [vmem:[%s789 + $0x24] sm:$0xf]
      %v800 = vld [vmem:[%s789 + $0x28] sm:$0xf]
      %v801 = vld [vmem:[%s789 + $0x2c] sm:$0xf]
      %v802 = vld [vmem:[%s789 + $0x30] sm:$0xf]
      %v803 = vld [vmem:[%s789 + $0x34] sm:$0xf]
      %v804 = vld [vmem:[%s789 + $0x38] sm:$0xf]
      %v805 = vld [vmem:[%s789 + $0x3c] sm:$0xf]
      %v806 = vunpack.c.l.b16 %v760
      %v807 = vunpack.c.l.b16 %v764
      %v808 = vunpack.c.l.b16 %v768
      %v809 = vunpack.c.l.b16 %v772
      %v810 = vunpack.c.l.b16 %v776
      %v811 = vunpack.c.l.b16 %v780
      %v812 = vunpack.c.l.b16 %v784
      %v813 = vunpack.c.l.b16 %v788
      %v814 = vpack.c.b16 %v807, %v806
      %v815 = vpack.c.b16 %v809, %v808
      %v816 = vpack.c.b16 %v811, %v810
      %v817 = vpack.c.b16 %v813, %v812
      %v838 = vunpack.c.l.b16 %v790
      %v839 = vunpack.c.l.b16 %v791
      %v840 = vunpack.c.l.b16 %v792
      %v841 = vunpack.c.l.b16 %v793
      %v842 = vunpack.c.l.b16 %v794
      %v843 = vunpack.c.l.b16 %v795
      %v844 = vunpack.c.l.b16 %v796
      %v845 = vunpack.c.l.b16 %v797
      %v846 = vunpack.c.l.b16 %v798
      %v847 = vunpack.c.l.b16 %v799
      %v848 = vunpack.c.l.b16 %v800
      %v849 = vunpack.c.l.b16 %v801
      %v850 = vunpack.c.l.b16 %v802
      %v851 = vunpack.c.l.b16 %v803
      %v852 = vunpack.c.l.b16 %v804
      %v853 = vunpack.c.l.b16 %v805
      %v854 = vpack.c.b16 %v839, %v838
      %v855 = vpack.c.b16 %v841, %v840
      %v856 = vpack.c.b16 %v843, %v842
      %v857 = vpack.c.b16 %v845, %v844
      %v858 = vpack.c.b16 %v847, %v846
      %v859 = vpack.c.b16 %v849, %v848
      %v860 = vpack.c.b16 %v851, %v850
      %v861 = vpack.c.b16 %v853, %v852
      %870 = vmatprep.subr.bf16.mxu0 0
      %871 = vmatpush1.bf16.msra.mxu0 %v854
      %872 = vmatprep.subr.bf16.mxu0 0
      %873 = vmatpush1.bf16.msra.mxu0 %v855
      %874 = vmatprep.subr.bf16.mxu0 0
      %875 = vmatpush1.bf16.msra.mxu0 %v856
      %876 = vmatprep.subr.bf16.mxu0 0
      %877 = vmatpush1.bf16.msra.mxu0 %v857
      %878 = vmatprep.subr.bf16.mxu0 0
      %879 = vmatpush1.bf16.msra.mxu0 %v858
      %880 = vmatprep.subr.bf16.mxu0 0
      %881 = vmatpush1.bf16.msra.mxu0 %v859
      %882 = vmatprep.subr.bf16.mxu0 0
      %883 = vmatpush1.bf16.msra.mxu0 %v860
      %884 = vmatprep.subr.bf16.mxu0 0
      %885 = vmatpush1.bf16.msra.mxu0 %v861
      %886 = vmatprep.subr.bf16.mxu0 0
      %887 = vmatpush1.bf16.msra.mxu0 0
      %888 = vmatprep.subr.bf16.mxu0 0
      %889 = vmatpush1.bf16.msra.mxu0 0
      %890 = vmatprep.subr.bf16.mxu0 0
      %891 = vmatpush1.bf16.msra.mxu0 0
      %892 = vmatprep.subr.bf16.mxu0 0
      %893 = vmatpush1.bf16.msra.mxu0 0
      %894 = vmatprep.subr.bf16.mxu0 0
      %895 = vmatpush1.bf16.msra.mxu0 0
      %896 = vmatprep.subr.bf16.mxu0 0
      %897 = vmatpush1.bf16.msra.mxu0 0
      %898 = vmatprep.subr.bf16.mxu0 0
      %899 = vmatpush1.bf16.msra.mxu0 0
      %900 = vmatprep.subr.bf16.mxu0 0
      %901 = vmatpush1.bf16.msra.mxu0 0
      %902 = vmatprep.mubr.bf16.mxu0 0
      %903 = vmatmul.mubr.bf16.gmra.mrb[0].mxu0 %v814
      %v904 = vpop.f32.mrb[0].mxu0
      %v905 = vadd.f32 0.0, %v904
      %v906 = vpop.f32.mrb[0].mxu0
      %v907 = vpop.f32.mrb[0].mxu0
      %v908 = vadd.f32 0.0, %v907
      %v909 = vpop.f32.mrb[0].mxu0
      %910 = vmatprep.mubr.bf16.mxu0 0
      %911 = vmatmul.mubr.bf16.gmra.mrb[0].mxu0 %v815
      %v912 = vpop.f32.mrb[0].mxu0
      %v913 = vadd.f32 0.0, %v912
      %v914 = vpop.f32.mrb[0].mxu0
      %v915 = vpop.f32.mrb[0].mxu0
      %v916 = vadd.f32 0.0, %v915
      %v917 = vpop.f32.mrb[0].mxu0
      %918 = vmatprep.mubr.bf16.mxu0 0
      %919 = vmatmul.mubr.bf16.gmra.mrb[0].mxu0 %v816
      %v920 = vpop.f32.mrb[0].mxu0
      %v921 = vadd.f32 0.0, %v920
      %v922 = vpop.f32.mrb[0].mxu0
      %v923 = vpop.f32.mrb[0].mxu0
      %v924 = vadd.f32 0.0, %v923
      %v925 = vpop.f32.mrb[0].mxu0
      %926 = vmatprep.mubr.bf16.mxu0 0
      %927 = vmatmul.mubr.bf16.gmra.mrb[0].mxu0 %v817
      %v928 = vpop.f32.mrb[0].mxu0
      %v929 = vadd.f32 0.0, %v928
      %v930 = vpop.f32.mrb[0].mxu0
      %v931 = vpop.f32.mrb[0].mxu0
      %v932 = vadd.f32 0.0, %v931
      %v933 = vpop.f32.mrb[0].mxu0
      %934 = vdwg.mxu0
      %v935 = vadd.f32 %v700, %v905
      %v936 = vadd.f32 %v703, %v908
      %v937 = vadd.f32 %v708, %v913
      %v938 = vadd.f32 %v711, %v916
      %v939 = vadd.f32 %v716, %v921
      %v940 = vadd.f32 %v719, %v924
      %v941 = vadd.f32 %v724, %v929
      %v942 = vadd.f32 %v727, %v932
      %s943 = scalar_lea.vmem %s288, 8
      %v944 = vld [vmem:[%s943] sm:$0xf]
      %v945 = vld [vmem:[%s943 + $0x8] sm:$0xf]
      %v946 = vld [vmem:[%s943 + $0x10] sm:$0xf]
      %v947 = vld [vmem:[%s943 + $0x18] sm:$0xf]
      %v948 = vld [vmem:[%s943 + $0x20] sm:$0xf]
      %v949 = vld [vmem:[%s943 + $0x28] sm:$0xf]
      %v950 = vld [vmem:[%s943 + $0x30] sm:$0xf]
      %v951 = vld [vmem:[%s943 + $0x38] sm:$0xf]
      %s952 = scalar_lea.vmem %s1, 192
      %v953 = vld [vmem:[%s952] sm:$0xf]
      %v954 = vld [vmem:[%s952 + $0x4] sm:$0xf]
      %v955 = vld [vmem:[%s952 + $0x8] sm:$0xf]
      %v956 = vld [vmem:[%s952 + $0xc] sm:$0xf]
      %v957 = vld [vmem:[%s952 + $0x10] sm:$0xf]
      %v958 = vld [vmem:[%s952 + $0x14] sm:$0xf]
      %v959 = vld [vmem:[%s952 + $0x18] sm:$0xf]
      %v960 = vld [vmem:[%s952 + $0x1c] sm:$0xf]
      %v961 = vld [vmem:[%s952 + $0x20] sm:$0xf]
      %v962 = vld [vmem:[%s952 + $0x24] sm:$0xf]
      %v963 = vld [vmem:[%s952 + $0x28] sm:$0xf]
      %v964 = vld [vmem:[%s952 + $0x2c] sm:$0xf]
      %v965 = vld [vmem:[%s952 + $0x30] sm:$0xf]
      %v966 = vld [vmem:[%s952 + $0x34] sm:$0xf]
      %v967 = vld [vmem:[%s952 + $0x38] sm:$0xf]
      %v968 = vld [vmem:[%s952 + $0x3c] sm:$0xf]
      %v977 = vunpack.c.l.b16 %v944
      %v978 = vunpack.c.l.b16 %v945
      %v979 = vunpack.c.l.b16 %v946
      %v980 = vunpack.c.l.b16 %v947
      %v981 = vunpack.c.l.b16 %v948
      %v982 = vunpack.c.l.b16 %v949
      %v983 = vunpack.c.l.b16 %v950
      %v984 = vunpack.c.l.b16 %v951
      %v985 = vpack.c.b16 %v978, %v977
      %v986 = vpack.c.b16 %v980, %v979
      %v987 = vpack.c.b16 %v982, %v981
      %v988 = vpack.c.b16 %v984, %v983
      %v1009 = vunpack.c.l.b16 %v953
      %v1010 = vunpack.c.l.b16 %v954
      %v1011 = vunpack.c.l.b16 %v955
      %v1012 = vunpack.c.l.b16 %v956
      %v1013 = vunpack.c.l.b16 %v957
      %v1014 = vunpack.c.l.b16 %v958
      %v1015 = vunpack.c.l.b16 %v959
      %v1016 = vunpack.c.l.b16 %v960
      %v1017 = vunpack.c.l.b16 %v961
      %v1018 = vunpack.c.l.b16 %v962
      %v1019 = vunpack.c.l.b16 %v963
      %v1020 = vunpack.c.l.b16 %v964
      %v1021 = vunpack.c.l.b16 %v965
      %v1022 = vunpack.c.l.b16 %v966
      %v1023 = vunpack.c.l.b16 %v967
      %v1024 = vunpack.c.l.b16 %v968
      %v1025 = vpack.c.b16 %v1010, %v1009
      %v1026 = vpack.c.b16 %v1012, %v1011
      %v1027 = vpack.c.b16 %v1014, %v1013
      %v1028 = vpack.c.b16 %v1016, %v1015
      %v1029 = vpack.c.b16 %v1018, %v1017
      %v1030 = vpack.c.b16 %v1020, %v1019
      %v1031 = vpack.c.b16 %v1022, %v1021
      %v1032 = vpack.c.b16 %v1024, %v1023
      %1041 = vmatprep.subr.bf16.mxu0 0
      %1042 = vmatpush1.bf16.msra.mxu0 %v1025
      %1043 = vmatprep.subr.bf16.mxu0 0
      %1044 = vmatpush1.bf16.msra.mxu0 %v1026
      %1045 = vmatprep.subr.bf16.mxu0 0
      %1046 = vmatpush1.bf16.msra.mxu0 %v1027
      %1047 = vmatprep.subr.bf16.mxu0 0
      %1048 = vmatpush1.bf16.msra.mxu0 %v1028
      %1049 = vmatprep.subr.bf16.mxu0 0
      %1050 = vmatpush1.bf16.msra.mxu0 %v1029
      %1051 = vmatprep.subr.bf16.mxu0 0
      %1052 = vmatpush1.bf16.msra.mxu0 %v1030
      %1053 = vmatprep.subr.bf16.mxu0 0
      %1054 = vmatpush1.bf16.msra.mxu0 %v1031
      %1055 = vmatprep.subr.bf16.mxu0 0
      %1056 = vmatpush1.bf16.msra.mxu0 %v1032
      %1057 = vmatprep.subr.bf16.mxu0 0
      %1058 = vmatpush1.bf16.msra.mxu0 0
      %1059 = vmatprep.subr.bf16.mxu0 0
      %1060 = vmatpush1.bf16.msra.mxu0 0
      %1061 = vmatprep.subr.bf16.mxu0 0
      %1062 = vmatpush1.bf16.msra.mxu0 0
      %1063 = vmatprep.subr.bf16.mxu0 0
      %1064 = vmatpush1.bf16.msra.mxu0 0
      %1065 = vmatprep.subr.bf16.mxu0 0
      %1066 = vmatpush1.bf16.msra.mxu0 0
      %1067 = vmatprep.subr.bf16.mxu0 0
      %1068 = vmatpush1.bf16.msra.mxu0 0
      %1069 = vmatprep.subr.bf16.mxu0 0
      %1070 = vmatpush1.bf16.msra.mxu0 0
      %1071 = vmatprep.subr.bf16.mxu0 0
      %1072 = vmatpush1.bf16.msra.mxu0 0
      %1073 = vmatprep.mubr.bf16.mxu0 0
      %1074 = vmatmul.mubr.bf16.gmra.mrb[0].mxu0 %v985
      %v1075 = vpop.f32.mrb[0].mxu0
      %v1076 = vadd.f32 0.0, %v1075
      %v1077 = vpop.f32.mrb[0].mxu0
      %v1078 = vpop.f32.mrb[0].mxu0
      %v1079 = vadd.f32 0.0, %v1078
      %v1080 = vpop.f32.mrb[0].mxu0
      %1081 = vmatprep.mubr.bf16.mxu0 0
      %1082 = vmatmul.mubr.bf16.gmra.mrb[0].mxu0 %v986
      %v1083 = vpop.f32.mrb[0].mxu0
      %v1084 = vadd.f32 0.0, %v1083
      %v1085 = vpop.f32.mrb[0].mxu0
      %v1086 = vpop.f32.mrb[0].mxu0
      %v1087 = vadd.f32 0.0, %v1086
      %v1088 = vpop.f32.mrb[0].mxu0
      %1089 = vmatprep.mubr.bf16.mxu0 0
      %1090 = vmatmul.mubr.bf16.gmra.mrb[0].mxu0 %v987
      %v1091 = vpop.f32.mrb[0].mxu0
      %v1092 = vadd.f32 0.0, %v1091
      %v1093 = vpop.f32.mrb[0].mxu0
      %v1094 = vpop.f32.mrb[0].mxu0
      %v1095 = vadd.f32 0.0, %v1094
      %v1096 = vpop.f32.mrb[0].mxu0
      %1097 = vmatprep.mubr.bf16.mxu0 0
      %1098 = vmatmul.mubr.bf16.gmra.mrb[0].mxu0 %v988
      %v1099 = vpop.f32.mrb[0].mxu0
      %v1100 = vadd.f32 0.0, %v1099
      %v1101 = vpop.f32.mrb[0].mxu0
      %v1102 = vpop.f32.mrb[0].mxu0
      %v1103 = vadd.f32 0.0, %v1102
      %v1104 = vpop.f32.mrb[0].mxu0
      %1105 = vdwg.mxu0
      %v1106 = vadd.f32 %v935, %v1076
      %v1107 = vadd.f32 %v936, %v1079
      %v1108 = vadd.f32 %v937, %v1084
      %v1109 = vadd.f32 %v938, %v1087
      %v1110 = vadd.f32 %v939, %v1092
      %v1111 = vadd.f32 %v940, %v1095
      %v1112 = vadd.f32 %v941, %v1100
      %v1113 = vadd.f32 %v942, %v1103
      %v1114 = vld [vmem:[%s943] sm:$0xf]
      %v1115 = vld [vmem:[%s943 + $0x4] sm:$0x1]
      %v1116 = vld [vmem:[%s943 + $0x8] sm:$0xf]
      %v1117 = vld [vmem:[%s943 + $0xc] sm:$0x1]
      %v1118 = vld [vmem:[%s943 + $0x10] sm:$0xf]
      %v1119 = vld [vmem:[%s943 + $0x14] sm:$0x1]
      %v1120 = vld [vmem:[%s943 + $0x18] sm:$0xf]
      %v1121 = vld [vmem:[%s943 + $0x1c] sm:$0x1]
      %v1122 = vld [vmem:[%s943 + $0x20] sm:$0xf]
      %v1123 = vld [vmem:[%s943 + $0x24] sm:$0x1]
      %v1124 = vld [vmem:[%s943 + $0x28] sm:$0xf]
      %v1125 = vld [vmem:[%s943 + $0x2c] sm:$0x1]
      %v1126 = vld [vmem:[%s943 + $0x30] sm:$0xf]
      %v1127 = vld [vmem:[%s943 + $0x34] sm:$0x1]
      %v1128 = vld [vmem:[%s943 + $0x38] sm:$0xf]
      %v1129 = vld [vmem:[%s943 + $0x3c] sm:$0x1]
      %v1131 = vshrl.u32 %v1114, 16
      %v1133 = vrot.slane %v1131, 4
      %v1134 = vshll.u32 %v1114, 16
      %v1136 = vrot.slane %v1134, 5
      %v1137 = vor.u32 %v1133, %v1136
      %v1138 = vrot.slane %v1137, 4
      %v1140 = vshll.u32 %v1115, 16
      %v1142 = vrot.slane %v1140, 5
      %v1143 = vsel %vm334, %v1138, %v1142
      %v1145 = vshrl.u32 %v1116, 16
      %v1147 = vrot.slane %v1145, 4
      %v1148 = vshll.u32 %v1116, 16
      %v1150 = vrot.slane %v1148, 5
      %v1151 = vor.u32 %v1147, %v1150
      %v1152 = vrot.slane %v1151, 4
      %v1154 = vshll.u32 %v1117, 16
      %v1156 = vrot.slane %v1154, 5
      %v1157 = vsel %vm334, %v1152, %v1156
      %v1159 = vshrl.u32 %v1118, 16
      %v1161 = vrot.slane %v1159, 4
      %v1162 = vshll.u32 %v1118, 16
      %v1164 = vrot.slane %v1162, 5
      %v1165 = vor.u32 %v1161, %v1164
      %v1166 = vrot.slane %v1165, 4
      %v1168 = vshll.u32 %v1119, 16
      %v1170 = vrot.slane %v1168, 5
      %v1171 = vsel %vm334, %v1166, %v1170
      %v1173 = vshrl.u32 %v1120, 16
      %v1175 = vrot.slane %v1173, 4
      %v1176 = vshll.u32 %v1120, 16
      %v1178 = vrot.slane %v1176, 5
      %v1179 = vor.u32 %v1175, %v1178
      %v1180 = vrot.slane %v1179, 4
      %v1182 = vshll.u32 %v1121, 16
      %v1184 = vrot.slane %v1182, 5
      %v1185 = vsel %vm334, %v1180, %v1184
      %v1187 = vshrl.u32 %v1122, 16
      %v1189 = vrot.slane %v1187, 4
      %v1190 = vshll.u32 %v1122, 16
      %v1192 = vrot.slane %v1190, 5
      %v1193 = vor.u32 %v1189, %v1192
      %v1194 = vrot.slane %v1193, 4
      %v1196 = vshll.u32 %v1123, 16
      %v1198 = vrot.slane %v1196, 5
      %v1199 = vsel %vm334, %v1194, %v1198
      %v1201 = vshrl.u32 %v1124, 16
      %v1203 = vrot.slane %v1201, 4
      %v1204 = vshll.u32 %v1124, 16
      %v1206 = vrot.slane %v1204, 5
      %v1207 = vor.u32 %v1203, %v1206
      %v1208 = vrot.slane %v1207, 4
      %v1210 = vshll.u32 %v1125, 16
      %v1212 = vrot.slane %v1210, 5
      %v1213 = vsel %vm334, %v1208, %v1212
      %v1215 = vshrl.u32 %v1126, 16
      %v1217 = vrot.slane %v1215, 4
      %v1218 = vshll.u32 %v1126, 16
      %v1220 = vrot.slane %v1218, 5
      %v1221 = vor.u32 %v1217, %v1220
      %v1222 = vrot.slane %v1221, 4
      %v1224 = vshll.u32 %v1127, 16
      %v1226 = vrot.slane %v1224, 5
      %v1227 = vsel %vm334, %v1222, %v1226
      %v1229 = vshrl.u32 %v1128, 16
      %v1231 = vrot.slane %v1229, 4
      %v1232 = vshll.u32 %v1128, 16
      %v1234 = vrot.slane %v1232, 5
      %v1235 = vor.u32 %v1231, %v1234
      %v1236 = vrot.slane %v1235, 4
      %v1238 = vshll.u32 %v1129, 16
      %v1240 = vrot.slane %v1238, 5
      %v1241 = vsel %vm334, %v1236, %v1240
      %s1242 = scalar_lea.vmem %s1, 256
      %v1243 = vld [vmem:[%s1242] sm:$0xf]
      %v1244 = vld [vmem:[%s1242 + $0x4] sm:$0xf]
      %v1245 = vld [vmem:[%s1242 + $0x8] sm:$0xf]
      %v1246 = vld [vmem:[%s1242 + $0xc] sm:$0xf]
      %v1247 = vld [vmem:[%s1242 + $0x10] sm:$0xf]
      %v1248 = vld [vmem:[%s1242 + $0x14] sm:$0xf]
      %v1249 = vld [vmem:[%s1242 + $0x18] sm:$0xf]
      %v1250 = vld [vmem:[%s1242 + $0x1c] sm:$0xf]
      %v1251 = vld [vmem:[%s1242 + $0x20] sm:$0xf]
      %v1252 = vld [vmem:[%s1242 + $0x24] sm:$0xf]
      %v1253 = vld [vmem:[%s1242 + $0x28] sm:$0xf]
      %v1254 = vld [vmem:[%s1242 + $0x2c] sm:$0xf]
      %v1255 = vld [vmem:[%s1242 + $0x30] sm:$0xf]
      %v1256 = vld [vmem:[%s1242 + $0x34] sm:$0xf]
      %v1257 = vld [vmem:[%s1242 + $0x38] sm:$0xf]
      %v1258 = vld [vmem:[%s1242 + $0x3c] sm:$0xf]
      %v1259 = vunpack.c.l.b16 %v1143
      %v1260 = vunpack.c.l.b16 %v1157
      %v1261 = vunpack.c.l.b16 %v1171
      %v1262 = vunpack.c.l.b16 %v1185
      %v1263 = vunpack.c.l.b16 %v1199
      %v1264 = vunpack.c.l.b16 %v1213
      %v1265 = vunpack.c.l.b16 %v1227
      %v1266 = vunpack.c.l.b16 %v1241
      %v1267 = vpack.c.b16 %v1260, %v1259
      %v1268 = vpack.c.b16 %v1262, %v1261
      %v1269 = vpack.c.b16 %v1264, %v1263
      %v1270 = vpack.c.b16 %v1266, %v1265
      %v1291 = vunpack.c.l.b16 %v1243
      %v1292 = vunpack.c.l.b16 %v1244
      %v1293 = vunpack.c.l.b16 %v1245
      %v1294 = vunpack.c.l.b16 %v1246
      %v1295 = vunpack.c.l.b16 %v1247
      %v1296 = vunpack.c.l.b16 %v1248
      %v1297 = vunpack.c.l.b16 %v1249
      %v1298 = vunpack.c.l.b16 %v1250
      %v1299 = vunpack.c.l.b16 %v1251
      %v1300 = vunpack.c.l.b16 %v1252
      %v1301 = vunpack.c.l.b16 %v1253
      %v1302 = vunpack.c.l.b16 %v1254
      %v1303 = vunpack.c.l.b16 %v1255
      %v1304 = vunpack.c.l.b16 %v1256
      %v1305 = vunpack.c.l.b16 %v1257
      %v1306 = vunpack.c.l.b16 %v1258
      %v1307 = vpack.c.b16 %v1292, %v1291
      %v1308 = vpack.c.b16 %v1294, %v1293
      %v1309 = vpack.c.b16 %v1296, %v1295
      %v1310 = vpack.c.b16 %v1298, %v1297
      %v1311 = vpack.c.b16 %v1300, %v1299
      %v1312 = vpack.c.b16 %v1302, %v1301
      %v1313 = vpack.c.b16 %v1304, %v1303
      %v1314 = vpack.c.b16 %v1306, %v1305
      %1323 = vmatprep.subr.bf16.mxu0 0
      %1324 = vmatpush1.bf16.msra.mxu0 %v1307
      %1325 = vmatprep.subr.bf16.mxu0 0
      %1326 = vmatpush1.bf16.msra.mxu0 %v1308
      %1327 = vmatprep.subr.bf16.mxu0 0
      %1328 = vmatpush1.bf16.msra.mxu0 %v1309
      %1329 = vmatprep.subr.bf16.mxu0 0
      %1330 = vmatpush1.bf16.msra.mxu0 %v1310
      %1331 = vmatprep.subr.bf16.mxu0 0
      %1332 = vmatpush1.bf16.msra.mxu0 %v1311
      %1333 = vmatprep.subr.bf16.mxu0 0
      %1334 = vmatpush1.bf16.msra.mxu0 %v1312
      %1335 = vmatprep.subr.bf16.mxu0 0
      %1336 = vmatpush1.bf16.msra.mxu0 %v1313
      %1337 = vmatprep.subr.bf16.mxu0 0
      %1338 = vmatpush1.bf16.msra.mxu0 %v1314
      %1339 = vmatprep.subr.bf16.mxu0 0
      %1340 = vmatpush1.bf16.msra.mxu0 0
      %1341 = vmatprep.subr.bf16.mxu0 0
      %1342 = vmatpush1.bf16.msra.mxu0 0
      %1343 = vmatprep.subr.bf16.mxu0 0
      %1344 = vmatpush1.bf16.msra.mxu0 0
      %1345 = vmatprep.subr.bf16.mxu0 0
      %1346 = vmatpush1.bf16.msra.mxu0 0
      %1347 = vmatprep.subr.bf16.mxu0 0
      %1348 = vmatpush1.bf16.msra.mxu0 0
      %1349 = vmatprep.subr.bf16.mxu0 0
      %1350 = vmatpush1.bf16.msra.mxu0 0
      %1351 = vmatprep.subr.bf16.mxu0 0
      %1352 = vmatpush1.bf16.msra.mxu0 0
      %1353 = vmatprep.subr.bf16.mxu0 0
      %1354 = vmatpush1.bf16.msra.mxu0 0
      %1355 = vmatprep.mubr.bf16.mxu0 0
      %1356 = vmatmul.mubr.bf16.gmra.mrb[0].mxu0 %v1267
      %v1357 = vpop.f32.mrb[0].mxu0
      %v1358 = vadd.f32 0.0, %v1357
      %v1359 = vpop.f32.mrb[0].mxu0
      %v1360 = vpop.f32.mrb[0].mxu0
      %v1361 = vadd.f32 0.0, %v1360
      %v1362 = vpop.f32.mrb[0].mxu0
      %1363 = vmatprep.mubr.bf16.mxu0 0
      %1364 = vmatmul.mubr.bf16.gmra.mrb[0].mxu0 %v1268
      %v1365 = vpop.f32.mrb[0].mxu0
      %v1366 = vadd.f32 0.0, %v1365
      %v1367 = vpop.f32.mrb[0].mxu0
      %v1368 = vpop.f32.mrb[0].mxu0
      %v1369 = vadd.f32 0.0, %v1368
      %v1370 = vpop.f32.mrb[0].mxu0
      %1371 = vmatprep.mubr.bf16.mxu0 0
      %1372 = vmatmul.mubr.bf16.gmra.mrb[0].mxu0 %v1269
      %v1373 = vpop.f32.mrb[0].mxu0
      %v1374 = vadd.f32 0.0, %v1373
      %v1375 = vpop.f32.mrb[0].mxu0
      %v1376 = vpop.f32.mrb[0].mxu0
      %v1377 = vadd.f32 0.0, %v1376
      %v1378 = vpop.f32.mrb[0].mxu0
      %1379 = vmatprep.mubr.bf16.mxu0 0
      %1380 = vmatmul.mubr.bf16.gmra.mrb[0].mxu0 %v1270
      %v1381 = vpop.f32.mrb[0].mxu0
      %v1382 = vadd.f32 0.0, %v1381
      %v1383 = vpop.f32.mrb[0].mxu0
      %v1384 = vpop.f32.mrb[0].mxu0
      %v1385 = vadd.f32 0.0, %v1384
      %v1386 = vpop.f32.mrb[0].mxu0
      %1387 = vdwg.mxu0
      %v1388 = vadd.f32 %v1106, %v1358
      %v1389 = vadd.f32 %v1107, %v1361
      %v1390 = vadd.f32 %v1108, %v1366
      %v1391 = vadd.f32 %v1109, %v1369
      %v1392 = vadd.f32 %v1110, %v1374
      %v1393 = vadd.f32 %v1111, %v1377
      %v1394 = vadd.f32 %v1112, %v1382
      %v1395 = vadd.f32 %v1113, %v1385
      %v1396 = vld [vmem:[%s943] sm:$0xe]
      %v1397 = vld [vmem:[%s943 + $0x8] sm:$0xe]
      %v1398 = vld [vmem:[%s943 + $0x10] sm:$0xe]
      %v1399 = vld [vmem:[%s943 + $0x18] sm:$0xe]
      %v1400 = vld [vmem:[%s943 + $0x20] sm:$0xe]
      %v1401 = vld [vmem:[%s943 + $0x28] sm:$0xe]
      %v1402 = vld [vmem:[%s943 + $0x30] sm:$0xe]
      %v1403 = vld [vmem:[%s943 + $0x38] sm:$0xe]
      %v1420 = vrot.slane %v1396, 5
      %v1421 = vrot.slane %v1420, 4
      %v1422 = vrot.slane %v1115, 5
      %v1423 = vsel %vm756, %v1421, %v1422
      %v1424 = vrot.slane %v1397, 5
      %v1425 = vrot.slane %v1424, 4
      %v1426 = vrot.slane %v1117, 5
      %v1427 = vsel %vm756, %v1425, %v1426
      %v1428 = vrot.slane %v1398, 5
      %v1429 = vrot.slane %v1428, 4
      %v1430 = vrot.slane %v1119, 5
      %v1431 = vsel %vm756, %v1429, %v1430
      %v1432 = vrot.slane %v1399, 5
      %v1433 = vrot.slane %v1432, 4
      %v1434 = vrot.slane %v1121, 5
      %v1435 = vsel %vm756, %v1433, %v1434
      %v1436 = vrot.slane %v1400, 5
      %v1437 = vrot.slane %v1436, 4
      %v1438 = vrot.slane %v1123, 5
      %v1439 = vsel %vm756, %v1437, %v1438
      %v1440 = vrot.slane %v1401, 5
      %v1441 = vrot.slane %v1440, 4
      %v1442 = vrot.slane %v1125, 5
      %v1443 = vsel %vm756, %v1441, %v1442
      %v1444 = vrot.slane %v1402, 5
      %v1445 = vrot.slane %v1444, 4
      %v1446 = vrot.slane %v1127, 5
      %v1447 = vsel %vm756, %v1445, %v1446
      %v1448 = vrot.slane %v1403, 5
      %v1449 = vrot.slane %v1448, 4
      %v1450 = vrot.slane %v1129, 5
      %v1451 = vsel %vm756, %v1449, %v1450
      %s1452 = scalar_lea.vmem %s1, 320
      %v1453 = vld [vmem:[%s1452] sm:$0xf]
      %v1454 = vld [vmem:[%s1452 + $0x4] sm:$0xf]
      %v1455 = vld [vmem:[%s1452 + $0x8] sm:$0xf]
      %v1456 = vld [vmem:[%s1452 + $0xc] sm:$0xf]
      %v1457 = vld [vmem:[%s1452 + $0x10] sm:$0xf]
      %v1458 = vld [vmem:[%s1452 + $0x14] sm:$0xf]
      %v1459 = vld [vmem:[%s1452 + $0x18] sm:$0xf]
      %v1460 = vld [vmem:[%s1452 + $0x1c] sm:$0xf]
      %v1461 = vld [vmem:[%s1452 + $0x20] sm:$0xf]
      %v1462 = vld [vmem:[%s1452 + $0x24] sm:$0xf]
      %v1463 = vld [vmem:[%s1452 + $0x28] sm:$0xf]
      %v1464 = vld [vmem:[%s1452 + $0x2c] sm:$0xf]
      %v1465 = vld [vmem:[%s1452 + $0x30] sm:$0xf]
      %v1466 = vld [vmem:[%s1452 + $0x34] sm:$0xf]
      %v1467 = vld [vmem:[%s1452 + $0x38] sm:$0xf]
      %v1468 = vld [vmem:[%s1452 + $0x3c] sm:$0xf]
      %v1469 = vunpack.c.l.b16 %v1423
      %v1470 = vunpack.c.l.b16 %v1427
      %v1471 = vunpack.c.l.b16 %v1431
      %v1472 = vunpack.c.l.b16 %v1435
      %v1473 = vunpack.c.l.b16 %v1439
      %v1474 = vunpack.c.l.b16 %v1443
      %v1475 = vunpack.c.l.b16 %v1447
      %v1476 = vunpack.c.l.b16 %v1451
      %v1477 = vpack.c.b16 %v1470, %v1469
      %v1478 = vpack.c.b16 %v1472, %v1471
      %v1479 = vpack.c.b16 %v1474, %v1473
      %v1480 = vpack.c.b16 %v1476, %v1475
      %v1501 = vunpack.c.l.b16 %v1453
      %v1502 = vunpack.c.l.b16 %v1454
      %v1503 = vunpack.c.l.b16 %v1455
      %v1504 = vunpack.c.l.b16 %v1456
      %v1505 = vunpack.c.l.b16 %v1457
      %v1506 = vunpack.c.l.b16 %v1458
      %v1507 = vunpack.c.l.b16 %v1459
      %v1508 = vunpack.c.l.b16 %v1460
      %v1509 = vunpack.c.l.b16 %v1461
      %v1510 = vunpack.c.l.b16 %v1462
      %v1511 = vunpack.c.l.b16 %v1463
      %v1512 = vunpack.c.l.b16 %v1464
      %v1513 = vunpack.c.l.b16 %v1465
      %v1514 = vunpack.c.l.b16 %v1466
      %v1515 = vunpack.c.l.b16 %v1467
      %v1516 = vunpack.c.l.b16 %v1468
      %v1517 = vpack.c.b16 %v1502, %v1501
      %v1518 = vpack.c.b16 %v1504, %v1503
      %v1519 = vpack.c.b16 %v1506, %v1505
      %v1520 = vpack.c.b16 %v1508, %v1507
      %v1521 = vpack.c.b16 %v1510, %v1509
      %v1522 = vpack.c.b16 %v1512, %v1511
      %v1523 = vpack.c.b16 %v1514, %v1513
      %v1524 = vpack.c.b16 %v1516, %v1515
      %1533 = vmatprep.subr.bf16.mxu0 0
      %1534 = vmatpush1.bf16.msra.mxu0 %v1517
      %1535 = vmatprep.subr.bf16.mxu0 0
      %1536 = vmatpush1.bf16.msra.mxu0 %v1518
      %1537 = vmatprep.subr.bf16.mxu0 0
      %1538 = vmatpush1.bf16.msra.mxu0 %v1519
      %1539 = vmatprep.subr.bf16.mxu0 0
      %1540 = vmatpush1.bf16.msra.mxu0 %v1520
      %1541 = vmatprep.subr.bf16.mxu0 0
      %1542 = vmatpush1.bf16.msra.mxu0 %v1521
      %1543 = vmatprep.subr.bf16.mxu0 0
      %1544 = vmatpush1.bf16.msra.mxu0 %v1522
      %1545 = vmatprep.subr.bf16.mxu0 0
      %1546 = vmatpush1.bf16.msra.mxu0 %v1523
      %1547 = vmatprep.subr.bf16.mxu0 0
      %1548 = vmatpush1.bf16.msra.mxu0 %v1524
      %1549 = vmatprep.subr.bf16.mxu0 0
      %1550 = vmatpush1.bf16.msra.mxu0 0
      %1551 = vmatprep.subr.bf16.mxu0 0
      %1552 = vmatpush1.bf16.msra.mxu0 0
      %1553 = vmatprep.subr.bf16.mxu0 0
      %1554 = vmatpush1.bf16.msra.mxu0 0
      %1555 = vmatprep.subr.bf16.mxu0 0
      %1556 = vmatpush1.bf16.msra.mxu0 0
      %1557 = vmatprep.subr.bf16.mxu0 0
      %1558 = vmatpush1.bf16.msra.mxu0 0
      %1559 = vmatprep.subr.bf16.mxu0 0
      %1560 = vmatpush1.bf16.msra.mxu0 0
      %1561 = vmatprep.subr.bf16.mxu0 0
      %1562 = vmatpush1.bf16.msra.mxu0 0
      %1563 = vmatprep.subr.bf16.mxu0 0
      %1564 = vmatpush1.bf16.msra.mxu0 0
      %1565 = vmatprep.mubr.bf16.mxu0 0
      %1566 = vmatmul.mubr.bf16.gmra.mrb[0].mxu0 %v1477
      %v1567 = vpop.f32.mrb[0].mxu0
      %v1568 = vadd.f32 0.0, %v1567
      %v1569 = vpop.f32.mrb[0].mxu0
      %v1570 = vpop.f32.mrb[0].mxu0
      %v1571 = vadd.f32 0.0, %v1570
      %v1572 = vpop.f32.mrb[0].mxu0
      %1573 = vmatprep.mubr.bf16.mxu0 0
      %1574 = vmatmul.mubr.bf16.gmra.mrb[0].mxu0 %v1478
      %v1575 = vpop.f32.mrb[0].mxu0
      %v1576 = vadd.f32 0.0, %v1575
      %v1577 = vpop.f32.mrb[0].mxu0
      %v1578 = vpop.f32.mrb[0].mxu0
      %v1579 = vadd.f32 0.0, %v1578
      %v1580 = vpop.f32.mrb[0].mxu0
      %1581 = vmatprep.mubr.bf16.mxu0 0
      %1582 = vmatmul.mubr.bf16.gmra.mrb[0].mxu0 %v1479
      %v1583 = vpop.f32.mrb[0].mxu0
      %v1584 = vadd.f32 0.0, %v1583
      %v1585 = vpop.f32.mrb[0].mxu0
      %v1586 = vpop.f32.mrb[0].mxu0
      %v1587 = vadd.f32 0.0, %v1586
      %v1588 = vpop.f32.mrb[0].mxu0
      %1589 = vmatprep.mubr.bf16.mxu0 0
      %1590 = vmatmul.mubr.bf16.gmra.mrb[0].mxu0 %v1480
      %v1591 = vpop.f32.mrb[0].mxu0
      %v1592 = vadd.f32 0.0, %v1591
      %v1593 = vpop.f32.mrb[0].mxu0
      %v1594 = vpop.f32.mrb[0].mxu0
      %v1595 = vadd.f32 0.0, %v1594
      %v1596 = vpop.f32.mrb[0].mxu0
      %1597 = vdwg.mxu0
      %v1598 = vadd.f32 %v1388, %v1568
      %v1599 = vadd.f32 %v1389, %v1571
      %v1600 = vadd.f32 %v1390, %v1576
      %v1601 = vadd.f32 %v1391, %v1579
      %v1602 = vadd.f32 %v1392, %v1584
      %v1603 = vadd.f32 %v1393, %v1587
      %v1604 = vadd.f32 %v1394, %v1592
      %v1605 = vadd.f32 %v1395, %v1595
      %s1606 = scalar_lea.vmem %s288, 16
      %v1607 = vld [vmem:[%s1606] sm:$0xf]
      %v1608 = vld [vmem:[%s1606 + $0x8] sm:$0xf]
      %v1609 = vld [vmem:[%s1606 + $0x10] sm:$0xf]
      %v1610 = vld [vmem:[%s1606 + $0x18] sm:$0xf]
      %v1611 = vld [vmem:[%s1606 + $0x20] sm:$0xf]
      %v1612 = vld [vmem:[%s1606 + $0x28] sm:$0xf]
      %v1613 = vld [vmem:[%s1606 + $0x30] sm:$0xf]
      %v1614 = vld [vmem:[%s1606 + $0x38] sm:$0xf]
      %s1615 = scalar_lea.vmem %s1, 384
      %v1616 = vld [vmem:[%s1615] sm:$0xf]
      %v1617 = vld [vmem:[%s1615 + $0x4] sm:$0xf]
      %v1618 = vld [vmem:[%s1615 + $0x8] sm:$0xf]
      %v1619 = vld [vmem:[%s1615 + $0xc] sm:$0xf]
      %v1620 = vld [vmem:[%s1615 + $0x10] sm:$0xf]
      %v1621 = vld [vmem:[%s1615 + $0x14] sm:$0xf]
      %v1622 = vld [vmem:[%s1615 + $0x18] sm:$0xf]
      %v1623 = vld [vmem:[%s1615 + $0x1c] sm:$0xf]
      %v1624 = vld [vmem:[%s1615 + $0x20] sm:$0xf]
      %v1625 = vld [vmem:[%s1615 + $0x24] sm:$0xf]
      %v1626 = vld [vmem:[%s1615 + $0x28] sm:$0xf]
      %v1627 = vld [vmem:[%s1615 + $0x2c] sm:$0xf]
      %v1628 = vld [vmem:[%s1615 + $0x30] sm:$0xf]
      %v1629 = vld [vmem:[%s1615 + $0x34] sm:$0xf]
      %v1630 = vld [vmem:[%s1615 + $0x38] sm:$0xf]
      %v1631 = vld [vmem:[%s1615 + $0x3c] sm:$0xf]
      %v1640 = vunpack.c.l.b16 %v1607
      %v1641 = vunpack.c.l.b16 %v1608
      %v1642 = vunpack.c.l.b16 %v1609
      %v1643 = vunpack.c.l.b16 %v1610
      %v1644 = vunpack.c.l.b16 %v1611
      %v1645 = vunpack.c.l.b16 %v1612
      %v1646 = vunpack.c.l.b16 %v1613
      %v1647 = vunpack.c.l.b16 %v1614
      %v1648 = vpack.c.b16 %v1641, %v1640
      %v1649 = vpack.c.b16 %v1643, %v1642
      %v1650 = vpack.c.b16 %v1645, %v1644
      %v1651 = vpack.c.b16 %v1647, %v1646
      %v1672 = vunpack.c.l.b16 %v1616
      %v1673 = vunpack.c.l.b16 %v1617
      %v1674 = vunpack.c.l.b16 %v1618
      %v1675 = vunpack.c.l.b16 %v1619
      %v1676 = vunpack.c.l.b16 %v1620
      %v1677 = vunpack.c.l.b16 %v1621
      %v1678 = vunpack.c.l.b16 %v1622
      %v1679 = vunpack.c.l.b16 %v1623
      %v1680 = vunpack.c.l.b16 %v1624
      %v1681 = vunpack.c.l.b16 %v1625
      %v1682 = vunpack.c.l.b16 %v1626
      %v1683 = vunpack.c.l.b16 %v1627
      %v1684 = vunpack.c.l.b16 %v1628
      %v1685 = vunpack.c.l.b16 %v1629
      %v1686 = vunpack.c.l.b16 %v1630
      %v1687 = vunpack.c.l.b16 %v1631
      %v1688 = vpack.c.b16 %v1673, %v1672
      %v1689 = vpack.c.b16 %v1675, %v1674
      %v1690 = vpack.c.b16 %v1677, %v1676
      %v1691 = vpack.c.b16 %v1679, %v1678
      %v1692 = vpack.c.b16 %v1681, %v1680
      %v1693 = vpack.c.b16 %v1683, %v1682
      %v1694 = vpack.c.b16 %v1685, %v1684
      %v1695 = vpack.c.b16 %v1687, %v1686
      %1704 = vmatprep.subr.bf16.mxu0 0
      %1705 = vmatpush1.bf16.msra.mxu0 %v1688
      %1706 = vmatprep.subr.bf16.mxu0 0
      %1707 = vmatpush1.bf16.msra.mxu0 %v1689
      %1708 = vmatprep.subr.bf16.mxu0 0
      %1709 = vmatpush1.bf16.msra.mxu0 %v1690
      %1710 = vmatprep.subr.bf16.mxu0 0
      %1711 = vmatpush1.bf16.msra.mxu0 %v1691
      %1712 = vmatprep.subr.bf16.mxu0 0
      %1713 = vmatpush1.bf16.msra.mxu0 %v1692
      %1714 = vmatprep.subr.bf16.mxu0 0
      %1715 = vmatpush1.bf16.msra.mxu0 %v1693
      %1716 = vmatprep.subr.bf16.mxu0 0
      %1717 = vmatpush1.bf16.msra.mxu0 %v1694
      %1718 = vmatprep.subr.bf16.mxu0 0
      %1719 = vmatpush1.bf16.msra.mxu0 %v1695
      %1720 = vmatprep.subr.bf16.mxu0 0
      %1721 = vmatpush1.bf16.msra.mxu0 0
      %1722 = vmatprep.subr.bf16.mxu0 0
      %1723 = vmatpush1.bf16.msra.mxu0 0
      %1724 = vmatprep.subr.bf16.mxu0 0
      %1725 = vmatpush1.bf16.msra.mxu0 0
      %1726 = vmatprep.subr.bf16.mxu0 0
      %1727 = vmatpush1.bf16.msra.mxu0 0
      %1728 = vmatprep.subr.bf16.mxu0 0
      %1729 = vmatpush1.bf16.msra.mxu0 0
      %1730 = vmatprep.subr.bf16.mxu0 0
      %1731 = vmatpush1.bf16.msra.mxu0 0
      %1732 = vmatprep.subr.bf16.mxu0 0
      %1733 = vmatpush1.bf16.msra.mxu0 0
      %1734 = vmatprep.subr.bf16.mxu0 0
      %1735 = vmatpush1.bf16.msra.mxu0 0
      %1736 = vmatprep.mubr.bf16.mxu0 0
      %1737 = vmatmul.mubr.bf16.gmra.mrb[0].mxu0 %v1648
      %v1738 = vpop.f32.mrb[0].mxu0
      %v1739 = vadd.f32 0.0, %v1738
      %v1740 = vpop.f32.mrb[0].mxu0
      %v1741 = vpop.f32.mrb[0].mxu0
      %v1742 = vadd.f32 0.0, %v1741
      %v1743 = vpop.f32.mrb[0].mxu0
      %1744 = vmatprep.mubr.bf16.mxu0 0
      %1745 = vmatmul.mubr.bf16.gmra.mrb[0].mxu0 %v1649
      %v1746 = vpop.f32.mrb[0].mxu0
      %v1747 = vadd.f32 0.0, %v1746
      %v1748 = vpop.f32.mrb[0].mxu0
      %v1749 = vpop.f32.mrb[0].mxu0
      %v1750 = vadd.f32 0.0, %v1749
      %v1751 = vpop.f32.mrb[0].mxu0
      %1752 = vmatprep.mubr.bf16.mxu0 0
      %1753 = vmatmul.mubr.bf16.gmra.mrb[0].mxu0 %v1650
      %v1754 = vpop.f32.mrb[0].mxu0
      %v1755 = vadd.f32 0.0, %v1754
      %v1756 = vpop.f32.mrb[0].mxu0
      %v1757 = vpop.f32.mrb[0].mxu0
      %v1758 = vadd.f32 0.0, %v1757
      %v1759 = vpop.f32.mrb[0].mxu0
      %1760 = vmatprep.mubr.bf16.mxu0 0
      %1761 = vmatmul.mubr.bf16.gmra.mrb[0].mxu0 %v1651
      %v1762 = vpop.f32.mrb[0].mxu0
      %v1763 = vadd.f32 0.0, %v1762
      %v1764 = vpop.f32.mrb[0].mxu0
      %v1765 = vpop.f32.mrb[0].mxu0
      %v1766 = vadd.f32 0.0, %v1765
      %v1767 = vpop.f32.mrb[0].mxu0
      %1768 = vdwg.mxu0
      %v1769 = vadd.f32 %v1598, %v1739
      %v1770 = vadd.f32 %v1599, %v1742
      %v1771 = vadd.f32 %v1600, %v1747
      %v1772 = vadd.f32 %v1601, %v1750
      %v1773 = vadd.f32 %v1602, %v1755
      %v1774 = vadd.f32 %v1603, %v1758
      %v1775 = vadd.f32 %v1604, %v1763
      %v1776 = vadd.f32 %v1605, %v1766
      %v1777 = vld [vmem:[%s1606] sm:$0xf]
      %v1778 = vld [vmem:[%s1606 + $0x4] sm:$0x1]
      %v1779 = vld [vmem:[%s1606 + $0x8] sm:$0xf]
      %v1780 = vld [vmem:[%s1606 + $0xc] sm:$0x1]
      %v1781 = vld [vmem:[%s1606 + $0x10] sm:$0xf]
      %v1782 = vld [vmem:[%s1606 + $0x14] sm:$0x1]
      %v1783 = vld [vmem:[%s1606 + $0x18] sm:$0xf]
      %v1784 = vld [vmem:[%s1606 + $0x1c] sm:$0x1]
      %v1785 = vld [vmem:[%s1606 + $0x20] sm:$0xf]
      %v1786 = vld [vmem:[%s1606 + $0x24] sm:$0x1]
      %v1787 = vld [vmem:[%s1606 + $0x28] sm:$0xf]
      %v1788 = vld [vmem:[%s1606 + $0x2c] sm:$0x1]
      %v1789 = vld [vmem:[%s1606 + $0x30] sm:$0xf]
      %v1790 = vld [vmem:[%s1606 + $0x34] sm:$0x1]
      %v1791 = vld [vmem:[%s1606 + $0x38] sm:$0xf]
      %v1792 = vld [vmem:[%s1606 + $0x3c] sm:$0x1]
      %v1794 = vshrl.u32 %v1777, 16
      %v1796 = vrot.slane %v1794, 4
      %v1797 = vshll.u32 %v1777, 16
      %v1799 = vrot.slane %v1797, 5
      %v1800 = vor.u32 %v1796, %v1799
      %v1801 = vrot.slane %v1800, 4
      %v1803 = vshll.u32 %v1778, 16
      %v1805 = vrot.slane %v1803, 5
      %v1806 = vsel %vm334, %v1801, %v1805
      %v1808 = vshrl.u32 %v1779, 16
      %v1810 = vrot.slane %v1808, 4
      %v1811 = vshll.u32 %v1779, 16
      %v1813 = vrot.slane %v1811, 5
      %v1814 = vor.u32 %v1810, %v1813
      %v1815 = vrot.slane %v1814, 4
      %v1817 = vshll.u32 %v1780, 16
      %v1819 = vrot.slane %v1817, 5
      %v1820 = vsel %vm334, %v1815, %v1819
      %v1822 = vshrl.u32 %v1781, 16
      %v1824 = vrot.slane %v1822, 4
      %v1825 = vshll.u32 %v1781, 16
      %v1827 = vrot.slane %v1825, 5
      %v1828 = vor.u32 %v1824, %v1827
      %v1829 = vrot.slane %v1828, 4
      %v1831 = vshll.u32 %v1782, 16
      %v1833 = vrot.slane %v1831, 5
      %v1834 = vsel %vm334, %v1829, %v1833
      %v1836 = vshrl.u32 %v1783, 16
      %v1838 = vrot.slane %v1836, 4
      %v1839 = vshll.u32 %v1783, 16
      %v1841 = vrot.slane %v1839, 5
      %v1842 = vor.u32 %v1838, %v1841
      %v1843 = vrot.slane %v1842, 4
      %v1845 = vshll.u32 %v1784, 16
      %v1847 = vrot.slane %v1845, 5
      %v1848 = vsel %vm334, %v1843, %v1847
      %v1850 = vshrl.u32 %v1785, 16
      %v1852 = vrot.slane %v1850, 4
      %v1853 = vshll.u32 %v1785, 16
      %v1855 = vrot.slane %v1853, 5
      %v1856 = vor.u32 %v1852, %v1855
      %v1857 = vrot.slane %v1856, 4
      %v1859 = vshll.u32 %v1786, 16
      %v1861 = vrot.slane %v1859, 5
      %v1862 = vsel %vm334, %v1857, %v1861
      %v1864 = vshrl.u32 %v1787, 16
      %v1866 = vrot.slane %v1864, 4
      %v1867 = vshll.u32 %v1787, 16
      %v1869 = vrot.slane %v1867, 5
      %v1870 = vor.u32 %v1866, %v1869
      %v1871 = vrot.slane %v1870, 4
      %v1873 = vshll.u32 %v1788, 16
      %v1875 = vrot.slane %v1873, 5
      %v1876 = vsel %vm334, %v1871, %v1875
      %v1878 = vshrl.u32 %v1789, 16
      %v1880 = vrot.slane %v1878, 4
      %v1881 = vshll.u32 %v1789, 16
      %v1883 = vrot.slane %v1881, 5
      %v1884 = vor.u32 %v1880, %v1883
      %v1885 = vrot.slane %v1884, 4
      %v1887 = vshll.u32 %v1790, 16
      %v1889 = vrot.slane %v1887, 5
      %v1890 = vsel %vm334, %v1885, %v1889
      %v1892 = vshrl.u32 %v1791, 16
      %v1894 = vrot.slane %v1892, 4
      %v1895 = vshll.u32 %v1791, 16
      %v1897 = vrot.slane %v1895, 5
      %v1898 = vor.u32 %v1894, %v1897
      %v1899 = vrot.slane %v1898, 4
      %v1901 = vshll.u32 %v1792, 16
      %v1903 = vrot.slane %v1901, 5
      %v1904 = vsel %vm334, %v1899, %v1903
      %s1905 = scalar_lea.vmem %s1, 448
      %v1906 = vld [vmem:[%s1905] sm:$0xf]
      %v1907 = vld [vmem:[%s1905 + $0x4] sm:$0xf]
      %v1908 = vld [vmem:[%s1905 + $0x8] sm:$0xf]
      %v1909 = vld [vmem:[%s1905 + $0xc] sm:$0xf]
      %v1910 = vld [vmem:[%s1905 + $0x10] sm:$0xf]
      %v1911 = vld [vmem:[%s1905 + $0x14] sm:$0xf]
      %v1912 = vld [vmem:[%s1905 + $0x18] sm:$0xf]
      %v1913 = vld [vmem:[%s1905 + $0x1c] sm:$0xf]
      %v1914 = vld [vmem:[%s1905 + $0x20] sm:$0xf]
      %v1915 = vld [vmem:[%s1905 + $0x24] sm:$0xf]
      %v1916 = vld [vmem:[%s1905 + $0x28] sm:$0xf]
      %v1917 = vld [vmem:[%s1905 + $0x2c] sm:$0xf]
      %v1918 = vld [vmem:[%s1905 + $0x30] sm:$0xf]
      %v1919 = vld [vmem:[%s1905 + $0x34] sm:$0xf]
      %v1920 = vld [vmem:[%s1905 + $0x38] sm:$0xf]
      %v1921 = vld [vmem:[%s1905 + $0x3c] sm:$0xf]
      %v1922 = vunpack.c.l.b16 %v1806
      %v1923 = vunpack.c.l.b16 %v1820
      %v1924 = vunpack.c.l.b16 %v1834
      %v1925 = vunpack.c.l.b16 %v1848
      %v1926 = vunpack.c.l.b16 %v1862
      %v1927 = vunpack.c.l.b16 %v1876
      %v1928 = vunpack.c.l.b16 %v1890
      %v1929 = vunpack.c.l.b16 %v1904
      %v1930 = vpack.c.b16 %v1923, %v1922
      %v1931 = vpack.c.b16 %v1925, %v1924
      %v1932 = vpack.c.b16 %v1927, %v1926
      %v1933 = vpack.c.b16 %v1929, %v1928
      %v1954 = vunpack.c.l.b16 %v1906
      %v1955 = vunpack.c.l.b16 %v1907
      %v1956 = vunpack.c.l.b16 %v1908
      %v1957 = vunpack.c.l.b16 %v1909
      %v1958 = vunpack.c.l.b16 %v1910
      %v1959 = vunpack.c.l.b16 %v1911
      %v1960 = vunpack.c.l.b16 %v1912
      %v1961 = vunpack.c.l.b16 %v1913
      %v1962 = vunpack.c.l.b16 %v1914
      %v1963 = vunpack.c.l.b16 %v1915
      %v1964 = vunpack.c.l.b16 %v1916
      %v1965 = vunpack.c.l.b16 %v1917
      %v1966 = vunpack.c.l.b16 %v1918
      %v1967 = vunpack.c.l.b16 %v1919
      %v1968 = vunpack.c.l.b16 %v1920
      %v1969 = vunpack.c.l.b16 %v1921
      %v1970 = vpack.c.b16 %v1955, %v1954
      %v1971 = vpack.c.b16 %v1957, %v1956
      %v1972 = vpack.c.b16 %v1959, %v1958
      %v1973 = vpack.c.b16 %v1961, %v1960
      %v1974 = vpack.c.b16 %v1963, %v1962
      %v1975 = vpack.c.b16 %v1965, %v1964
      %v1976 = vpack.c.b16 %v1967, %v1966
      %v1977 = vpack.c.b16 %v1969, %v1968
      %1986 = vmatprep.subr.bf16.mxu0 0
      %1987 = vmatpush1.bf16.msra.mxu0 %v1970
      %1988 = vmatprep.subr.bf16.mxu0 0
      %1989 = vmatpush1.bf16.msra.mxu0 %v1971
      %1990 = vmatprep.subr.bf16.mxu0 0
      %1991 = vmatpush1.bf16.msra.mxu0 %v1972
      %1992 = vmatprep.subr.bf16.mxu0 0
      %1993 = vmatpush1.bf16.msra.mxu0 %v1973
      %1994 = vmatprep.subr.bf16.mxu0 0
      %1995 = vmatpush1.bf16.msra.mxu0 %v1974
      %1996 = vmatprep.subr.bf16.mxu0 0
      %1997 = vmatpush1.bf16.msra.mxu0 %v1975
      %1998 = vmatprep.subr.bf16.mxu0 0
      %1999 = vmatpush1.bf16.msra.mxu0 %v1976
      %2000 = vmatprep.subr.bf16.mxu0 0
      %2001 = vmatpush1.bf16.msra.mxu0 %v1977
      %2002 = vmatprep.subr.bf16.mxu0 0
      %2003 = vmatpush1.bf16.msra.mxu0 0
      %2004 = vmatprep.subr.bf16.mxu0 0
      %2005 = vmatpush1.bf16.msra.mxu0 0
      %2006 = vmatprep.subr.bf16.mxu0 0
      %2007 = vmatpush1.bf16.msra.mxu0 0
      %2008 = vmatprep.subr.bf16.mxu0 0
      %2009 = vmatpush1.bf16.msra.mxu0 0
      %2010 = vmatprep.subr.bf16.mxu0 0
      %2011 = vmatpush1.bf16.msra.mxu0 0
      %2012 = vmatprep.subr.bf16.mxu0 0
      %2013 = vmatpush1.bf16.msra.mxu0 0
      %2014 = vmatprep.subr.bf16.mxu0 0
      %2015 = vmatpush1.bf16.msra.mxu0 0
      %2016 = vmatprep.subr.bf16.mxu0 0
      %2017 = vmatpush1.bf16.msra.mxu0 0
      %2018 = vmatprep.mubr.bf16.mxu0 0
      %2019 = vmatmul.mubr.bf16.gmra.mrb[0].mxu0 %v1930
      %v2020 = vpop.f32.mrb[0].mxu0
      %v2021 = vadd.f32 0.0, %v2020
      %v2022 = vpop.f32.mrb[0].mxu0
      %v2023 = vpop.f32.mrb[0].mxu0
      %v2024 = vadd.f32 0.0, %v2023
      %v2025 = vpop.f32.mrb[0].mxu0
      %2026 = vmatprep.mubr.bf16.mxu0 0
      %2027 = vmatmul.mubr.bf16.gmra.mrb[0].mxu0 %v1931
      %v2028 = vpop.f32.mrb[0].mxu0
      %v2029 = vadd.f32 0.0, %v2028
      %v2030 = vpop.f32.mrb[0].mxu0
      %v2031 = vpop.f32.mrb[0].mxu0
      %v2032 = vadd.f32 0.0, %v2031
      %v2033 = vpop.f32.mrb[0].mxu0
      %2034 = vmatprep.mubr.bf16.mxu0 0
      %2035 = vmatmul.mubr.bf16.gmra.mrb[0].mxu0 %v1932
      %v2036 = vpop.f32.mrb[0].mxu0
      %v2037 = vadd.f32 0.0, %v2036
      %v2038 = vpop.f32.mrb[0].mxu0
      %v2039 = vpop.f32.mrb[0].mxu0
      %v2040 = vadd.f32 0.0, %v2039
      %v2041 = vpop.f32.mrb[0].mxu0
      %2042 = vmatprep.mubr.bf16.mxu0 0
      %2043 = vmatmul.mubr.bf16.gmra.mrb[0].mxu0 %v1933
      %v2044 = vpop.f32.mrb[0].mxu0
      %v2045 = vadd.f32 0.0, %v2044
      %v2046 = vpop.f32.mrb[0].mxu0
      %v2047 = vpop.f32.mrb[0].mxu0
      %v2048 = vadd.f32 0.0, %v2047
      %v2049 = vpop.f32.mrb[0].mxu0
      %2050 = vdwg.mxu0
      %v2051 = vadd.f32 %v1769, %v2021
      %v2052 = vadd.f32 %v1770, %v2024
      %v2053 = vadd.f32 %v1771, %v2029
      %v2054 = vadd.f32 %v1772, %v2032
      %v2055 = vadd.f32 %v1773, %v2037
      %v2056 = vadd.f32 %v1774, %v2040
      %v2057 = vadd.f32 %v1775, %v2045
      %v2058 = vadd.f32 %v1776, %v2048
      %v2059 = vld [vmem:[%s1606] sm:$0xe]
      %v2060 = vld [vmem:[%s1606 + $0x8] sm:$0xe]
      %v2061 = vld [vmem:[%s1606 + $0x10] sm:$0xe]
      %v2062 = vld [vmem:[%s1606 + $0x18] sm:$0xe]
      %v2063 = vld [vmem:[%s1606 + $0x20] sm:$0xe]
      %v2064 = vld [vmem:[%s1606 + $0x28] sm:$0xe]
      %v2065 = vld [vmem:[%s1606 + $0x30] sm:$0xe]
      %v2066 = vld [vmem:[%s1606 + $0x38] sm:$0xe]
      %v2083 = vrot.slane %v2059, 5
      %v2084 = vrot.slane %v2083, 4
      %v2085 = vrot.slane %v1778, 5
      %v2086 = vsel %vm756, %v2084, %v2085
      %v2087 = vrot.slane %v2060, 5
      %v2088 = vrot.slane %v2087, 4
      %v2089 = vrot.slane %v1780, 5
      %v2090 = vsel %vm756, %v2088, %v2089
      %v2091 = vrot.slane %v2061, 5
      %v2092 = vrot.slane %v2091, 4
      %v2093 = vrot.slane %v1782, 5
      %v2094 = vsel %vm756, %v2092, %v2093
      %v2095 = vrot.slane %v2062, 5
      %v2096 = vrot.slane %v2095, 4
      %v2097 = vrot.slane %v1784, 5
      %v2098 = vsel %vm756, %v2096, %v2097
      %v2099 = vrot.slane %v2063, 5
      %v2100 = vrot.slane %v2099, 4
      %v2101 = vrot.slane %v1786, 5
      %v2102 = vsel %vm756, %v2100, %v2101
      %v2103 = vrot.slane %v2064, 5
      %v2104 = vrot.slane %v2103, 4
      %v2105 = vrot.slane %v1788, 5
      %v2106 = vsel %vm756, %v2104, %v2105
      %v2107 = vrot.slane %v2065, 5
      %v2108 = vrot.slane %v2107, 4
      %v2109 = vrot.slane %v1790, 5
      %v2110 = vsel %vm756, %v2108, %v2109
      %v2111 = vrot.slane %v2066, 5
      %v2112 = vrot.slane %v2111, 4
      %v2113 = vrot.slane %v1792, 5
      %v2114 = vsel %vm756, %v2112, %v2113
      %s2115 = scalar_lea.vmem %s1, 512
      %v2116 = vld [vmem:[%s2115] sm:$0xf]
      %v2117 = vld [vmem:[%s2115 + $0x4] sm:$0xf]
      %v2118 = vld [vmem:[%s2115 + $0x8] sm:$0xf]
      %v2119 = vld [vmem:[%s2115 + $0xc] sm:$0xf]
      %v2120 = vld [vmem:[%s2115 + $0x10] sm:$0xf]
      %v2121 = vld [vmem:[%s2115 + $0x14] sm:$0xf]
      %v2122 = vld [vmem:[%s2115 + $0x18] sm:$0xf]
      %v2123 = vld [vmem:[%s2115 + $0x1c] sm:$0xf]
      %v2124 = vld [vmem:[%s2115 + $0x20] sm:$0xf]
      %v2125 = vld [vmem:[%s2115 + $0x24] sm:$0xf]
      %v2126 = vld [vmem:[%s2115 + $0x28] sm:$0xf]
      %v2127 = vld [vmem:[%s2115 + $0x2c] sm:$0xf]
      %v2128 = vld [vmem:[%s2115 + $0x30] sm:$0xf]
      %v2129 = vld [vmem:[%s2115 + $0x34] sm:$0xf]
      %v2130 = vld [vmem:[%s2115 + $0x38] sm:$0xf]
      %v2131 = vld [vmem:[%s2115 + $0x3c] sm:$0xf]
      %v2132 = vunpack.c.l.b16 %v2086
      %v2133 = vunpack.c.l.b16 %v2090
      %v2134 = vunpack.c.l.b16 %v2094
      %v2135 = vunpack.c.l.b16 %v2098
      %v2136 = vunpack.c.l.b16 %v2102
      %v2137 = vunpack.c.l.b16 %v2106
      %v2138 = vunpack.c.l.b16 %v2110
      %v2139 = vunpack.c.l.b16 %v2114
      %v2140 = vpack.c.b16 %v2133, %v2132
      %v2141 = vpack.c.b16 %v2135, %v2134
      %v2142 = vpack.c.b16 %v2137, %v2136
      %v2143 = vpack.c.b16 %v2139, %v2138
      %v2164 = vunpack.c.l.b16 %v2116
      %v2165 = vunpack.c.l.b16 %v2117
      %v2166 = vunpack.c.l.b16 %v2118
      %v2167 = vunpack.c.l.b16 %v2119
      %v2168 = vunpack.c.l.b16 %v2120
      %v2169 = vunpack.c.l.b16 %v2121
      %v2170 = vunpack.c.l.b16 %v2122
      %v2171 = vunpack.c.l.b16 %v2123
      %v2172 = vunpack.c.l.b16 %v2124
      %v2173 = vunpack.c.l.b16 %v2125
      %v2174 = vunpack.c.l.b16 %v2126
      %v2175 = vunpack.c.l.b16 %v2127
      %v2176 = vunpack.c.l.b16 %v2128
      %v2177 = vunpack.c.l.b16 %v2129
      %v2178 = vunpack.c.l.b16 %v2130
      %v2179 = vunpack.c.l.b16 %v2131
      %v2180 = vpack.c.b16 %v2165, %v2164
      %v2181 = vpack.c.b16 %v2167, %v2166
      %v2182 = vpack.c.b16 %v2169, %v2168
      %v2183 = vpack.c.b16 %v2171, %v2170
      %v2184 = vpack.c.b16 %v2173, %v2172
      %v2185 = vpack.c.b16 %v2175, %v2174
      %v2186 = vpack.c.b16 %v2177, %v2176
      %v2187 = vpack.c.b16 %v2179, %v2178
      %2196 = vmatprep.subr.bf16.mxu0 0
      %2197 = vmatpush1.bf16.msra.mxu0 %v2180
      %2198 = vmatprep.subr.bf16.mxu0 0
      %2199 = vmatpush1.bf16.msra.mxu0 %v2181
      %2200 = vmatprep.subr.bf16.mxu0 0
      %2201 = vmatpush1.bf16.msra.mxu0 %v2182
      %2202 = vmatprep.subr.bf16.mxu0 0
      %2203 = vmatpush1.bf16.msra.mxu0 %v2183
      %2204 = vmatprep.subr.bf16.mxu0 0
      %2205 = vmatpush1.bf16.msra.mxu0 %v2184
      %2206 = vmatprep.subr.bf16.mxu0 0
      %2207 = vmatpush1.bf16.msra.mxu0 %v2185
      %2208 = vmatprep.subr.bf16.mxu0 0
      %2209 = vmatpush1.bf16.msra.mxu0 %v2186
      %2210 = vmatprep.subr.bf16.mxu0 0
      %2211 = vmatpush1.bf16.msra.mxu0 %v2187
      %2212 = vmatprep.subr.bf16.mxu0 0
      %2213 = vmatpush1.bf16.msra.mxu0 0
      %2214 = vmatprep.subr.bf16.mxu0 0
      %2215 = vmatpush1.bf16.msra.mxu0 0
      %2216 = vmatprep.subr.bf16.mxu0 0
      %2217 = vmatpush1.bf16.msra.mxu0 0
      %2218 = vmatprep.subr.bf16.mxu0 0
      %2219 = vmatpush1.bf16.msra.mxu0 0
      %2220 = vmatprep.subr.bf16.mxu0 0
      %2221 = vmatpush1.bf16.msra.mxu0 0
      %2222 = vmatprep.subr.bf16.mxu0 0
      %2223 = vmatpush1.bf16.msra.mxu0 0
      %2224 = vmatprep.subr.bf16.mxu0 0
      %2225 = vmatpush1.bf16.msra.mxu0 0
      %2226 = vmatprep.subr.bf16.mxu0 0
      %2227 = vmatpush1.bf16.msra.mxu0 0
      %2228 = vmatprep.mubr.bf16.mxu0 0
      %2229 = vmatmul.mubr.bf16.gmra.mrb[0].mxu0 %v2140
      %v2230 = vpop.f32.mrb[0].mxu0
      %v2231 = vadd.f32 0.0, %v2230
      %v2232 = vpop.f32.mrb[0].mxu0
      %v2233 = vpop.f32.mrb[0].mxu0
      %v2234 = vadd.f32 0.0, %v2233
      %v2235 = vpop.f32.mrb[0].mxu0
      %2236 = vmatprep.mubr.bf16.mxu0 0
      %2237 = vmatmul.mubr.bf16.gmra.mrb[0].mxu0 %v2141
      %v2238 = vpop.f32.mrb[0].mxu0
      %v2239 = vadd.f32 0.0, %v2238
      %v2240 = vpop.f32.mrb[0].mxu0
      %v2241 = vpop.f32.mrb[0].mxu0
      %v2242 = vadd.f32 0.0, %v2241
      %v2243 = vpop.f32.mrb[0].mxu0
      %2244 = vmatprep.mubr.bf16.mxu0 0
      %2245 = vmatmul.mubr.bf16.gmra.mrb[0].mxu0 %v2142
      %v2246 = vpop.f32.mrb[0].mxu0
      %v2247 = vadd.f32 0.0, %v2246
      %v2248 = vpop.f32.mrb[0].mxu0
      %v2249 = vpop.f32.mrb[0].mxu0
      %v2250 = vadd.f32 0.0, %v2249
      %v2251 = vpop.f32.mrb[0].mxu0
      %2252 = vmatprep.mubr.bf16.mxu0 0
      %2253 = vmatmul.mubr.bf16.gmra.mrb[0].mxu0 %v2143
      %v2254 = vpop.f32.mrb[0].mxu0
      %v2255 = vadd.f32 0.0, %v2254
      %v2256 = vpop.f32.mrb[0].mxu0
      %v2257 = vpop.f32.mrb[0].mxu0
      %v2258 = vadd.f32 0.0, %v2257
      %v2259 = vpop.f32.mrb[0].mxu0
      %2260 = vdwg.mxu0
      %v2261 = vadd.f32 %v2051, %v2231
      %v2262 = vadd.f32 %v2052, %v2234
      %v2263 = vadd.f32 %v2053, %v2239
      %v2264 = vadd.f32 %v2054, %v2242
      %v2265 = vadd.f32 %v2055, %v2247
      %v2266 = vadd.f32 %v2056, %v2250
      %v2267 = vadd.f32 %v2057, %v2255
      %v2268 = vadd.f32 %v2058, %v2258
      %v2269 = vld [vmem:[%s2] sm:$0x1]
      %v2271 = vlaneseq
      %v2272 = vshrl.u32 %v2271, 7
      %v2273 = vsub.s32 0, %v2272
      %v2274 = vrot.slane %v2269, %v2273
      %v2276 = vmul.f32 %v2261, %v2274
      %v2277 = vmul.f32 %v2262, %v2274
      %v2278 = vmul.f32 %v2263, %v2274
      %v2279 = vmul.f32 %v2264, %v2274
      %v2280 = vmul.f32 %v2265, %v2274
      %v2281 = vmul.f32 %v2266, %v2274
      %v2282 = vmul.f32 %v2267, %v2274
      %v2283 = vmul.f32 %v2268, %v2274
      %v2284 = vld [vmem:[%s3] sm:$0x1]
      %v2286 = vlaneseq
      %v2287 = vshrl.u32 %v2286, 7
      %v2288 = vsub.s32 0, %v2287
      %v2289 = vrot.slane %v2284, %v2288
      %v2291 = vadd.f32 %v2276, %v2289
      %v2292 = vadd.f32 %v2277, %v2289
      %v2293 = vadd.f32 %v2278, %v2289
      %v2294 = vadd.f32 %v2279, %v2289
      %v2295 = vadd.f32 %v2280, %v2289
      %v2296 = vadd.f32 %v2281, %v2289
      %v2297 = vadd.f32 %v2282, %v2289
      %v2298 = vadd.f32 %v2283, %v2289
      %v2299 = vmax.f32 %v2291, 0.0
      %v2300 = vmax.f32 %v2292, 0.0
      %v2301 = vmax.f32 %v2293, 0.0
      %v2302 = vmax.f32 %v2294, 0.0
      %v2303 = vmax.f32 %v2295, 0.0
      %v2304 = vmax.f32 %v2296, 0.0
      %v2305 = vmax.f32 %v2297, 0.0
      %v2306 = vmax.f32 %v2298, 0.0
      %v2307 = vpack.c.bf16 %v2300, %v2299
      %v2308 = vpack.c.bf16 %v2302, %v2301
      %v2309 = vpack.c.bf16 %v2304, %v2303
      %v2310 = vpack.c.bf16 %v2306, %v2305
      %v2311 = vld [vmem:[%s4] sm:$0xf]
      %v2312 = vld [vmem:[%s4 + $0x4] sm:$0xf]
      %v2313 = vld [vmem:[%s4 + $0x8] sm:$0xf]
      %v2314 = vld [vmem:[%s4 + $0xc] sm:$0xf]
      %v2315 = vld [vmem:[%s4 + $0x10] sm:$0xf]
      %v2316 = vld [vmem:[%s4 + $0x14] sm:$0xf]
      %v2317 = vld [vmem:[%s4 + $0x18] sm:$0xf]
      %v2318 = vld [vmem:[%s4 + $0x1c] sm:$0xf]
      %v2319 = vld [vmem:[%s4 + $0x20] sm:$0xf]
      %v2320 = vld [vmem:[%s4 + $0x24] sm:$0xf]
      %v2321 = vld [vmem:[%s4 + $0x28] sm:$0xf]
      %v2322 = vld [vmem:[%s4 + $0x2c] sm:$0xf]
      %v2323 = vld [vmem:[%s4 + $0x30] sm:$0xf]
      %v2324 = vld [vmem:[%s4 + $0x34] sm:$0xf]
      %v2325 = vld [vmem:[%s4 + $0x38] sm:$0xf]
      %v2326 = vld [vmem:[%s4 + $0x3c] sm:$0xf]
      %v2327 = vld [vmem:[%s5] sm:$0x1]
      %v2329 = vlaneseq
      %v2330 = vshrl.u32 %v2329, 7
      %v2331 = vsub.s32 0, %v2330
      %v2332 = vrot.slane %v2327, %v2331
      %v2350 = vunpack.c.l.b16 %v2311
      %v2351 = vunpack.c.l.b16 %v2312
      %v2352 = vunpack.c.l.b16 %v2313
      %v2353 = vunpack.c.l.b16 %v2314
      %v2354 = vunpack.c.l.b16 %v2315
      %v2355 = vunpack.c.l.b16 %v2316
      %v2356 = vunpack.c.l.b16 %v2317
      %v2357 = vunpack.c.l.b16 %v2318
      %v2358 = vunpack.c.l.b16 %v2319
      %v2359 = vunpack.c.l.b16 %v2320
      %v2360 = vunpack.c.l.b16 %v2321
      %v2361 = vunpack.c.l.b16 %v2322
      %v2362 = vunpack.c.l.b16 %v2323
      %v2363 = vunpack.c.l.b16 %v2324
      %v2364 = vunpack.c.l.b16 %v2325
      %v2365 = vunpack.c.l.b16 %v2326
      %v2366 = vpack.c.b16 %v2351, %v2350
      %v2367 = vpack.c.b16 %v2353, %v2352
      %v2368 = vpack.c.b16 %v2355, %v2354
      %v2369 = vpack.c.b16 %v2357, %v2356
      %v2370 = vpack.c.b16 %v2359, %v2358
      %v2371 = vpack.c.b16 %v2361, %v2360
      %v2372 = vpack.c.b16 %v2363, %v2362
      %v2373 = vpack.c.b16 %v2365, %v2364
      %2382 = vmatprep.subr.bf16.mxu0 0
      %2383 = vmatpush1.bf16.msra.mxu0 %v2366
      %2384 = vmatprep.subr.bf16.mxu0 0
      %2385 = vmatpush1.bf16.msra.mxu0 %v2367
      %2386 = vmatprep.subr.bf16.mxu0 0
      %2387 = vmatpush1.bf16.msra.mxu0 %v2368
      %2388 = vmatprep.subr.bf16.mxu0 0
      %2389 = vmatpush1.bf16.msra.mxu0 %v2369
      %2390 = vmatprep.subr.bf16.mxu0 0
      %2391 = vmatpush1.bf16.msra.mxu0 %v2370
      %2392 = vmatprep.subr.bf16.mxu0 0
      %2393 = vmatpush1.bf16.msra.mxu0 %v2371
      %2394 = vmatprep.subr.bf16.mxu0 0
      %2395 = vmatpush1.bf16.msra.mxu0 %v2372
      %2396 = vmatprep.subr.bf16.mxu0 0
      %2397 = vmatpush1.bf16.msra.mxu0 %v2373
      %2398 = vmatprep.subr.bf16.mxu0 0
      %2399 = vmatpush1.bf16.msra.mxu0 0
      %2400 = vmatprep.subr.bf16.mxu0 0
      %2401 = vmatpush1.bf16.msra.mxu0 0
      %2402 = vmatprep.subr.bf16.mxu0 0
      %2403 = vmatpush1.bf16.msra.mxu0 0
      %2404 = vmatprep.subr.bf16.mxu0 0
      %2405 = vmatpush1.bf16.msra.mxu0 0
      %2406 = vmatprep.subr.bf16.mxu0 0
      %2407 = vmatpush1.bf16.msra.mxu0 0
      %2408 = vmatprep.subr.bf16.mxu0 0
      %2409 = vmatpush1.bf16.msra.mxu0 0
      %2410 = vmatprep.subr.bf16.mxu0 0
      %2411 = vmatpush1.bf16.msra.mxu0 0
      %2412 = vmatprep.subr.bf16.mxu0 0
      %2413 = vmatpush1.bf16.msra.mxu0 0
      %2414 = vmatprep.mubr.bf16.mxu0 0
      %2415 = vmatmul.mubr.bf16.gmra.mrb[0].mxu0 %v2307
      %v2416 = vpop.f32.mrb[0].mxu0
      %v2417 = vadd.f32 %v2332, %v2416
      %v2418 = vpop.f32.mrb[0].mxu0
      %v2419 = vpop.f32.mrb[0].mxu0
      %v2420 = vadd.f32 %v2332, %v2419
      %v2421 = vpop.f32.mrb[0].mxu0
      %2422 = vmatprep.mubr.bf16.mxu0 0
      %2423 = vmatmul.mubr.bf16.gmra.mrb[0].mxu0 %v2308
      %v2424 = vpop.f32.mrb[0].mxu0
      %v2425 = vadd.f32 %v2332, %v2424
      %v2426 = vpop.f32.mrb[0].mxu0
      %v2427 = vpop.f32.mrb[0].mxu0
      %v2428 = vadd.f32 %v2332, %v2427
      %v2429 = vpop.f32.mrb[0].mxu0
      %2430 = vmatprep.mubr.bf16.mxu0 0
      %2431 = vmatmul.mubr.bf16.gmra.mrb[0].mxu0 %v2309
      %v2432 = vpop.f32.mrb[0].mxu0
      %v2433 = vadd.f32 %v2332, %v2432
      %v2434 = vpop.f32.mrb[0].mxu0
      %v2435 = vpop.f32.mrb[0].mxu0
      %v2436 = vadd.f32 %v2332, %v2435
      %v2437 = vpop.f32.mrb[0].mxu0
      %2438 = vmatprep.mubr.bf16.mxu0 0
      %2439 = vmatmul.mubr.bf16.gmra.mrb[0].mxu0 %v2310
      %v2440 = vpop.f32.mrb[0].mxu0
      %v2441 = vadd.f32 %v2332, %v2440
      %v2442 = vpop.f32.mrb[0].mxu0
      %v2443 = vpop.f32.mrb[0].mxu0
      %v2444 = vadd.f32 %v2332, %v2443
      %v2445 = vpop.f32.mrb[0].mxu0
      %2446 = vdwg.mxu0
      %v2447 = vld [vmem:[%s293] sm:$0xff]
      %v2448 = vld [vmem:[%s293 + $0x8] sm:$0xff]
      %v2449 = vld [vmem:[%s293 + $0x10] sm:$0xff]
      %v2450 = vld [vmem:[%s293 + $0x18] sm:$0xff]
      %v2451 = vld [vmem:[%s293 + $0x20] sm:$0xff]
      %v2452 = vld [vmem:[%s293 + $0x28] sm:$0xff]
      %v2453 = vld [vmem:[%s293 + $0x30] sm:$0xff]
      %v2454 = vld [vmem:[%s293 + $0x38] sm:$0xff]
      %v2455 = vadd.f32 %v2417, %v2447
      %v2456 = vadd.f32 %v2420, %v2448
      %v2457 = vadd.f32 %v2425, %v2449
      %v2458 = vadd.f32 %v2428, %v2450
      %v2459 = vadd.f32 %v2433, %v2451
      %v2460 = vadd.f32 %v2436, %v2452
      %v2461 = vadd.f32 %v2441, %v2453
      %v2462 = vadd.f32 %v2444, %v2454
      %2463 = vst [vmem:[%s298] sm:$0xff] %v2455
      %2464 = vst [vmem:[%s298 + $0x8] sm:$0xff] %v2456
      %2465 = vst [vmem:[%s298 + $0x10] sm:$0xff] %v2457
      %2466 = vst [vmem:[%s298 + $0x18] sm:$0xff] %v2458
      %2467 = vst [vmem:[%s298 + $0x20] sm:$0xff] %v2459
      %2468 = vst [vmem:[%s298 + $0x28] sm:$0xff] %v2460
      %2469 = vst [vmem:[%s298 + $0x30] sm:$0xff] %v2461
      %2470 = vst [vmem:[%s298 + $0x38] sm:$0xff] %v2462
      %p2471 = scmp.lt.s32.totalorder %s18, 1
      %s2472 = scalar_select %p2471, %s18, 1
      %s2473 = smul.addr %s2472, 8
      %s2474 = smul.addr %s2473, 8
      %s2475 = scalar_lea.vmem %s7, %s2474
      // Predicated region
      $region49: #{down_bottleneck_pallas.3} parent=47 // pred_check
        %p2476 = pneg %p193
      $region50: #{down_bottleneck_pallas.3} parent=47 // pred_check_branch
        %2478 = sbr.rel (%p2476) target = $region52
      $region51: #{down_bottleneck_pallas.3} parent=47 // pred_region
        _
      $region52: #{down_bottleneck_pallas.3} parent=47 // pred_fallthru
        _
    $region48: #{down_bottleneck_pallas.3} parent=5 // pred_fallthru
      _
    %p2479 = scmp.le.s32.totalorder 2, %s13
    // Predicated region
    $region53: #{down_bottleneck_pallas.3} parent=5 // pred_check
      %p2480 = pneg %p2479
    $region54: #{down_bottleneck_pallas.3} parent=5 // pred_check_branch
      %2482 = sbr.rel (%p2480) target = $region56
    $region55: #{down_bottleneck_pallas.3} parent=5 // pred_region
      %s2483 = ssub.s32 %s13, 2
      // Predicated region
      $region57: #{down_bottleneck_pallas.3} parent=55 // pred_check
        %p2484 = pneg %p199
      $region58: #{down_bottleneck_pallas.3} parent=55 // pred_check_branch
        %2486 = sbr.rel (%p2484) target = $region60
      $region59: #{down_bottleneck_pallas.3} parent=55 // pred_region
        %p2487 = scmp.lt.s32.totalorder %s19, 1
        %s2488 = scalar_select %p2487, %s19, 1
        %s2489 = smul.addr %s2488, 8
        %s2490 = smul.addr %s2489, 8
        %s2491 = scalar_lea.vmem %s7, %s2490
      $region60: #{down_bottleneck_pallas.3} parent=55 // pred_fallthru
        _
    $region56: #{down_bottleneck_pallas.3} parent=5 // pred_fallthru
      _
  $region6: #{down_bottleneck_pallas.3} parent=0 // loop_footer
    %s17 = sadd.s32 1, %s13
  $region7: #{down_bottleneck_pallas.3} parent=0 // loop_footer_branch
    %12 = sbr.rel target = $region3
  $region8: #{down_bottleneck_pallas.3} parent=0 // loop_exit
    _

</llo_original>
